<compile_context>
chip_gen: v6e
topology: v6e:2x2x1
jax: 0.10.0
libtpu: 0.0.40
codegen_flags: <defaults>
</compile_context>

<pallas_src>
import math

import jax
import jax.numpy as jnp
from jax.experimental import pallas as pl
from jax.experimental.pallas import tpu as pltpu

D_MODEL = 768
N_HEADS = 12
HEAD_DIM = 64
FFN_DIM = 1024          # TODO(synk): BERT-base uses 3072; shrunk (synthetic stand-in)
H_CLS1 = 256
H_CLS2 = 64
H_CLS2_PAD = 128        # classifier hidden 64 padded to a full 128-lane tile
D_OUT = 3
D_OUT_PAD = 128         # logits padded to 128 lanes (lane-dense store), sliced in wrapper
EPS = 1e-12
NEG_BIG = -1e9          # cross-batch block mask
# VMEM cap valid on every generation (<= 64 MiB physical on v7x); resident bf16
# weights here are ~8.5 MB so there is ample headroom for double-buffered tiles.
VMEM_LIMIT = 48 * 1024 * 1024


def _gelu(x):
    # TODO(synk): nn.GELU() default is exact erf-GELU; tanh approximation used here.
    return jax.nn.gelu(x, approximate=True)


def _layer_norm(x, gamma, beta):
    mu = jnp.mean(x, axis=-1, keepdims=True)
    var = jnp.mean(jnp.square(x - mu), axis=-1, keepdims=True)
    return (x - mu) * jax.lax.rsqrt(var + EPS) * gamma + beta


def _pick_tq(t):
    """Largest query-row tile <= 256 that divides T (prefers >= 2 grid steps)."""
    best = t
    for cand in (8, 16, 32, 64, 128, 256):
        if cand < t and t % cand == 0:
            best = cand
    return best


# -----------------------------------------------------------------------------
# Kernel A: fused QKV projection, token-row tiled. One MXU weight push of
# [768, 2304] bf16; attention scale pre-folded into the Q columns.
# -----------------------------------------------------------------------------
def qkv_kernel(x_ref, wqkv_ref, bqkv_ref, q_ref, k_ref, v_ref):
    x_bf = x_ref[...].astype(jnp.bfloat16)
    qkv = jnp.dot(x_bf, wqkv_ref[...],
                  preferred_element_type=jnp.float32) + bqkv_ref[...]
    q_ref[...] = qkv[:, 0 * D_MODEL:1 * D_MODEL].astype(jnp.bfloat16)
    k_ref[...] = qkv[:, 1 * D_MODEL:2 * D_MODEL].astype(jnp.bfloat16)
    v_ref[...] = qkv[:, 2 * D_MODEL:3 * D_MODEL].astype(jnp.bfloat16)


# -----------------------------------------------------------------------------
# Kernel B: per-query-tile attention + out-proj + residual/LN + FFN + residual/LN.
# K/V and all weights are full-extent (resident) inputs; the query tile axis is
# the parallel grid axis.
# -----------------------------------------------------------------------------
def encoder_kernel(x_ref, q_ref, k_ref, v_ref,
                   mask_ref, qbat_ref, kbat_ref,
                   wo_ref, bo_ref, g1_ref, be1_ref,
                   w1_ref, b1_ref, w2_ref, b2_ref, g2_ref, be2_ref,
                   o_ref, ctx_sc):
    # ---- additive attention bias for this query tile, built in-kernel from
    #      [1,T] padding mask + [TQ,1]/[1,T] batch ids (no [T,T] HBM bias) ----
    same_batch = qbat_ref[...] == kbat_ref[...]            # [TQ,1]==[1,T] -> [TQ,T]
    pad_bias = (1.0 - mask_ref[...]) * -10000.0            # [1, T] (HF-style)
    bias = jnp.where(same_batch, pad_bias, NEG_BIG)        # [TQ, T] f32

    # ---- attention, heads processed in PAIRS: only one pair's [TQ,T] scores is
    #      live at a time, and every ctx store is a lane-dense [TQ,128] write ----
    for pair in range(N_HEADS // 2):
        c0 = pair * 2 * HEAD_DIM
        qp = q_ref[:, c0:c0 + 2 * HEAD_DIM]                # [TQ,128] bf16 (scale folded)
        kp = k_ref[:, c0:c0 + 2 * HEAD_DIM]                # [T, 128] bf16
        vp = v_ref[:, c0:c0 + 2 * HEAD_DIM]                # [T, 128] bf16
        ctx_pair = []
        for h in range(2):
            lo = h * HEAD_DIM
            qh = qp[:, lo:lo + HEAD_DIM]                   # bf16 MXU operands,
            kh = kp[:, lo:lo + HEAD_DIM]                   # f32 accumulation
            vh = vp[:, lo:lo + HEAD_DIM]
            s = jax.lax.dot_general(qh, kh, (((1,), (1,)), ((), ())),
                                    preferred_element_type=jnp.float32)  # [TQ,T]
            s = s + bias
            s = s - jnp.max(s, axis=-1, keepdims=True)
            p = jnp.exp(s)
            inv_l = pl.reciprocal(jnp.sum(p, axis=-1, keepdims=True), approx=True)
            p = (p * inv_l).astype(jnp.bfloat16)
            ctx_pair.append(jnp.dot(p, vh, preferred_element_type=jnp.float32))
        ctx_sc[:, c0:c0 + 2 * HEAD_DIM] = (
            jnp.concatenate(ctx_pair, axis=-1).astype(jnp.bfloat16))

    # ---- out-projection + residual + LayerNorm (f32 stats) ----
    x = x_ref[...]                                         # [TQ, D] f32
    attn = jnp.dot(ctx_sc[...], wo_ref[...],
                   preferred_element_type=jnp.float32) + bo_ref[...]
    h1 = _layer_norm(x + attn, g1_ref[...], be1_ref[...])

    # ---- FFN + GELU + residual + LayerNorm ----
    mid = _gelu(jnp.dot(h1.astype(jnp.bfloat16), w1_ref[...],
                        preferred_element_type=jnp.float32) + b1_ref[...])
    ffn = jnp.dot(mid.astype(jnp.bfloat16), w2_ref[...],
                  preferred_element_type=jnp.float32) + b2_ref[...]
    o_ref[...] = _layer_norm(h1 + ffn, g2_ref[...], be2_ref[...])


# -----------------------------------------------------------------------------
# Kernel C: classifier MLP, applied ONLY to the (padded) CLS rows.
# Hidden 64 and logits 3 are zero-padded to 128 lanes; GELU(0)=0 keeps padded
# columns exactly zero through the stack.
# -----------------------------------------------------------------------------
def classifier_kernel(x_ref, wc1_ref, bc1_ref, wc2_ref, bc2_ref, wc3_ref, bc3_ref,
                      o_ref):
    c = _gelu(jnp.dot(x_ref[...].astype(jnp.bfloat16), wc1_ref[...],
                      preferred_element_type=jnp.float32) + bc1_ref[...])
    c = _gelu(jnp.dot(c.astype(jnp.bfloat16), wc2_ref[...],
                      preferred_element_type=jnp.float32) + bc2_ref[...])
    o_ref[...] = jnp.dot(c.astype(jnp.bfloat16), wc3_ref[...],
                         preferred_element_type=jnp.float32) + bc3_ref[...]


# -----------------------------------------------------------------------------
# Parameter init (deterministic, synthetic) and full forward.
# -----------------------------------------------------------------------------
def init_params(key, vocab_size, max_seq):
    ks = iter(jax.random.split(key, 32))
    n = lambda shape: (0.02 * jax.random.normal(next(ks), shape)).astype(jnp.float32)
    zf = lambda shape: jnp.zeros(shape, jnp.float32)
    of = lambda shape: jnp.ones(shape, jnp.float32)
    bf16 = jnp.bfloat16

    emb = dict(word=n((vocab_size, D_MODEL)), pos=n((max_seq, D_MODEL)),
               type=n((2, D_MODEL)), g=of((1, D_MODEL)), b=zf((1, D_MODEL)))

    # Fused QKV weight [D, 3D] (bf16); attention scale folded into the Q columns.
    scale = 1.0 / math.sqrt(HEAD_DIM)
    wq, wk, wv = n((D_MODEL, D_MODEL)), n((D_MODEL, D_MODEL)), n((D_MODEL, D_MODEL))
    bq, bk, bv = zf((1, D_MODEL)), zf((1, D_MODEL)), zf((1, D_MODEL))
    wqkv = jnp.concatenate([wq * scale, wk, wv], axis=1).astype(bf16)
    bqkv = jnp.concatenate([bq * scale, bk, bv], axis=1)               # f32

    enc = (wqkv, bqkv,
           n((D_MODEL, D_MODEL)).astype(bf16), zf((1, D_MODEL)),       # Wo, bo
           of((1, D_MODEL)), zf((1, D_MODEL)),                         # LN1 gamma/beta
           n((D_MODEL, FFN_DIM)).astype(bf16), zf((1, FFN_DIM)),       # FFN W1, b1
           n((FFN_DIM, D_MODEL)).astype(bf16), zf((1, D_MODEL)),       # FFN W2, b2
           of((1, D_MODEL)), zf((1, D_MODEL)))                         # LN2 gamma/beta

    wc1, bc1 = n((D_MODEL, H_CLS1)), zf((1, H_CLS1))
    wc2, bc2 = n((H_CLS1, H_CLS2)), zf((1, H_CLS2))
    wc3, bc3 = n((H_CLS2, D_OUT)), zf((1, D_OUT))
    # Zero-pad 64 -> 128 hidden and 3 -> 128 logits for lane-dense matmuls/stores.
    wc2p = jnp.zeros((H_CLS1, H_CLS2_PAD), jnp.float32).at[:, :H_CLS2].set(wc2)
    bc2p = jnp.zeros((1, H_CLS2_PAD), jnp.float32).at[:, :H_CLS2].set(bc2)
    wc3p = jnp.zeros((H_CLS2_PAD, D_OUT_PAD), jnp.float32).at[:H_CLS2, :D_OUT].set(wc3)
    bc3p = jnp.zeros((1, D_OUT_PAD), jnp.float32).at[:, :D_OUT].set(bc3)
    cls_params = (wc1.astype(bf16), bc1, wc2p.astype(bf16), bc2p,
                  wc3p.astype(bf16), bc3p)
    return emb, enc, cls_params


def bert_classifier_forward(input_ids, attention_mask, emb, enc, cls_params):
    batch, seq = input_ids.shape
    t = batch * seq
    tq = _pick_tq(t)
    grid = (t // tq,)

    # ---- embeddings + embedding LayerNorm (plain-JAX glue: gather) ----
    x = (emb["word"][input_ids]
         + emb["pos"][jnp.arange(seq)][None, :, :]
         + emb["type"][0][None, None, :])                              # [B, S, D]
    x = _layer_norm(x, emb["g"][0], emb["b"][0]).astype(jnp.float32)
    x_flat = x.reshape(t, D_MODEL)

    # Tiny per-token vectors only: padding mask row + batch ids (column/row).
    mask_row = attention_mask.astype(jnp.float32).reshape(1, t)
    batch_ids = jnp.repeat(jnp.arange(batch, dtype=jnp.int32), seq)
    qbat = batch_ids.reshape(t, 1)
    kbat = batch_ids.reshape(1, t)

    (wqkv, bqkv, wo, bo, g1, be1, w1, b1, w2, b2, g2, be2) = enc

    # ---- kernel A: fused QKV projection (token-row tiled, parallel grid) ----
    q, k, v = pl.pallas_call(
        qkv_kernel,
        out_shape=[jax.ShapeDtypeStruct((t, D_MODEL), jnp.bfloat16)] * 3,
        grid_spec=pltpu.PrefetchScalarGridSpec(
            num_scalar_prefetch=0, grid=grid,
            in_specs=[pl.BlockSpec((tq, D_MODEL), lambda i: (i, 0)),
                      pl.BlockSpec((D_MODEL, 3 * D_MODEL), lambda i: (0, 0)),
                      pl.BlockSpec((1, 3 * D_MODEL), lambda i: (0, 0))],
            out_specs=[pl.BlockSpec((tq, D_MODEL), lambda i: (i, 0))] * 3),
        compiler_params=pltpu.CompilerParams(
            dimension_semantics=("parallel",), vmem_limit_bytes=VMEM_LIMIT),
    )(x_flat, wqkv, bqkv)

    # ---- kernel B: encoder layer (query-row tiled, parallel grid) ----
    full = lambda shape: pl.BlockSpec(shape, lambda i: (0, 0))   # resident input
    h2 = pl.pallas_call(
        encoder_kernel,
        out_shape=jax.ShapeDtypeStruct((t, D_MODEL), jnp.float32),
        grid_spec=pltpu.PrefetchScalarGridSpec(
            num_scalar_prefetch=0, grid=grid,
            in_specs=[pl.BlockSpec((tq, D_MODEL), lambda i: (i, 0)),   # x residual tile
                      pl.BlockSpec((tq, D_MODEL), lambda i: (i, 0)),   # Q tile (bf16)
                      full((t, D_MODEL)),                              # K (resident)
                      full((t, D_MODEL)),                              # V (resident)
                      full((1, t)),                                    # key padding mask
                      pl.BlockSpec((tq, 1), lambda i: (i, 0)),         # query batch ids
                      full((1, t)),                                    # key batch ids
                      full((D_MODEL, D_MODEL)), full((1, D_MODEL)),    # Wo, bo
                      full((1, D_MODEL)), full((1, D_MODEL)),          # LN1 gamma/beta
                      full((D_MODEL, FFN_DIM)), full((1, FFN_DIM)),    # FFN W1, b1
                      full((FFN_DIM, D_MODEL)), full((1, D_MODEL)),    # FFN W2, b2
                      full((1, D_MODEL)), full((1, D_MODEL))],         # LN2 gamma/beta
            out_specs=pl.BlockSpec((tq, D_MODEL), lambda i: (i, 0)),
            scratch_shapes=[pltpu.VMEM((tq, D_MODEL), jnp.bfloat16)]),
        compiler_params=pltpu.CompilerParams(
            dimension_semantics=("parallel",), vmem_limit_bytes=VMEM_LIMIT),
    )(x_flat, q, k, v, mask_row, qbat, kbat,
      wo, bo, g1, be1, w1, b1, w2, b2, g2, be2)

    # ---- CLS pooling (outputs[0][:, 0, :]) then classifier head on CLS rows only ----
    cls_rows = h2.reshape(batch, seq, D_MODEL)[:, 0, :]                # [B, D]
    b_pad = ((batch + 7) // 8) * 8
    cls_pad = jnp.zeros((b_pad, D_MODEL), jnp.float32).at[:batch].set(cls_rows)
    logits_pad = pl.pallas_call(
        classifier_kernel,
        out_shape=jax.ShapeDtypeStruct((b_pad, D_OUT_PAD), jnp.float32),
    )(cls_pad, *cls_params)
    return logits_pad[:batch, :D_OUT]                                  # [B, 3]


if __name__ == "__main__":
    BATCH, SEQ, VOCAB = 2, 8, 1000
    key = jax.random.PRNGKey(0)
    k_ids, k_params = jax.random.split(key)

    input_ids = jax.random.randint(k_ids, (BATCH, SEQ), 0, VOCAB, dtype=jnp.int32)
    attention_mask = jnp.ones((BATCH, SEQ), jnp.float32)

    emb, enc, cls_params = init_params(k_params, VOCAB, SEQ)
    logits = bert_classifier_forward(input_ids, attention_mask, emb, enc, cls_params)
    logits = jax.block_until_ready(logits)
    assert logits.shape == (BATCH, D_OUT) and logits.dtype == jnp.float32
    print("KERNEL_OK")
</pallas_src>

<mosaic_0001>
module attributes {stable_mosaic.version = 11 : i64} {
  func.func @qkv_kernel(%arg0: i32, %arg1: memref<8x768xf32, #tpu.memory_space<vmem>>, %arg2: memref<768x2304xbf16, #tpu.memory_space<vmem>>, %arg3: memref<1x2304xf32, #tpu.memory_space<vmem>>, %arg4: memref<8x768xbf16, #tpu.memory_space<vmem>>, %arg5: memref<8x768xbf16, #tpu.memory_space<vmem>>, %arg6: memref<8x768xbf16, #tpu.memory_space<vmem>>) attributes {dimension_semantics = [#tpu.dimension_semantics<parallel>], iteration_bounds = array<i64: 2>, scalar_prefetch = 0 : i64, scratch_operands = 0 : i64, tpu.core_type = #tpu.core_type<tc>, window_params = [{transform_indices = @transform_0, window_bounds = array<i64: 8, 768>}, {pipeline_mode = #tpu.pipeline_mode<synchronous>, transform_indices = @transform_1, window_bounds = array<i64: 768, 2304>}, {pipeline_mode = #tpu.pipeline_mode<synchronous>, transform_indices = @transform_2, window_bounds = array<i64: 1, 2304>}, {transform_indices = @transform_3, window_bounds = array<i64: 8, 768>}, {transform_indices = @transform_4, window_bounds = array<i64: 8, 768>}, {transform_indices = @transform_5, window_bounds = array<i64: 8, 768>}]} {
    %c0 = arith.constant 0 : index
    %c0_0 = arith.constant 0 : index
    %0 = vector.load %arg1[%c0, %c0_0] : memref<8x768xf32, #tpu.memory_space<vmem>>, vector<8x768xf32>
    %1 = arith.truncf %0 : vector<8x768xf32> to vector<8x768xbf16>
    %c0_1 = arith.constant 0 : index
    %c0_2 = arith.constant 0 : index
    %2 = vector.load %arg2[%c0_1, %c0_2] : memref<768x2304xbf16, #tpu.memory_space<vmem>>, vector<768x2304xbf16>
    %cst = arith.constant dense<0.000000e+00> : vector<8x2304xf32>
    %3 = tpu.matmul %1, %2, %cst {dimension_numbers = #tpu.dot_dimension_numbers<[1], [0], [0], [1], [0, 0, 1, 1], [], []>} : vector<8x768xbf16>, vector<768x2304xbf16>, vector<8x2304xf32> -> vector<8x2304xf32>
    %c0_3 = arith.constant 0 : index
    %c0_4 = arith.constant 0 : index
    %4 = vector.load %arg3[%c0_3, %c0_4] : memref<1x2304xf32, #tpu.memory_space<vmem>>, vector<1x2304xf32>
    %5 = vector.broadcast %4 : vector<1x2304xf32> to vector<8x2304xf32>
    %6 = arith.addf %3, %5 : vector<8x2304xf32>
    %7 = vector.extract_strided_slice %6 {offsets = [0, 0], sizes = [8, 768], strides = [1, 1]} : vector<8x2304xf32> to vector<8x768xf32>
    %8 = arith.truncf %7 : vector<8x768xf32> to vector<8x768xbf16>
    %c0_5 = arith.constant 0 : index
    %c0_6 = arith.constant 0 : index
    %9 = vector.load %arg4[%c0_5, %c0_6] : memref<8x768xbf16, #tpu.memory_space<vmem>>, vector<8x768xbf16>
    tpu.vector_store %arg4[%c0_5, %c0_6], %8 {strides = array<i32>} : memref<8x768xbf16, #tpu.memory_space<vmem>>, vector<8x768xbf16>,
    %10 = vector.extract_strided_slice %6 {offsets = [0, 768], sizes = [8, 768], strides = [1, 1]} : vector<8x2304xf32> to vector<8x768xf32>
    %11 = arith.truncf %10 : vector<8x768xf32> to vector<8x768xbf16>
    %c0_7 = arith.constant 0 : index
    %c0_8 = arith.constant 0 : index
    %12 = vector.load %arg5[%c0_7, %c0_8] : memref<8x768xbf16, #tpu.memory_space<vmem>>, vector<8x768xbf16>
    tpu.vector_store %arg5[%c0_7, %c0_8], %11 {strides = array<i32>} : memref<8x768xbf16, #tpu.memory_space<vmem>>, vector<8x768xbf16>,
    %13 = vector.extract_strided_slice %6 {offsets = [0, 1536], sizes = [8, 768], strides = [1, 1]} : vector<8x2304xf32> to vector<8x768xf32>
    %14 = arith.truncf %13 : vector<8x768xf32> to vector<8x768xbf16>
    %c0_9 = arith.constant 0 : index
    %c0_10 = arith.constant 0 : index
    %15 = vector.load %arg6[%c0_9, %c0_10] : memref<8x768xbf16, #tpu.memory_space<vmem>>, vector<8x768xbf16>
    tpu.vector_store %arg6[%c0_9, %c0_10], %14 {strides = array<i32>} : memref<8x768xbf16, #tpu.memory_space<vmem>>, vector<8x768xbf16>,
    return
  }
  func.func @transform_0(%arg0: i32) -> (i32, i32) {
    %c0_i32 = arith.constant 0 : i32
    %c0_i32_0 = arith.constant 0 : i32
    return %arg0, %c0_i32 : i32, i32
  }
  func.func @transform_1(%arg0: i32) -> (i32, i32) {
    %c0_i32 = arith.constant 0 : i32
    %c0_i32_0 = arith.constant 0 : i32
    %c0_i32_1 = arith.constant 0 : i32
    return %c0_i32, %c0_i32_0 : i32, i32
  }
  func.func @transform_2(%arg0: i32) -> (i32, i32) {
    %c0_i32 = arith.constant 0 : i32
    %c0_i32_0 = arith.constant 0 : i32
    %c0_i32_1 = arith.constant 0 : i32
    return %c0_i32, %c0_i32_0 : i32, i32
  }
  func.func @transform_3(%arg0: i32) -> (i32, i32) {
    %c0_i32 = arith.constant 0 : i32
    %c0_i32_0 = arith.constant 0 : i32
    return %arg0, %c0_i32 : i32, i32
  }
  func.func @transform_4(%arg0: i32) -> (i32, i32) {
    %c0_i32 = arith.constant 0 : i32
    %c0_i32_0 = arith.constant 0 : i32
    return %arg0, %c0_i32 : i32, i32
  }
  func.func @transform_5(%arg0: i32) -> (i32, i32) {
    %c0_i32 = arith.constant 0 : i32
    %c0_i32_0 = arith.constant 0 : i32
    return %arg0, %c0_i32 : i32, i32
  }
}

</mosaic_0001>

<llo_original>
// kernel: tpu_custom_call.1
$region0: #{tpu_custom_call.1}
  #allocation0 [shape = 'u32[]', space=smem, size = 0x4, offset = 0x4, fixed_abs, tag = 'smem constant byte address 0x4 - core index']
  #allocation1 [shape = 'u32[144,128]{1,0:T(1,128)}', space=vmem, size = 0x12000, scoped, tag = 'internal scratch']
  %s0 = inlined_call_operand.hbm [shape: f32[16,768], index: 0, kind: input, shape index: {}]
  %s1 = inlined_call_operand.hbm [shape: bf16[768,2304], index: 1, kind: input, shape index: {}]
  %s2 = inlined_call_operand.hbm [shape: f32[1,2304], index: 2, kind: input, shape index: {}]
  %s3 = inlined_call_operand.hbm [shape: bf16[16,768], index: 3, kind: output, shape index: {0}]
  %s4 = inlined_call_operand.hbm [shape: bf16[16,768], index: 4, kind: output, shape index: {1}]
  %s5 = inlined_call_operand.hbm [shape: bf16[16,768], index: 5, kind: output, shape index: {2}]
  %6 = xla_tuple %s3, %s4, %s5
  %s7 = sld [smem:[#allocation0]]
  $region73: #{tpu_custom_call.1} parent=0
    _
  %s9 = ssub.s32 1, %s7
  %s10 = scalar_select 0, %s9, %s7
  $region1: #{tpu_custom_call.1} parent=0
    #allocation2 [shape = 'u8[49152]{0}', space=vmem, size = 0xc000, scoped, tag = 'input window, operand 0']
    #allocation3 [shape = 's32[2]{0}', space=sflag, size = 0x8, scoped, tag = 'scoped memory for tpu_custom_call.1']
    #allocation4 [shape = 's32[2]{0}', space=sflag, size = 0x8, scoped, tag = 'scoped memory for tpu_custom_call.1']
    #allocation5 [shape = 'u8[3538944]{0}', space=vmem, size = 0x360000, scoped, tag = 'input window, operand 1, single buffered']
    #allocation6 [shape = 's32[1]{0}', space=sflag, size = 0x4, scoped, tag = 'scoped memory for tpu_custom_call.1']
    #allocation7 [shape = 'u8[9216]{0}', space=vmem, size = 0x2400, scoped, tag = 'input window, operand 2, single buffered']
    #allocation8 [shape = 'u8[24576]{0}', space=vmem, size = 0x6000, scoped, tag = 'output window, operand 0']
    #allocation9 [shape = 'u8[24576]{0}', space=vmem, size = 0x6000, scoped, tag = 'output window, operand 1']
    #allocation10 [shape = 's32[2]{0}', space=sflag, size = 0x8, scoped, tag = 'scoped memory for tpu_custom_call.1']
    #allocation11 [shape = 'u8[24576]{0}', space=vmem, size = 0x6000, scoped, tag = 'output window, operand 2']
    %11 = vsyncpa [#allocation3], 0
    %s12 = scalar_lea.sflag [#allocation3], 1
    %13 = vsyncpa %s12, 0
    %14 = vsyncpa [#allocation6], 0
    %15 = vsyncpa [#allocation4], 0
    %s16 = scalar_lea.sflag [#allocation4], 1
    %17 = vsyncpa %s16, 0
    %18 = vsyncpa [#allocation10], 0
    %s19 = scalar_lea.sflag [#allocation10], 1
    %20 = vsyncpa %s19, 0
    loop: start=0, step=1, limit=4
    $region2: #{tpu_custom_call.1} parent=1 // loop_pre_header
      _
    $region3: #{tpu_custom_call.1} parent=1 // loop_header
      %s22 = sphi 0, %s26
      %p23 = scmp.ge.s32.totalorder %s22, 4
      %s32 = sphi 0, %s34
      %s35 = sphi 0, %s32
      %s36 = sphi 0, %s35
      %s52 = sphi 0, %s36
      %s56 = sphi 0, %s56
      %s58 = sphi 0, %s56
      %s59 = sphi 0, %s58
      %s73 = sphi 0, %s59
      %s77 = sphi 0, %s77
      %s79 = sphi 0, %s77
      %s80 = sphi 0, %s79
      %s94 = sphi 0, %s80
      %s100 = sphi 0, %s102
      %s103 = sphi 0, %s100
      %s104 = sphi 0, %s103
      %s120 = sphi 0, %s104
      %s126 = sphi 0, %s128
      %s129 = sphi 0, %s126
      %s130 = sphi 0, %s129
      %s146 = sphi 0, %s130
      %s152 = sphi 0, %s154
      %s155 = sphi 0, %s152
      %s156 = sphi 0, %s155
      %s172 = sphi 0, %s156
    $region4: #{tpu_custom_call.1} parent=1 // loop_header_branch
      %25 = sbr.rel (%p23) target = $region8
    $region5: #{tpu_custom_call.1} parent=1 // loop_body
      %s27 = ssub.s32 %s22, 1
      %s28 = ssub.s32 %s22, 2
      %s29 = sadd.s32 %s22, 1
      %s30 = ssub.s32 %s22, %s29
      %p31 = scmp.eq.s32.totalorder %s30, 0
      %s33 = sadd.s32 %s32, 1
      %s34 = scalar_select %p31, %s32, %s33
      %p37 = pneg %p31
      %p38 = scmp.eq.s32.totalorder %s22, 1
      %p39 = por %p37, %p38
      %p40 = scmp.ne.s32.totalorder %s32, %s35
      %p41 = scmp.eq.s32.totalorder %s22, 0
      %p42 = por %p40, %p41
      %p43 = scmp.ne.s32.totalorder %s32, %s35
      %p44 = scmp.eq.s32.totalorder %s27, 1
      %p45 = por %p43, %p44
      %p46 = scmp.ne.s32.totalorder %s35, %s36
      %p47 = scmp.eq.s32.totalorder %s27, 0
      %p48 = por %p46, %p47
      %p49 = scmp.ne.s32.totalorder %s35, %s36
      %p50 = scmp.eq.s32.totalorder %s28, 1
      %p51 = por %p49, %p50
      %p53 = scmp.ne.s32.totalorder %s36, %s52
      %p54 = scmp.eq.s32.totalorder %s28, 0
      %p55 = por %p53, %p54
      %s57 = sadd.s32 %s56, 1
      %p60 = scmp.eq.s32.totalorder %s22, 1
      %p61 = scmp.ne.s32.totalorder %s56, %s58
      %p62 = scmp.eq.s32.totalorder %s22, 0
      %p63 = por %p61, %p62
      %p64 = scmp.ne.s32.totalorder %s56, %s58
      %p65 = scmp.eq.s32.totalorder %s27, 1
      %p66 = por %p64, %p65
      %p67 = scmp.ne.s32.totalorder %s58, %s59
      %p68 = scmp.eq.s32.totalorder %s27, 0
      %p69 = por %p67, %p68
      %p70 = scmp.ne.s32.totalorder %s58, %s59
      %p71 = scmp.eq.s32.totalorder %s28, 1
      %p72 = por %p70, %p71
      %p74 = scmp.ne.s32.totalorder %s59, %s73
      %p75 = scmp.eq.s32.totalorder %s28, 0
      %p76 = por %p74, %p75
      %s78 = sadd.s32 %s77, 1
      %p81 = scmp.eq.s32.totalorder %s22, 1
      %p82 = scmp.ne.s32.totalorder %s77, %s79
      %p83 = scmp.eq.s32.totalorder %s22, 0
      %p84 = por %p82, %p83
      %p85 = scmp.ne.s32.totalorder %s77, %s79
      %p86 = scmp.eq.s32.totalorder %s27, 1
      %p87 = por %p85, %p86
      %p88 = scmp.ne.s32.totalorder %s79, %s80
      %p89 = scmp.eq.s32.totalorder %s27, 0
      %p90 = por %p88, %p89
      %p91 = scmp.ne.s32.totalorder %s79, %s80
      %p92 = scmp.eq.s32.totalorder %s28, 1
      %p93 = por %p91, %p92
      %p95 = scmp.ne.s32.totalorder %s80, %s94
      %p96 = scmp.eq.s32.totalorder %s28, 0
      %p97 = por %p95, %p96
      %s98 = ssub.s32 %s22, %s29
      %p99 = scmp.eq.s32.totalorder %s98, 0
      %s101 = sadd.s32 %s100, 1
      %s102 = scalar_select %p99, %s100, %s101
      %p105 = pneg %p99
      %p106 = scmp.eq.s32.totalorder %s22, 1
      %p107 = por %p105, %p106
      %p108 = scmp.ne.s32.totalorder %s100, %s103
      %p109 = scmp.eq.s32.totalorder %s22, 0
      %p110 = por %p108, %p109
      %p111 = scmp.ne.s32.totalorder %s100, %s103
      %p112 = scmp.eq.s32.totalorder %s27, 1
      %p113 = por %p111, %p112
      %p114 = scmp.ne.s32.totalorder %s103, %s104
      %p115 = scmp.eq.s32.totalorder %s27, 0
      %p116 = por %p114, %p115
      %p117 = scmp.ne.s32.totalorder %s103, %s104
      %p118 = scmp.eq.s32.totalorder %s28, 1
      %p119 = por %p117, %p118
      %p121 = scmp.ne.s32.totalorder %s104, %s120
      %p122 = scmp.eq.s32.totalorder %s28, 0
      %p123 = por %p121, %p122
      %s124 = ssub.s32 %s22, %s29
      %p125 = scmp.eq.s32.totalorder %s124, 0
      %s127 = sadd.s32 %s126, 1
      %s128 = scalar_select %p125, %s126, %s127
      %p131 = pneg %p125
      %p132 = scmp.eq.s32.totalorder %s22, 1
      %p133 = por %p131, %p132
      %p134 = scmp.ne.s32.totalorder %s126, %s129
      %p135 = scmp.eq.s32.totalorder %s22, 0
      %p136 = por %p134, %p135
      %p137 = scmp.ne.s32.totalorder %s126, %s129
      %p138 = scmp.eq.s32.totalorder %s27, 1
      %p139 = por %p137, %p138
      %p140 = scmp.ne.s32.totalorder %s129, %s130
      %p141 = scmp.eq.s32.totalorder %s27, 0
      %p142 = por %p140, %p141
      %p143 = scmp.ne.s32.totalorder %s129, %s130
      %p144 = scmp.eq.s32.totalorder %s28, 1
      %p145 = por %p143, %p144
      %p147 = scmp.ne.s32.totalorder %s130, %s146
      %p148 = scmp.eq.s32.totalorder %s28, 0
      %p149 = por %p147, %p148
      %s150 = ssub.s32 %s22, %s29
      %p151 = scmp.eq.s32.totalorder %s150, 0
      %s153 = sadd.s32 %s152, 1
      %s154 = scalar_select %p151, %s152, %s153
      %p157 = pneg %p151
      %p158 = scmp.eq.s32.totalorder %s22, 1
      %p159 = por %p157, %p158
      %p160 = scmp.ne.s32.totalorder %s152, %s155
      %p161 = scmp.eq.s32.totalorder %s22, 0
      %p162 = por %p160, %p161
      %p163 = scmp.ne.s32.totalorder %s152, %s155
      %p164 = scmp.eq.s32.totalorder %s27, 1
      %p165 = por %p163, %p164
      %p166 = scmp.ne.s32.totalorder %s155, %s156
      %p167 = scmp.eq.s32.totalorder %s27, 0
      %p168 = por %p166, %p167
      %p169 = scmp.ne.s32.totalorder %s155, %s156
      %p170 = scmp.eq.s32.totalorder %s28, 1
      %p171 = por %p169, %p170
      %p173 = scmp.ne.s32.totalorder %s156, %s172
      %p174 = scmp.eq.s32.totalorder %s28, 0
      %p175 = por %p173, %p174
      %p176 = scmp.le.s32.totalorder 1, %s22
      %p177 = scmp.lt.s32.totalorder %s22, 3
      %p178 = pnand %p176, %p177
      %p179 = pneg %p178
      // Predicated region
      $region9: #{tpu_custom_call.1} parent=5 // pred_check
        _
      $region10: #{tpu_custom_call.1} parent=5 // pred_check_branch
        %181 = sbr.rel (%p178) target = $region12
      $region11: #{tpu_custom_call.1} parent=5 // pred_region
        %s182 = ssub.s32 %s22, 1
        // Predicated region
        $region13: #{tpu_custom_call.1} parent=11 // pred_check
          %p183 = pneg %p69
        $region14: #{tpu_custom_call.1} parent=11 // pred_check_branch
          %185 = sbr.rel (%p183) target = $region16
        $region15: #{tpu_custom_call.1} parent=11 // pred_region
          %s187 = ssub.s32 110592, 110592
          %188 = vsyncadd [#allocation6], %s187
          %s189 = sshll.u32 [#allocation5], 4
          %s190 = int_to_ptr.vmem [resolvable:$true] %s189
          %195 = dma.hbm_to_vmem [thread:$0]  %s1, 110592, %s190, [#allocation6], 1152, 1152, 72
        $region16: #{tpu_custom_call.1} parent=11 // pred_fallthru
          _
        // Predicated region
        $region17: #{tpu_custom_call.1} parent=11 // pred_check
          %p196 = pneg %p90
        $region18: #{tpu_custom_call.1} parent=11 // pred_check_branch
          %198 = sbr.rel (%p196) target = $region20
        $region19: #{tpu_custom_call.1} parent=11 // pred_region
          %s200 = ssub.s32 288, 288
          %201 = vsyncadd [#allocation6], %s200
          %s203 = sshll.u32 [#allocation7], 4
          %s204 = int_to_ptr.vmem [resolvable:$true] %s203
          %206 = dma.hbm_to_vmem [thread:$0]  %s2, 288, %s204, [#allocation6]
        $region20: #{tpu_custom_call.1} parent=11 // pred_fallthru
          _
      $region12: #{tpu_custom_call.1} parent=5 // pred_fallthru
        _
      %p207 = scmp.lt.s32.totalorder %s22, 2
      // Predicated region
      $region21: #{tpu_custom_call.1} parent=5 // pred_check
        %p208 = pneg %p207
      $region22: #{tpu_custom_call.1} parent=5 // pred_check_branch
        %210 = sbr.rel (%p208) target = $region24
      $region23: #{tpu_custom_call.1} parent=5 // pred_region
        // Predicated region
        $region25: #{tpu_custom_call.1} parent=23 // pred_check
          %p211 = pneg %p42
        $region26: #{tpu_custom_call.1} parent=23 // pred_check_branch
          %213 = sbr.rel (%p211) target = $region28
        $region27: #{tpu_custom_call.1} parent=23 // pred_region
          %s214 = sand.u32 %s32, 1
          %s215 = scalar_lea.sflag [#allocation3], %s214
          %s216 = sand.u32 %s32, 1
          %s217 = smul.addr %s216, 48
          %s218 = scalar_lea.vmem [#allocation2], %s217
          %s220 = ssub.s32 768, 768
          %221 = vsyncadd %s215, %s220
          %s222 = smul.addr %s22, 6
          %s223 = smul.addr %s222, 128
          %s224 = scalar_lea.hbm %s0, %s223
          %s226 = sshll.u32 %s218, 4
          %s227 = int_to_ptr.vmem [resolvable:$true] %s226
          %229 = dma.hbm_to_vmem [thread:$0]  %s224, 768, %s227, %s215
        $region28: #{tpu_custom_call.1} parent=23 // pred_fallthru
          _
      $region24: #{tpu_custom_call.1} parent=5 // pred_fallthru
        _
      %p230 = scmp.le.s32.totalorder 1, %s22
      %p231 = scmp.lt.s32.totalorder %s22, 3
      %p232 = pnand %p230, %p231
      %p233 = pneg %p232
      // Predicated region
      $region29: #{tpu_custom_call.1} parent=5 // pred_check
        _
      $region30: #{tpu_custom_call.1} parent=5 // pred_check_branch
        %235 = sbr.rel (%p232) target = $region32
      $region31: #{tpu_custom_call.1} parent=5 // pred_region
        %s236 = ssub.s32 %s22, 1
        %s237 = sand.u32 %s35, 1
        %s238 = scalar_lea.sflag [#allocation3], %s237
        %s239 = sand.u32 %s35, 1
        %s240 = smul.addr %s239, 48
        %s241 = scalar_lea.vmem [#allocation2], %s240
        // Predicated region
        $region33: #{tpu_custom_call.1} parent=31 // pred_check
          %p242 = pneg %p48
        $region34: #{tpu_custom_call.1} parent=31 // pred_check_branch
          %244 = sbr.rel (%p242) target = $region36
        $region35: #{tpu_custom_call.1} parent=31 // pred_region
          %245 = dma.done %s238, 768
        $region36: #{tpu_custom_call.1} parent=31 // pred_fallthru
          _
        // Predicated region
        $region37: #{tpu_custom_call.1} parent=31 // pred_check
          %p246 = pneg %p69
        $region38: #{tpu_custom_call.1} parent=31 // pred_check_branch
          %248 = sbr.rel (%p246) target = $region40
        $region39: #{tpu_custom_call.1} parent=31 // pred_region
          %249 = dma.done [#allocation6], 110592
        $region40: #{tpu_custom_call.1} parent=31 // pred_fallthru
          _
        // Predicated region
        $region41: #{tpu_custom_call.1} parent=31 // pred_check
          %p250 = pneg %p90
        $region42: #{tpu_custom_call.1} parent=31 // pred_check_branch
          %252 = sbr.rel (%p250) target = $region44
        $region43: #{tpu_custom_call.1} parent=31 // pred_region
          %253 = dma.done [#allocation6], 288
        $region44: #{tpu_custom_call.1} parent=31 // pred_fallthru
          _
        %s254 = sand.u32 %s35, 1
        %s255 = scalar_lea.sflag [#allocation3], %s254
        %s256 = sand.u32 %s35, 1
        %s257 = smul.addr %s256, 48
        %s258 = scalar_lea.vmem [#allocation2], %s257
        %p259 = pneg %p48
        %p260 = pneg %p45
        %p261 = pneg %p69
        %p262 = pneg %p66
        %p263 = pneg %p90
        %p264 = pneg %p87
        %p265 = pneg %p116
        %p266 = pneg %p113
        %s267 = sand.u32 %s103, 1
        %s268 = scalar_lea.sflag [#allocation4], %s267
        %s269 = sand.u32 %s103, 1
        %s270 = smul.addr %s269, 24
        %s271 = scalar_lea.vmem [#allocation8], %s270
        %p272 = pneg %p142
        %p273 = pneg %p139
        %s274 = sand.u32 %s27, 1
        %s275 = scalar_lea.sflag [#allocation10], %s274
        %s276 = sand.u32 %s129, 1
        %s277 = smul.addr %s276, 24
        %s278 = scalar_lea.vmem [#allocation9], %s277
        %p279 = pneg %p168
        %p280 = pneg %p165
        %s281 = sand.u32 %s27, 1
        %s282 = scalar_lea.sflag [#allocation10], %s281
        %s283 = sand.u32 %s155, 1
        %s284 = smul.addr %s283, 24
        %s285 = scalar_lea.vmem [#allocation11], %s284
        %v286 = vld [vmem:[%s241] sm:$0xff]
        %v287 = vld [vmem:[%s241 + $0x8] sm:$0xff]
        %v288 = vld [vmem:[%s241 + $0x10] sm:$0xff]
        %v289 = vld [vmem:[%s241 + $0x18] sm:$0xff]
        %v290 = vld [vmem:[%s241 + $0x20] sm:$0xff]
        %v291 = vld [vmem:[%s241 + $0x28] sm:$0xff]
        %v292 = vpack.c.bf16 %v286, %v286
        %v293 = vpack.c.bf16 %v287, %v287
        %v294 = vpack.c.bf16 %v288, %v288
        %v295 = vpack.c.bf16 %v289, %v289
        %v296 = vpack.c.bf16 %v290, %v290
        %v297 = vpack.c.bf16 %v291, %v291
        %v298 = vld [vmem:[#allocation5] sm:$0xff]
        %v299 = vld [vmem:[#allocation5 + $0x8] sm:$0xff]
        %v300 = vld [vmem:[#allocation5 + $0x10] sm:$0xff]
        %v301 = vld [vmem:[#allocation5 + $0x18] sm:$0xff]
        %v302 = vld [vmem:[#allocation5 + $0x20] sm:$0xff]
        %v303 = vld [vmem:[#allocation5 + $0x28] sm:$0xff]
        %v304 = vld [vmem:[#allocation5 + $0x30] sm:$0xff]
        %v305 = vld [vmem:[#allocation5 + $0x38] sm:$0xff]
        %v306 = vld [vmem:[#allocation5 + $0x40] sm:$0xff]
        %v307 = vld [vmem:[#allocation5 + $0x48] sm:$0xff]
        %v308 = vld [vmem:[#allocation5 + $0x50] sm:$0xff]
        %v309 = vld [vmem:[#allocation5 + $0x58] sm:$0xff]
        %v310 = vld [vmem:[#allocation5 + $0x60] sm:$0xff]
        %v311 = vld [vmem:[#allocation5 + $0x68] sm:$0xff]
        %v312 = vld [vmem:[#allocation5 + $0x70] sm:$0xff]
        %v313 = vld [vmem:[#allocation5 + $0x78] sm:$0xff]
        %v314 = vld [vmem:[#allocation5 + $0x80] sm:$0xff]
        %v315 = vld [vmem:[#allocation5 + $0x88] sm:$0xff]
        %v316 = vld [vmem:[#allocation5 + $0x90] sm:$0xff]
        %v317 = vld [vmem:[#allocation5 + $0x98] sm:$0xff]
        %v318 = vld [vmem:[#allocation5 + $0xa0] sm:$0xff]
        %v319 = vld [vmem:[#allocation5 + $0xa8] sm:$0xff]
        %v320 = vld [vmem:[#allocation5 + $0xb0] sm:$0xff]
        %v321 = vld [vmem:[#allocation5 + $0xb8] sm:$0xff]
        %v322 = vld [vmem:[#allocation5 + $0xc0] sm:$0xff]
        %v323 = vld [vmem:[#allocation5 + $0xc8] sm:$0xff]
        %v324 = vld [vmem:[#allocation5 + $0xd0] sm:$0xff]
        %v325 = vld [vmem:[#allocation5 + $0xd8] sm:$0xff]
        %v326 = vld [vmem:[#allocation5 + $0xe0] sm:$0xff]
        %v327 = vld [vmem:[#allocation5 + $0xe8] sm:$0xff]
        %v328 = vld [vmem:[#allocation5 + $0xf0] sm:$0xff]
        %v329 = vld [vmem:[#allocation5 + $0xf8] sm:$0xff]
        %v330 = vld [vmem:[#allocation5 + $0x100] sm:$0xff]
        %v331 = vld [vmem:[#allocation5 + $0x108] sm:$0xff]
        %v332 = vld [vmem:[#allocation5 + $0x110] sm:$0xff]
        %v333 = vld [vmem:[#allocation5 + $0x118] sm:$0xff]
        %v334 = vld [vmem:[#allocation5 + $0x120] sm:$0xff]
        %v335 = vld [vmem:[#allocation5 + $0x128] sm:$0xff]
        %v336 = vld [vmem:[#allocation5 + $0x130] sm:$0xff]
        %v337 = vld [vmem:[#allocation5 + $0x138] sm:$0xff]
        %v338 = vld [vmem:[#allocation5 + $0x140] sm:$0xff]
        %v339 = vld [vmem:[#allocation5 + $0x148] sm:$0xff]
        %v340 = vld [vmem:[#allocation5 + $0x150] sm:$0xff]
        %v341 = vld [vmem:[#allocation5 + $0x158] sm:$0xff]
        %v342 = vld [vmem:[#allocation5 + $0x160] sm:$0xff]
        %v343 = vld [vmem:[#allocation5 + $0x168] sm:$0xff]
        %v344 = vld [vmem:[#allocation5 + $0x170] sm:$0xff]
        %v345 = vld [vmem:[#allocation5 + $0x178] sm:$0xff]
        %v346 = vld [vmem:[#allocation5 + $0x180] sm:$0xff]
        %v347 = vld [vmem:[#allocation5 + $0x188] sm:$0xff]
        %v348 = vld [vmem:[#allocation5 + $0x190] sm:$0xff]
        %v349 = vld [vmem:[#allocation5 + $0x198] sm:$0xff]
        %v350 = vld [vmem:[#allocation5 + $0x1a0] sm:$0xff]
        %v351 = vld [vmem:[#allocation5 + $0x1a8] sm:$0xff]
        %v352 = vld [vmem:[#allocation5 + $0x1b0] sm:$0xff]
        %v353 = vld [vmem:[#allocation5 + $0x1b8] sm:$0xff]
        %v354 = vld [vmem:[#allocation5 + $0x1c0] sm:$0xff]
        %v355 = vld [vmem:[#allocation5 + $0x1c8] sm:$0xff]
        %v356 = vld [vmem:[#allocation5 + $0x1d0] sm:$0xff]
        %v357 = vld [vmem:[#allocation5 + $0x1d8] sm:$0xff]
        %v358 = vld [vmem:[#allocation5 + $0x1e0] sm:$0xff]
        %v359 = vld [vmem:[#allocation5 + $0x1e8] sm:$0xff]
        %v360 = vld [vmem:[#allocation5 + $0x1f0] sm:$0xff]
        %v361 = vld [vmem:[#allocation5 + $0x1f8] sm:$0xff]
        %v362 = vld [vmem:[#allocation5 + $0x200] sm:$0xff]
        %v363 = vld [vmem:[#allocation5 + $0x208] sm:$0xff]
        %v364 = vld [vmem:[#allocation5 + $0x210] sm:$0xff]
        %v365 = vld [vmem:[#allocation5 + $0x218] sm:$0xff]
        %v366 = vld [vmem:[#allocation5 + $0x220] sm:$0xff]
        %v367 = vld [vmem:[#allocation5 + $0x228] sm:$0xff]
        %v368 = vld [vmem:[#allocation5 + $0x230] sm:$0xff]
        %v369 = vld [vmem:[#allocation5 + $0x238] sm:$0xff]
        %v370 = vld [vmem:[#allocation5 + $0x240] sm:$0xff]
        %v371 = vld [vmem:[#allocation5 + $0x248] sm:$0xff]
        %v372 = vld [vmem:[#allocation5 + $0x250] sm:$0xff]
        %v373 = vld [vmem:[#allocation5 + $0x258] sm:$0xff]
        %v374 = vld [vmem:[#allocation5 + $0x260] sm:$0xff]
        %v375 = vld [vmem:[#allocation5 + $0x268] sm:$0xff]
        %v376 = vld [vmem:[#allocation5 + $0x270] sm:$0xff]
        %v377 = vld [vmem:[#allocation5 + $0x278] sm:$0xff]
        %v378 = vld [vmem:[#allocation5 + $0x280] sm:$0xff]
        %v379 = vld [vmem:[#allocation5 + $0x288] sm:$0xff]
        %v380 = vld [vmem:[#allocation5 + $0x290] sm:$0xff]
        %v381 = vld [vmem:[#allocation5 + $0x298] sm:$0xff]
        %v382 = vld [vmem:[#allocation5 + $0x2a0] sm:$0xff]
        %v383 = vld [vmem:[#allocation5 + $0x2a8] sm:$0xff]
        %v384 = vld [vmem:[#allocation5 + $0x2b0] sm:$0xff]
        %v385 = vld [vmem:[#allocation5 + $0x2b8] sm:$0xff]
        %v386 = vld [vmem:[#allocation5 + $0x2c0] sm:$0xff]
        %v387 = vld [vmem:[#allocation5 + $0x2c8] sm:$0xff]
        %v388 = vld [vmem:[#allocation5 + $0x2d0] sm:$0xff]
        %v389 = vld [vmem:[#allocation5 + $0x2d8] sm:$0xff]
        %v390 = vld [vmem:[#allocation5 + $0x2e0] sm:$0xff]
        %v391 = vld [vmem:[#allocation5 + $0x2e8] sm:$0xff]
        %v392 = vld [vmem:[#allocation5 + $0x2f0] sm:$0xff]
        %v393 = vld [vmem:[#allocation5 + $0x2f8] sm:$0xff]
        %v394 = vld [vmem:[#allocation5 + $0x300] sm:$0xff]
        %v395 = vld [vmem:[#allocation5 + $0x308] sm:$0xff]
        %v396 = vld [vmem:[#allocation5 + $0x310] sm:$0xff]
        %v397 = vld [vmem:[#allocation5 + $0x318] sm:$0xff]
        %v398 = vld [vmem:[#allocation5 + $0x320] sm:$0xff]
        %v399 = vld [vmem:[#allocation5 + $0x328] sm:$0xff]
        %v400 = vld [vmem:[#allocation5 + $0x330] sm:$0xff]
        %v401 = vld [vmem:[#allocation5 + $0x338] sm:$0xff]
        %v402 = vld [vmem:[#allocation5 + $0x340] sm:$0xff]
        %v403 = vld [vmem:[#allocation5 + $0x348] sm:$0xff]
        %v404 = vld [vmem:[#allocation5 + $0x350] sm:$0xff]
        %v405 = vld [vmem:[#allocation5 + $0x358] sm:$0xff]
        %v406 = vld [vmem:[#allocation5 + $0x360] sm:$0xff]
        %v407 = vld [vmem:[#allocation5 + $0x368] sm:$0xff]
        %v408 = vld [vmem:[#allocation5 + $0x370] sm:$0xff]
        %v409 = vld [vmem:[#allocation5 + $0x378] sm:$0xff]
        %v410 = vld [vmem:[#allocation5 + $0x380] sm:$0xff]
        %v411 = vld [vmem:[#allocation5 + $0x388] sm:$0xff]
        %v412 = vld [vmem:[#allocation5 + $0x390] sm:$0xff]
        %v413 = vld [vmem:[#allocation5 + $0x398] sm:$0xff]
        %v414 = vld [vmem:[#allocation5 + $0x3a0] sm:$0xff]
        %v415 = vld [vmem:[#allocation5 + $0x3a8] sm:$0xff]
        %v416 = vld [vmem:[#allocation5 + $0x3b0] sm:$0xff]
        %v417 = vld [vmem:[#allocation5 + $0x3b8] sm:$0xff]
        %v418 = vld [vmem:[#allocation5 + $0x3c0] sm:$0xff]
        %v419 = vld [vmem:[#allocation5 + $0x3c8] sm:$0xff]
        %v420 = vld [vmem:[#allocation5 + $0x3d0] sm:$0xff]
        %v421 = vld [vmem:[#allocation5 + $0x3d8] sm:$0xff]
        %v422 = vld [vmem:[#allocation5 + $0x3e0] sm:$0xff]
        %v423 = vld [vmem:[#allocation5 + $0x3e8] sm:$0xff]
        %v424 = vld [vmem:[#allocation5 + $0x3f0] sm:$0xff]
        %v425 = vld [vmem:[#allocation5 + $0x3f8] sm:$0xff]
        %v426 = vld [vmem:[#allocation5 + $0x400] sm:$0xff]
        %v427 = vld [vmem:[#allocation5 + $0x408] sm:$0xff]
        %v428 = vld [vmem:[#allocation5 + $0x410] sm:$0xff]
        %v429 = vld [vmem:[#allocation5 + $0x418] sm:$0xff]
        %v430 = vld [vmem:[#allocation5 + $0x420] sm:$0xff]
        %v431 = vld [vmem:[#allocation5 + $0x428] sm:$0xff]
        %v432 = vld [vmem:[#allocation5 + $0x430] sm:$0xff]
        %v433 = vld [vmem:[#allocation5 + $0x438] sm:$0xff]
        %v434 = vld [vmem:[#allocation5 + $0x440] sm:$0xff]
        %v435 = vld [vmem:[#allocation5 + $0x448] sm:$0xff]
        %v436 = vld [vmem:[#allocation5 + $0x450] sm:$0xff]
        %v437 = vld [vmem:[#allocation5 + $0x458] sm:$0xff]
        %v438 = vld [vmem:[#allocation5 + $0x460] sm:$0xff]
        %v439 = vld [vmem:[#allocation5 + $0x468] sm:$0xff]
        %v440 = vld [vmem:[#allocation5 + $0x470] sm:$0xff]
        %v441 = vld [vmem:[#allocation5 + $0x478] sm:$0xff]
        %v442 = vld [vmem:[#allocation5 + $0x480] sm:$0xff]
        %v443 = vld [vmem:[#allocation5 + $0x488] sm:$0xff]
        %v444 = vld [vmem:[#allocation5 + $0x490] sm:$0xff]
        %v445 = vld [vmem:[#allocation5 + $0x498] sm:$0xff]
        %v446 = vld [vmem:[#allocation5 + $0x4a0] sm:$0xff]
        %v447 = vld [vmem:[#allocation5 + $0x4a8] sm:$0xff]
        %v448 = vld [vmem:[#allocation5 + $0x4b0] sm:$0xff]
        %v449 = vld [vmem:[#allocation5 + $0x4b8] sm:$0xff]
        %v450 = vld [vmem:[#allocation5 + $0x4c0] sm:$0xff]
        %v451 = vld [vmem:[#allocation5 + $0x4c8] sm:$0xff]
        %v452 = vld [vmem:[#allocation5 + $0x4d0] sm:$0xff]
        %v453 = vld [vmem:[#allocation5 + $0x4d8] sm:$0xff]
        %v454 = vld [vmem:[#allocation5 + $0x4e0] sm:$0xff]
        %v455 = vld [vmem:[#allocation5 + $0x4e8] sm:$0xff]
        %v456 = vld [vmem:[#allocation5 + $0x4f0] sm:$0xff]
        %v457 = vld [vmem:[#allocation5 + $0x4f8] sm:$0xff]
        %v458 = vld [vmem:[#allocation5 + $0x500] sm:$0xff]
        %v459 = vld [vmem:[#allocation5 + $0x508] sm:$0xff]
        %v460 = vld [vmem:[#allocation5 + $0x510] sm:$0xff]
        %v461 = vld [vmem:[#allocation5 + $0x518] sm:$0xff]
        %v462 = vld [vmem:[#allocation5 + $0x520] sm:$0xff]
        %v463 = vld [vmem:[#allocation5 + $0x528] sm:$0xff]
        %v464 = vld [vmem:[#allocation5 + $0x530] sm:$0xff]
        %v465 = vld [vmem:[#allocation5 + $0x538] sm:$0xff]
        %v466 = vld [vmem:[#allocation5 + $0x540] sm:$0xff]
        %v467 = vld [vmem:[#allocation5 + $0x548] sm:$0xff]
        %v468 = vld [vmem:[#allocation5 + $0x550] sm:$0xff]
        %v469 = vld [vmem:[#allocation5 + $0x558] sm:$0xff]
        %v470 = vld [vmem:[#allocation5 + $0x560] sm:$0xff]
        %v471 = vld [vmem:[#allocation5 + $0x568] sm:$0xff]
        %v472 = vld [vmem:[#allocation5 + $0x570] sm:$0xff]
        %v473 = vld [vmem:[#allocation5 + $0x578] sm:$0xff]
        %v474 = vld [vmem:[#allocation5 + $0x580] sm:$0xff]
        %v475 = vld [vmem:[#allocation5 + $0x588] sm:$0xff]
        %v476 = vld [vmem:[#allocation5 + $0x590] sm:$0xff]
        %v477 = vld [vmem:[#allocation5 + $0x598] sm:$0xff]
        %v478 = vld [vmem:[#allocation5 + $0x5a0] sm:$0xff]
        %v479 = vld [vmem:[#allocation5 + $0x5a8] sm:$0xff]
        %v480 = vld [vmem:[#allocation5 + $0x5b0] sm:$0xff]
        %v481 = vld [vmem:[#allocation5 + $0x5b8] sm:$0xff]
        %v482 = vld [vmem:[#allocation5 + $0x5c0] sm:$0xff]
        %v483 = vld [vmem:[#allocation5 + $0x5c8] sm:$0xff]
        %v484 = vld [vmem:[#allocation5 + $0x5d0] sm:$0xff]
        %v485 = vld [vmem:[#allocation5 + $0x5d8] sm:$0xff]
        %v486 = vld [vmem:[#allocation5 + $0x5e0] sm:$0xff]
        %v487 = vld [vmem:[#allocation5 + $0x5e8] sm:$0xff]
        %v488 = vld [vmem:[#allocation5 + $0x5f0] sm:$0xff]
        %v489 = vld [vmem:[#allocation5 + $0x5f8] sm:$0xff]
        %v490 = vld [vmem:[#allocation5 + $0x600] sm:$0xff]
        %v491 = vld [vmem:[#allocation5 + $0x608] sm:$0xff]
        %v492 = vld [vmem:[#allocation5 + $0x610] sm:$0xff]
        %v493 = vld [vmem:[#allocation5 + $0x618] sm:$0xff]
        %v494 = vld [vmem:[#allocation5 + $0x620] sm:$0xff]
        %v495 = vld [vmem:[#allocation5 + $0x628] sm:$0xff]
        %v496 = vld [vmem:[#allocation5 + $0x630] sm:$0xff]
        %v497 = vld [vmem:[#allocation5 + $0x638] sm:$0xff]
        %v498 = vld [vmem:[#allocation5 + $0x640] sm:$0xff]
        %v499 = vld [vmem:[#allocation5 + $0x648] sm:$0xff]
        %v500 = vld [vmem:[#allocation5 + $0x650] sm:$0xff]
        %v501 = vld [vmem:[#allocation5 + $0x658] sm:$0xff]
        %v502 = vld [vmem:[#allocation5 + $0x660] sm:$0xff]
        %v503 = vld [vmem:[#allocation5 + $0x668] sm:$0xff]
        %v504 = vld [vmem:[#allocation5 + $0x670] sm:$0xff]
        %v505 = vld [vmem:[#allocation5 + $0x678] sm:$0xff]
        %v506 = vld [vmem:[#allocation5 + $0x680] sm:$0xff]
        %v507 = vld [vmem:[#allocation5 + $0x688] sm:$0xff]
        %v508 = vld [vmem:[#allocation5 + $0x690] sm:$0xff]
        %v509 = vld [vmem:[#allocation5 + $0x698] sm:$0xff]
        %v510 = vld [vmem:[#allocation5 + $0x6a0] sm:$0xff]
        %v511 = vld [vmem:[#allocation5 + $0x6a8] sm:$0xff]
        %v512 = vld [vmem:[#allocation5 + $0x6b0] sm:$0xff]
        %v513 = vld [vmem:[#allocation5 + $0x6b8] sm:$0xff]
        %v514 = vld [vmem:[#allocation5 + $0x6c0] sm:$0xff]
        %v515 = vld [vmem:[#allocation5 + $0x6c8] sm:$0xff]
        %v516 = vld [vmem:[#allocation5 + $0x6d0] sm:$0xff]
        %v517 = vld [vmem:[#allocation5 + $0x6d8] sm:$0xff]
        %v518 = vld [vmem:[#allocation5 + $0x6e0] sm:$0xff]
        %v519 = vld [vmem:[#allocation5 + $0x6e8] sm:$0xff]
        %v520 = vld [vmem:[#allocation5 + $0x6f0] sm:$0xff]
        %v521 = vld [vmem:[#allocation5 + $0x6f8] sm:$0xff]
        %v522 = vld [vmem:[#allocation5 + $0x700] sm:$0xff]
        %v523 = vld [vmem:[#allocation5 + $0x708] sm:$0xff]
        %v524 = vld [vmem:[#allocation5 + $0x710] sm:$0xff]
        %v525 = vld [vmem:[#allocation5 + $0x718] sm:$0xff]
        %v526 = vld [vmem:[#allocation5 + $0x720] sm:$0xff]
        %v527 = vld [vmem:[#allocation5 + $0x728] sm:$0xff]
        %v528 = vld [vmem:[#allocation5 + $0x730] sm:$0xff]
        %v529 = vld [vmem:[#allocation5 + $0x738] sm:$0xff]
        %v530 = vld [vmem:[#allocation5 + $0x740] sm:$0xff]
        %v531 = vld [vmem:[#allocation5 + $0x748] sm:$0xff]
        %v532 = vld [vmem:[#allocation5 + $0x750] sm:$0xff]
        %v533 = vld [vmem:[#allocation5 + $0x758] sm:$0xff]
        %v534 = vld [vmem:[#allocation5 + $0x760] sm:$0xff]
        %v535 = vld [vmem:[#allocation5 + $0x768] sm:$0xff]
        %v536 = vld [vmem:[#allocation5 + $0x770] sm:$0xff]
        %v537 = vld [vmem:[#allocation5 + $0x778] sm:$0xff]
        %v538 = vld [vmem:[#allocation5 + $0x780] sm:$0xff]
        %v539 = vld [vmem:[#allocation5 + $0x788] sm:$0xff]
        %v540 = vld [vmem:[#allocation5 + $0x790] sm:$0xff]
        %v541 = vld [vmem:[#allocation5 + $0x798] sm:$0xff]
        %v542 = vld [vmem:[#allocation5 + $0x7a0] sm:$0xff]
        %v543 = vld [vmem:[#allocation5 + $0x7a8] sm:$0xff]
        %v544 = vld [vmem:[#allocation5 + $0x7b0] sm:$0xff]
        %v545 = vld [vmem:[#allocation5 + $0x7b8] sm:$0xff]
        %v546 = vld [vmem:[#allocation5 + $0x7c0] sm:$0xff]
        %v547 = vld [vmem:[#allocation5 + $0x7c8] sm:$0xff]
        %v548 = vld [vmem:[#allocation5 + $0x7d0] sm:$0xff]
        %v549 = vld [vmem:[#allocation5 + $0x7d8] sm:$0xff]
        %v550 = vld [vmem:[#allocation5 + $0x7e0] sm:$0xff]
        %v551 = vld [vmem:[#allocation5 + $0x7e8] sm:$0xff]
        %v552 = vld [vmem:[#allocation5 + $0x7f0] sm:$0xff]
        %v553 = vld [vmem:[#allocation5 + $0x7f8] sm:$0xff]
        %v554 = vld [vmem:[#allocation5 + $0x800] sm:$0xff]
        %v555 = vld [vmem:[#allocation5 + $0x808] sm:$0xff]
        %v556 = vld [vmem:[#allocation5 + $0x810] sm:$0xff]
        %v557 = vld [vmem:[#allocation5 + $0x818] sm:$0xff]
        %v558 = vld [vmem:[#allocation5 + $0x820] sm:$0xff]
        %v559 = vld [vmem:[#allocation5 + $0x828] sm:$0xff]
        %v560 = vld [vmem:[#allocation5 + $0x830] sm:$0xff]
        %v561 = vld [vmem:[#allocation5 + $0x838] sm:$0xff]
        %v562 = vld [vmem:[#allocation5 + $0x840] sm:$0xff]
        %v563 = vld [vmem:[#allocation5 + $0x848] sm:$0xff]
        %v564 = vld [vmem:[#allocation5 + $0x850] sm:$0xff]
        %v565 = vld [vmem:[#allocation5 + $0x858] sm:$0xff]
        %v566 = vld [vmem:[#allocation5 + $0x860] sm:$0xff]
        %v567 = vld [vmem:[#allocation5 + $0x868] sm:$0xff]
        %v568 = vld [vmem:[#allocation5 + $0x870] sm:$0xff]
        %v569 = vld [vmem:[#allocation5 + $0x878] sm:$0xff]
        %v570 = vld [vmem:[#allocation5 + $0x880] sm:$0xff]
        %v571 = vld [vmem:[#allocation5 + $0x888] sm:$0xff]
        %v572 = vld [vmem:[#allocation5 + $0x890] sm:$0xff]
        %v573 = vld [vmem:[#allocation5 + $0x898] sm:$0xff]
        %v574 = vld [vmem:[#allocation5 + $0x8a0] sm:$0xff]
        %v575 = vld [vmem:[#allocation5 + $0x8a8] sm:$0xff]
        %v576 = vld [vmem:[#allocation5 + $0x8b0] sm:$0xff]
        %v577 = vld [vmem:[#allocation5 + $0x8b8] sm:$0xff]
        %v578 = vld [vmem:[#allocation5 + $0x8c0] sm:$0xff]
        %v579 = vld [vmem:[#allocation5 + $0x8c8] sm:$0xff]
        %v580 = vld [vmem:[#allocation5 + $0x8d0] sm:$0xff]
        %v581 = vld [vmem:[#allocation5 + $0x8d8] sm:$0xff]
        %v582 = vld [vmem:[#allocation5 + $0x8e0] sm:$0xff]
        %v583 = vld [vmem:[#allocation5 + $0x8e8] sm:$0xff]
        %v584 = vld [vmem:[#allocation5 + $0x8f0] sm:$0xff]
        %v585 = vld [vmem:[#allocation5 + $0x8f8] sm:$0xff]
        %v586 = vld [vmem:[#allocation5 + $0x900] sm:$0xff]
        %v587 = vld [vmem:[#allocation5 + $0x908] sm:$0xff]
        %v588 = vld [vmem:[#allocation5 + $0x910] sm:$0xff]
        %v589 = vld [vmem:[#allocation5 + $0x918] sm:$0xff]
        %v590 = vld [vmem:[#allocation5 + $0x920] sm:$0xff]
        %v591 = vld [vmem:[#allocation5 + $0x928] sm:$0xff]
        %v592 = vld [vmem:[#allocation5 + $0x930] sm:$0xff]
        %v593 = vld [vmem:[#allocation5 + $0x938] sm:$0xff]
        %v594 = vld [vmem:[#allocation5 + $0x940] sm:$0xff]
        %v595 = vld [vmem:[#allocation5 + $0x948] sm:$0xff]
        %v596 = vld [vmem:[#allocation5 + $0x950] sm:$0xff]
        %v597 = vld [vmem:[#allocation5 + $0x958] sm:$0xff]
        %v598 = vld [vmem:[#allocation5 + $0x960] sm:$0xff]
        %v599 = vld [vmem:[#allocation5 + $0x968] sm:$0xff]
        %v600 = vld [vmem:[#allocation5 + $0x970] sm:$0xff]
        %v601 = vld [vmem:[#allocation5 + $0x978] sm:$0xff]
        %v602 = vld [vmem:[#allocation5 + $0x980] sm:$0xff]
        %v603 = vld [vmem:[#allocation5 + $0x988] sm:$0xff]
        %v604 = vld [vmem:[#allocation5 + $0x990] sm:$0xff]
        %v605 = vld [vmem:[#allocation5 + $0x998] sm:$0xff]
        %v606 = vld [vmem:[#allocation5 + $0x9a0] sm:$0xff]
        %v607 = vld [vmem:[#allocation5 + $0x9a8] sm:$0xff]
        %v608 = vld [vmem:[#allocation5 + $0x9b0] sm:$0xff]
        %v609 = vld [vmem:[#allocation5 + $0x9b8] sm:$0xff]
        %v610 = vld [vmem:[#allocation5 + $0x9c0] sm:$0xff]
        %v611 = vld [vmem:[#allocation5 + $0x9c8] sm:$0xff]
        %v612 = vld [vmem:[#allocation5 + $0x9d0] sm:$0xff]
        %v613 = vld [vmem:[#allocation5 + $0x9d8] sm:$0xff]
        %v614 = vld [vmem:[#allocation5 + $0x9e0] sm:$0xff]
        %v615 = vld [vmem:[#allocation5 + $0x9e8] sm:$0xff]
        %v616 = vld [vmem:[#allocation5 + $0x9f0] sm:$0xff]
        %v617 = vld [vmem:[#allocation5 + $0x9f8] sm:$0xff]
        %v618 = vld [vmem:[#allocation5 + $0xa00] sm:$0xff]
        %v619 = vld [vmem:[#allocation5 + $0xa08] sm:$0xff]
        %v620 = vld [vmem:[#allocation5 + $0xa10] sm:$0xff]
        %v621 = vld [vmem:[#allocation5 + $0xa18] sm:$0xff]
        %v622 = vld [vmem:[#allocation5 + $0xa20] sm:$0xff]
        %v623 = vld [vmem:[#allocation5 + $0xa28] sm:$0xff]
        %v624 = vld [vmem:[#allocation5 + $0xa30] sm:$0xff]
        %v625 = vld [vmem:[#allocation5 + $0xa38] sm:$0xff]
        %v626 = vld [vmem:[#allocation5 + $0xa40] sm:$0xff]
        %v627 = vld [vmem:[#allocation5 + $0xa48] sm:$0xff]
        %v628 = vld [vmem:[#allocation5 + $0xa50] sm:$0xff]
        %v629 = vld [vmem:[#allocation5 + $0xa58] sm:$0xff]
        %v630 = vld [vmem:[#allocation5 + $0xa60] sm:$0xff]
        %v631 = vld [vmem:[#allocation5 + $0xa68] sm:$0xff]
        %v632 = vld [vmem:[#allocation5 + $0xa70] sm:$0xff]
        %v633 = vld [vmem:[#allocation5 + $0xa78] sm:$0xff]
        %v634 = vld [vmem:[#allocation5 + $0xa80] sm:$0xff]
        %v635 = vld [vmem:[#allocation5 + $0xa88] sm:$0xff]
        %v636 = vld [vmem:[#allocation5 + $0xa90] sm:$0xff]
        %v637 = vld [vmem:[#allocation5 + $0xa98] sm:$0xff]
        %v638 = vld [vmem:[#allocation5 + $0xaa0] sm:$0xff]
        %v639 = vld [vmem:[#allocation5 + $0xaa8] sm:$0xff]
        %v640 = vld [vmem:[#allocation5 + $0xab0] sm:$0xff]
        %v641 = vld [vmem:[#allocation5 + $0xab8] sm:$0xff]
        %v642 = vld [vmem:[#allocation5 + $0xac0] sm:$0xff]
        %v643 = vld [vmem:[#allocation5 + $0xac8] sm:$0xff]
        %v644 = vld [vmem:[#allocation5 + $0xad0] sm:$0xff]
        %v645 = vld [vmem:[#allocation5 + $0xad8] sm:$0xff]
        %v646 = vld [vmem:[#allocation5 + $0xae0] sm:$0xff]
        %v647 = vld [vmem:[#allocation5 + $0xae8] sm:$0xff]
        %v648 = vld [vmem:[#allocation5 + $0xaf0] sm:$0xff]
        %v649 = vld [vmem:[#allocation5 + $0xaf8] sm:$0xff]
        %v650 = vld [vmem:[#allocation5 + $0xb00] sm:$0xff]
        %v651 = vld [vmem:[#allocation5 + $0xb08] sm:$0xff]
        %v652 = vld [vmem:[#allocation5 + $0xb10] sm:$0xff]
        %v653 = vld [vmem:[#allocation5 + $0xb18] sm:$0xff]
        %v654 = vld [vmem:[#allocation5 + $0xb20] sm:$0xff]
        %v655 = vld [vmem:[#allocation5 + $0xb28] sm:$0xff]
        %v656 = vld [vmem:[#allocation5 + $0xb30] sm:$0xff]
        %v657 = vld [vmem:[#allocation5 + $0xb38] sm:$0xff]
        %v658 = vld [vmem:[#allocation5 + $0xb40] sm:$0xff]
        %v659 = vld [vmem:[#allocation5 + $0xb48] sm:$0xff]
        %v660 = vld [vmem:[#allocation5 + $0xb50] sm:$0xff]
        %v661 = vld [vmem:[#allocation5 + $0xb58] sm:$0xff]
        %v662 = vld [vmem:[#allocation5 + $0xb60] sm:$0xff]
        %v663 = vld [vmem:[#allocation5 + $0xb68] sm:$0xff]
        %v664 = vld [vmem:[#allocation5 + $0xb70] sm:$0xff]
        %v665 = vld [vmem:[#allocation5 + $0xb78] sm:$0xff]
        %v666 = vld [vmem:[#allocation5 + $0xb80] sm:$0xff]
        %v667 = vld [vmem:[#allocation5 + $0xb88] sm:$0xff]
        %v668 = vld [vmem:[#allocation5 + $0xb90] sm:$0xff]
        %v669 = vld [vmem:[#allocation5 + $0xb98] sm:$0xff]
        %v670 = vld [vmem:[#allocation5 + $0xba0] sm:$0xff]
        %v671 = vld [vmem:[#allocation5 + $0xba8] sm:$0xff]
        %v672 = vld [vmem:[#allocation5 + $0xbb0] sm:$0xff]
        %v673 = vld [vmem:[#allocation5 + $0xbb8] sm:$0xff]
        %v674 = vld [vmem:[#allocation5 + $0xbc0] sm:$0xff]
        %v675 = vld [vmem:[#allocation5 + $0xbc8] sm:$0xff]
        %v676 = vld [vmem:[#allocation5 + $0xbd0] sm:$0xff]
        %v677 = vld [vmem:[#allocation5 + $0xbd8] sm:$0xff]
        %v678 = vld [vmem:[#allocation5 + $0xbe0] sm:$0xff]
        %v679 = vld [vmem:[#allocation5 + $0xbe8] sm:$0xff]
        %v680 = vld [vmem:[#allocation5 + $0xbf0] sm:$0xff]
        %v681 = vld [vmem:[#allocation5 + $0xbf8] sm:$0xff]
        %v682 = vld [vmem:[#allocation5 + $0xc00] sm:$0xff]
        %v683 = vld [vmem:[#allocation5 + $0xc08] sm:$0xff]
        %v684 = vld [vmem:[#allocation5 + $0xc10] sm:$0xff]
        %v685 = vld [vmem:[#allocation5 + $0xc18] sm:$0xff]
        %v686 = vld [vmem:[#allocation5 + $0xc20] sm:$0xff]
        %v687 = vld [vmem:[#allocation5 + $0xc28] sm:$0xff]
        %v688 = vld [vmem:[#allocation5 + $0xc30] sm:$0xff]
        %v689 = vld [vmem:[#allocation5 + $0xc38] sm:$0xff]
        %v690 = vld [vmem:[#allocation5 + $0xc40] sm:$0xff]
        %v691 = vld [vmem:[#allocation5 + $0xc48] sm:$0xff]
        %v692 = vld [vmem:[#allocation5 + $0xc50] sm:$0xff]
        %v693 = vld [vmem:[#allocation5 + $0xc58] sm:$0xff]
        %v694 = vld [vmem:[#allocation5 + $0xc60] sm:$0xff]
        %v695 = vld [vmem:[#allocation5 + $0xc68] sm:$0xff]
        %v696 = vld [vmem:[#allocation5 + $0xc70] sm:$0xff]
        %v697 = vld [vmem:[#allocation5 + $0xc78] sm:$0xff]
        %v698 = vld [vmem:[#allocation5 + $0xc80] sm:$0xff]
        %v699 = vld [vmem:[#allocation5 + $0xc88] sm:$0xff]
        %v700 = vld [vmem:[#allocation5 + $0xc90] sm:$0xff]
        %v701 = vld [vmem:[#allocation5 + $0xc98] sm:$0xff]
        %v702 = vld [vmem:[#allocation5 + $0xca0] sm:$0xff]
        %v703 = vld [vmem:[#allocation5 + $0xca8] sm:$0xff]
        %v704 = vld [vmem:[#allocation5 + $0xcb0] sm:$0xff]
        %v705 = vld [vmem:[#allocation5 + $0xcb8] sm:$0xff]
        %v706 = vld [vmem:[#allocation5 + $0xcc0] sm:$0xff]
        %v707 = vld [vmem:[#allocation5 + $0xcc8] sm:$0xff]
        %v708 = vld [vmem:[#allocation5 + $0xcd0] sm:$0xff]
        %v709 = vld [vmem:[#allocation5 + $0xcd8] sm:$0xff]
        %v710 = vld [vmem:[#allocation5 + $0xce0] sm:$0xff]
        %v711 = vld [vmem:[#allocation5 + $0xce8] sm:$0xff]
        %v712 = vld [vmem:[#allocation5 + $0xcf0] sm:$0xff]
        %v713 = vld [vmem:[#allocation5 + $0xcf8] sm:$0xff]
        %v714 = vld [vmem:[#allocation5 + $0xd00] sm:$0xff]
        %v715 = vld [vmem:[#allocation5 + $0xd08] sm:$0xff]
        %v716 = vld [vmem:[#allocation5 + $0xd10] sm:$0xff]
        %v717 = vld [vmem:[#allocation5 + $0xd18] sm:$0xff]
        %v718 = vld [vmem:[#allocation5 + $0xd20] sm:$0xff]
        %v719 = vld [vmem:[#allocation5 + $0xd28] sm:$0xff]
        %v720 = vld [vmem:[#allocation5 + $0xd30] sm:$0xff]
        %v721 = vld [vmem:[#allocation5 + $0xd38] sm:$0xff]
        %v722 = vld [vmem:[#allocation5 + $0xd40] sm:$0xff]
        %v723 = vld [vmem:[#allocation5 + $0xd48] sm:$0xff]
        %v724 = vld [vmem:[#allocation5 + $0xd50] sm:$0xff]
        %v725 = vld [vmem:[#allocation5 + $0xd58] sm:$0xff]
        %v726 = vld [vmem:[#allocation5 + $0xd60] sm:$0xff]
        %v727 = vld [vmem:[#allocation5 + $0xd68] sm:$0xff]
        %v728 = vld [vmem:[#allocation5 + $0xd70] sm:$0xff]
        %v729 = vld [vmem:[#allocation5 + $0xd78] sm:$0xff]
        %v730 = vld [vmem:[#allocation5 + $0xd80] sm:$0xff]
        %v731 = vld [vmem:[#allocation5 + $0xd88] sm:$0xff]
        %v732 = vld [vmem:[#allocation5 + $0xd90] sm:$0xff]
        %v733 = vld [vmem:[#allocation5 + $0xd98] sm:$0xff]
        %v734 = vld [vmem:[#allocation5 + $0xda0] sm:$0xff]
        %v735 = vld [vmem:[#allocation5 + $0xda8] sm:$0xff]
        %v736 = vld [vmem:[#allocation5 + $0xdb0] sm:$0xff]
        %v737 = vld [vmem:[#allocation5 + $0xdb8] sm:$0xff]
        %v738 = vld [vmem:[#allocation5 + $0xdc0] sm:$0xff]
        %v739 = vld [vmem:[#allocation5 + $0xdc8] sm:$0xff]
        %v740 = vld [vmem:[#allocation5 + $0xdd0] sm:$0xff]
        %v741 = vld [vmem:[#allocation5 + $0xdd8] sm:$0xff]
        %v742 = vld [vmem:[#allocation5 + $0xde0] sm:$0xff]
        %v743 = vld [vmem:[#allocation5 + $0xde8] sm:$0xff]
        %v744 = vld [vmem:[#allocation5 + $0xdf0] sm:$0xff]
        %v745 = vld [vmem:[#allocation5 + $0xdf8] sm:$0xff]
        %v746 = vld [vmem:[#allocation5 + $0xe00] sm:$0xff]
        %v747 = vld [vmem:[#allocation5 + $0xe08] sm:$0xff]
        %v748 = vld [vmem:[#allocation5 + $0xe10] sm:$0xff]
        %v749 = vld [vmem:[#allocation5 + $0xe18] sm:$0xff]
        %v750 = vld [vmem:[#allocation5 + $0xe20] sm:$0xff]
        %v751 = vld [vmem:[#allocation5 + $0xe28] sm:$0xff]
        %v752 = vld [vmem:[#allocation5 + $0xe30] sm:$0xff]
        %v753 = vld [vmem:[#allocation5 + $0xe38] sm:$0xff]
        %v754 = vld [vmem:[#allocation5 + $0xe40] sm:$0xff]
        %v755 = vld [vmem:[#allocation5 + $0xe48] sm:$0xff]
        %v756 = vld [vmem:[#allocation5 + $0xe50] sm:$0xff]
        %v757 = vld [vmem:[#allocation5 + $0xe58] sm:$0xff]
        %v758 = vld [vmem:[#allocation5 + $0xe60] sm:$0xff]
        %v759 = vld [vmem:[#allocation5 + $0xe68] sm:$0xff]
        %v760 = vld [vmem:[#allocation5 + $0xe70] sm:$0xff]
        %v761 = vld [vmem:[#allocation5 + $0xe78] sm:$0xff]
        %v762 = vld [vmem:[#allocation5 + $0xe80] sm:$0xff]
        %v763 = vld [vmem:[#allocation5 + $0xe88] sm:$0xff]
        %v764 = vld [vmem:[#allocation5 + $0xe90] sm:$0xff]
        %v765 = vld [vmem:[#allocation5 + $0xe98] sm:$0xff]
        %v766 = vld [vmem:[#allocation5 + $0xea0] sm:$0xff]
        %v767 = vld [vmem:[#allocation5 + $0xea8] sm:$0xff]
        %v768 = vld [vmem:[#allocation5 + $0xeb0] sm:$0xff]
        %v769 = vld [vmem:[#allocation5 + $0xeb8] sm:$0xff]
        %v770 = vld [vmem:[#allocation5 + $0xec0] sm:$0xff]
        %v771 = vld [vmem:[#allocation5 + $0xec8] sm:$0xff]
        %v772 = vld [vmem:[#allocation5 + $0xed0] sm:$0xff]
        %v773 = vld [vmem:[#allocation5 + $0xed8] sm:$0xff]
        %v774 = vld [vmem:[#allocation5 + $0xee0] sm:$0xff]
        %v775 = vld [vmem:[#allocation5 + $0xee8] sm:$0xff]
        %v776 = vld [vmem:[#allocation5 + $0xef0] sm:$0xff]
        %v777 = vld [vmem:[#allocation5 + $0xef8] sm:$0xff]
        %v778 = vld [vmem:[#allocation5 + $0xf00] sm:$0xff]
        %v779 = vld [vmem:[#allocation5 + $0xf08] sm:$0xff]
        %v780 = vld [vmem:[#allocation5 + $0xf10] sm:$0xff]
        %v781 = vld [vmem:[#allocation5 + $0xf18] sm:$0xff]
        %v782 = vld [vmem:[#allocation5 + $0xf20] sm:$0xff]
        %v783 = vld [vmem:[#allocation5 + $0xf28] sm:$0xff]
        %v784 = vld [vmem:[#allocation5 + $0xf30] sm:$0xff]
        %v785 = vld [vmem:[#allocation5 + $0xf38] sm:$0xff]
        %v786 = vld [vmem:[#allocation5 + $0xf40] sm:$0xff]
        %v787 = vld [vmem:[#allocation5 + $0xf48] sm:$0xff]
        %v788 = vld [vmem:[#allocation5 + $0xf50] sm:$0xff]
        %v789 = vld [vmem:[#allocation5 + $0xf58] sm:$0xff]
        %v790 = vld [vmem:[#allocation5 + $0xf60] sm:$0xff]
        %v791 = vld [vmem:[#allocation5 + $0xf68] sm:$0xff]
        %v792 = vld [vmem:[#allocation5 + $0xf70] sm:$0xff]
        %v793 = vld [vmem:[#allocation5 + $0xf78] sm:$0xff]
        %v794 = vld [vmem:[#allocation5 + $0xf80] sm:$0xff]
        %v795 = vld [vmem:[#allocation5 + $0xf88] sm:$0xff]
        %v796 = vld [vmem:[#allocation5 + $0xf90] sm:$0xff]
        %v797 = vld [vmem:[#allocation5 + $0xf98] sm:$0xff]
        %v798 = vld [vmem:[#allocation5 + $0xfa0] sm:$0xff]
        %v799 = vld [vmem:[#allocation5 + $0xfa8] sm:$0xff]
        %v800 = vld [vmem:[#allocation5 + $0xfb0] sm:$0xff]
        %v801 = vld [vmem:[#allocation5 + $0xfb8] sm:$0xff]
        %v802 = vld [vmem:[#allocation5 + $0xfc0] sm:$0xff]
        %v803 = vld [vmem:[#allocation5 + $0xfc8] sm:$0xff]
        %v804 = vld [vmem:[#allocation5 + $0xfd0] sm:$0xff]
        %v805 = vld [vmem:[#allocation5 + $0xfd8] sm:$0xff]
        %v806 = vld [vmem:[#allocation5 + $0xfe0] sm:$0xff]
        %v807 = vld [vmem:[#allocation5 + $0xfe8] sm:$0xff]
        %v808 = vld [vmem:[#allocation5 + $0xff0] sm:$0xff]
        %v809 = vld [vmem:[#allocation5 + $0xff8] sm:$0xff]
        %v810 = vld [vmem:[#allocation5 + $0x1000] sm:$0xff]
        %v811 = vld [vmem:[#allocation5 + $0x1008] sm:$0xff]
        %v812 = vld [vmem:[#allocation5 + $0x1010] sm:$0xff]
        %v813 = vld [vmem:[#allocation5 + $0x1018] sm:$0xff]
        %v814 = vld [vmem:[#allocation5 + $0x1020] sm:$0xff]
        %v815 = vld [vmem:[#allocation5 + $0x1028] sm:$0xff]
        %v816 = vld [vmem:[#allocation5 + $0x1030] sm:$0xff]
        %v817 = vld [vmem:[#allocation5 + $0x1038] sm:$0xff]
        %v818 = vld [vmem:[#allocation5 + $0x1040] sm:$0xff]
        %v819 = vld [vmem:[#allocation5 + $0x1048] sm:$0xff]
        %v820 = vld [vmem:[#allocation5 + $0x1050] sm:$0xff]
        %v821 = vld [vmem:[#allocation5 + $0x1058] sm:$0xff]
        %v822 = vld [vmem:[#allocation5 + $0x1060] sm:$0xff]
        %v823 = vld [vmem:[#allocation5 + $0x1068] sm:$0xff]
        %v824 = vld [vmem:[#allocation5 + $0x1070] sm:$0xff]
        %v825 = vld [vmem:[#allocation5 + $0x1078] sm:$0xff]
        %v826 = vld [vmem:[#allocation5 + $0x1080] sm:$0xff]
        %v827 = vld [vmem:[#allocation5 + $0x1088] sm:$0xff]
        %v828 = vld [vmem:[#allocation5 + $0x1090] sm:$0xff]
        %v829 = vld [vmem:[#allocation5 + $0x1098] sm:$0xff]
        %v830 = vld [vmem:[#allocation5 + $0x10a0] sm:$0xff]
        %v831 = vld [vmem:[#allocation5 + $0x10a8] sm:$0xff]
        %v832 = vld [vmem:[#allocation5 + $0x10b0] sm:$0xff]
        %v833 = vld [vmem:[#allocation5 + $0x10b8] sm:$0xff]
        %v834 = vld [vmem:[#allocation5 + $0x10c0] sm:$0xff]
        %v835 = vld [vmem:[#allocation5 + $0x10c8] sm:$0xff]
        %v836 = vld [vmem:[#allocation5 + $0x10d0] sm:$0xff]
        %v837 = vld [vmem:[#allocation5 + $0x10d8] sm:$0xff]
        %v838 = vld [vmem:[#allocation5 + $0x10e0] sm:$0xff]
        %v839 = vld [vmem:[#allocation5 + $0x10e8] sm:$0xff]
        %v840 = vld [vmem:[#allocation5 + $0x10f0] sm:$0xff]
        %v841 = vld [vmem:[#allocation5 + $0x10f8] sm:$0xff]
        %v842 = vld [vmem:[#allocation5 + $0x1100] sm:$0xff]
        %v843 = vld [vmem:[#allocation5 + $0x1108] sm:$0xff]
        %v844 = vld [vmem:[#allocation5 + $0x1110] sm:$0xff]
        %v845 = vld [vmem:[#allocation5 + $0x1118] sm:$0xff]
        %v846 = vld [vmem:[#allocation5 + $0x1120] sm:$0xff]
        %v847 = vld [vmem:[#allocation5 + $0x1128] sm:$0xff]
        %v848 = vld [vmem:[#allocation5 + $0x1130] sm:$0xff]
        %v849 = vld [vmem:[#allocation5 + $0x1138] sm:$0xff]
        %v850 = vld [vmem:[#allocation5 + $0x1140] sm:$0xff]
        %v851 = vld [vmem:[#allocation5 + $0x1148] sm:$0xff]
        %v852 = vld [vmem:[#allocation5 + $0x1150] sm:$0xff]
        %v853 = vld [vmem:[#allocation5 + $0x1158] sm:$0xff]
        %v854 = vld [vmem:[#allocation5 + $0x1160] sm:$0xff]
        %v855 = vld [vmem:[#allocation5 + $0x1168] sm:$0xff]
        %v856 = vld [vmem:[#allocation5 + $0x1170] sm:$0xff]
        %v857 = vld [vmem:[#allocation5 + $0x1178] sm:$0xff]
        %v858 = vld [vmem:[#allocation5 + $0x1180] sm:$0xff]
        %v859 = vld [vmem:[#allocation5 + $0x1188] sm:$0xff]
        %v860 = vld [vmem:[#allocation5 + $0x1190] sm:$0xff]
        %v861 = vld [vmem:[#allocation5 + $0x1198] sm:$0xff]
        %v862 = vld [vmem:[#allocation5 + $0x11a0] sm:$0xff]
        %v863 = vld [vmem:[#allocation5 + $0x11a8] sm:$0xff]
        %v864 = vld [vmem:[#allocation5 + $0x11b0] sm:$0xff]
        %v865 = vld [vmem:[#allocation5 + $0x11b8] sm:$0xff]
        %v866 = vld [vmem:[#allocation5 + $0x11c0] sm:$0xff]
        %v867 = vld [vmem:[#allocation5 + $0x11c8] sm:$0xff]
        %v868 = vld [vmem:[#allocation5 + $0x11d0] sm:$0xff]
        %v869 = vld [vmem:[#allocation5 + $0x11d8] sm:$0xff]
        %v870 = vld [vmem:[#allocation5 + $0x11e0] sm:$0xff]
        %v871 = vld [vmem:[#allocation5 + $0x11e8] sm:$0xff]
        %v872 = vld [vmem:[#allocation5 + $0x11f0] sm:$0xff]
        %v873 = vld [vmem:[#allocation5 + $0x11f8] sm:$0xff]
        %v874 = vld [vmem:[#allocation5 + $0x1200] sm:$0xff]
        %v875 = vld [vmem:[#allocation5 + $0x1208] sm:$0xff]
        %v876 = vld [vmem:[#allocation5 + $0x1210] sm:$0xff]
        %v877 = vld [vmem:[#allocation5 + $0x1218] sm:$0xff]
        %v878 = vld [vmem:[#allocation5 + $0x1220] sm:$0xff]
        %v879 = vld [vmem:[#allocation5 + $0x1228] sm:$0xff]
        %v880 = vld [vmem:[#allocation5 + $0x1230] sm:$0xff]
        %v881 = vld [vmem:[#allocation5 + $0x1238] sm:$0xff]
        %v882 = vld [vmem:[#allocation5 + $0x1240] sm:$0xff]
        %v883 = vld [vmem:[#allocation5 + $0x1248] sm:$0xff]
        %v884 = vld [vmem:[#allocation5 + $0x1250] sm:$0xff]
        %v885 = vld [vmem:[#allocation5 + $0x1258] sm:$0xff]
        %v886 = vld [vmem:[#allocation5 + $0x1260] sm:$0xff]
        %v887 = vld [vmem:[#allocation5 + $0x1268] sm:$0xff]
        %v888 = vld [vmem:[#allocation5 + $0x1270] sm:$0xff]
        %v889 = vld [vmem:[#allocation5 + $0x1278] sm:$0xff]
        %v890 = vld [vmem:[#allocation5 + $0x1280] sm:$0xff]
        %v891 = vld [vmem:[#allocation5 + $0x1288] sm:$0xff]
        %v892 = vld [vmem:[#allocation5 + $0x1290] sm:$0xff]
        %v893 = vld [vmem:[#allocation5 + $0x1298] sm:$0xff]
        %v894 = vld [vmem:[#allocation5 + $0x12a0] sm:$0xff]
        %v895 = vld [vmem:[#allocation5 + $0x12a8] sm:$0xff]
        %v896 = vld [vmem:[#allocation5 + $0x12b0] sm:$0xff]
        %v897 = vld [vmem:[#allocation5 + $0x12b8] sm:$0xff]
        %v898 = vld [vmem:[#allocation5 + $0x12c0] sm:$0xff]
        %v899 = vld [vmem:[#allocation5 + $0x12c8] sm:$0xff]
        %v900 = vld [vmem:[#allocation5 + $0x12d0] sm:$0xff]
        %v901 = vld [vmem:[#allocation5 + $0x12d8] sm:$0xff]
        %v902 = vld [vmem:[#allocation5 + $0x12e0] sm:$0xff]
        %v903 = vld [vmem:[#allocation5 + $0x12e8] sm:$0xff]
        %v904 = vld [vmem:[#allocation5 + $0x12f0] sm:$0xff]
        %v905 = vld [vmem:[#allocation5 + $0x12f8] sm:$0xff]
        %v906 = vld [vmem:[#allocation5 + $0x1300] sm:$0xff]
        %v907 = vld [vmem:[#allocation5 + $0x1308] sm:$0xff]
        %v908 = vld [vmem:[#allocation5 + $0x1310] sm:$0xff]
        %v909 = vld [vmem:[#allocation5 + $0x1318] sm:$0xff]
        %v910 = vld [vmem:[#allocation5 + $0x1320] sm:$0xff]
        %v911 = vld [vmem:[#allocation5 + $0x1328] sm:$0xff]
        %v912 = vld [vmem:[#allocation5 + $0x1330] sm:$0xff]
        %v913 = vld [vmem:[#allocation5 + $0x1338] sm:$0xff]
        %v914 = vld [vmem:[#allocation5 + $0x1340] sm:$0xff]
        %v915 = vld [vmem:[#allocation5 + $0x1348] sm:$0xff]
        %v916 = vld [vmem:[#allocation5 + $0x1350] sm:$0xff]
        %v917 = vld [vmem:[#allocation5 + $0x1358] sm:$0xff]
        %v918 = vld [vmem:[#allocation5 + $0x1360] sm:$0xff]
        %v919 = vld [vmem:[#allocation5 + $0x1368] sm:$0xff]
        %v920 = vld [vmem:[#allocation5 + $0x1370] sm:$0xff]
        %v921 = vld [vmem:[#allocation5 + $0x1378] sm:$0xff]
        %v922 = vld [vmem:[#allocation5 + $0x1380] sm:$0xff]
        %v923 = vld [vmem:[#allocation5 + $0x1388] sm:$0xff]
        %v924 = vld [vmem:[#allocation5 + $0x1390] sm:$0xff]
        %v925 = vld [vmem:[#allocation5 + $0x1398] sm:$0xff]
        %v926 = vld [vmem:[#allocation5 + $0x13a0] sm:$0xff]
        %v927 = vld [vmem:[#allocation5 + $0x13a8] sm:$0xff]
        %v928 = vld [vmem:[#allocation5 + $0x13b0] sm:$0xff]
        %v929 = vld [vmem:[#allocation5 + $0x13b8] sm:$0xff]
        %v930 = vld [vmem:[#allocation5 + $0x13c0] sm:$0xff]
        %v931 = vld [vmem:[#allocation5 + $0x13c8] sm:$0xff]
        %v932 = vld [vmem:[#allocation5 + $0x13d0] sm:$0xff]
        %v933 = vld [vmem:[#allocation5 + $0x13d8] sm:$0xff]
        %v934 = vld [vmem:[#allocation5 + $0x13e0] sm:$0xff]
        %v935 = vld [vmem:[#allocation5 + $0x13e8] sm:$0xff]
        %v936 = vld [vmem:[#allocation5 + $0x13f0] sm:$0xff]
        %v937 = vld [vmem:[#allocation5 + $0x13f8] sm:$0xff]
        %v938 = vld [vmem:[#allocation5 + $0x1400] sm:$0xff]
        %v939 = vld [vmem:[#allocation5 + $0x1408] sm:$0xff]
        %v940 = vld [vmem:[#allocation5 + $0x1410] sm:$0xff]
        %v941 = vld [vmem:[#allocation5 + $0x1418] sm:$0xff]
        %v942 = vld [vmem:[#allocation5 + $0x1420] sm:$0xff]
        %v943 = vld [vmem:[#allocation5 + $0x1428] sm:$0xff]
        %v944 = vld [vmem:[#allocation5 + $0x1430] sm:$0xff]
        %v945 = vld [vmem:[#allocation5 + $0x1438] sm:$0xff]
        %v946 = vld [vmem:[#allocation5 + $0x1440] sm:$0xff]
        %v947 = vld [vmem:[#allocation5 + $0x1448] sm:$0xff]
        %v948 = vld [vmem:[#allocation5 + $0x1450] sm:$0xff]
        %v949 = vld [vmem:[#allocation5 + $0x1458] sm:$0xff]
        %v950 = vld [vmem:[#allocation5 + $0x1460] sm:$0xff]
        %v951 = vld [vmem:[#allocation5 + $0x1468] sm:$0xff]
        %v952 = vld [vmem:[#allocation5 + $0x1470] sm:$0xff]
        %v953 = vld [vmem:[#allocation5 + $0x1478] sm:$0xff]
        %v954 = vld [vmem:[#allocation5 + $0x1480] sm:$0xff]
        %v955 = vld [vmem:[#allocation5 + $0x1488] sm:$0xff]
        %v956 = vld [vmem:[#allocation5 + $0x1490] sm:$0xff]
        %v957 = vld [vmem:[#allocation5 + $0x1498] sm:$0xff]
        %v958 = vld [vmem:[#allocation5 + $0x14a0] sm:$0xff]
        %v959 = vld [vmem:[#allocation5 + $0x14a8] sm:$0xff]
        %v960 = vld [vmem:[#allocation5 + $0x14b0] sm:$0xff]
        %v961 = vld [vmem:[#allocation5 + $0x14b8] sm:$0xff]
        %v962 = vld [vmem:[#allocation5 + $0x14c0] sm:$0xff]
        %v963 = vld [vmem:[#allocation5 + $0x14c8] sm:$0xff]
        %v964 = vld [vmem:[#allocation5 + $0x14d0] sm:$0xff]
        %v965 = vld [vmem:[#allocation5 + $0x14d8] sm:$0xff]
        %v966 = vld [vmem:[#allocation5 + $0x14e0] sm:$0xff]
        %v967 = vld [vmem:[#allocation5 + $0x14e8] sm:$0xff]
        %v968 = vld [vmem:[#allocation5 + $0x14f0] sm:$0xff]
        %v969 = vld [vmem:[#allocation5 + $0x14f8] sm:$0xff]
        %v970 = vld [vmem:[#allocation5 + $0x1500] sm:$0xff]
        %v971 = vld [vmem:[#allocation5 + $0x1508] sm:$0xff]
        %v972 = vld [vmem:[#allocation5 + $0x1510] sm:$0xff]
        %v973 = vld [vmem:[#allocation5 + $0x1518] sm:$0xff]
        %v974 = vld [vmem:[#allocation5 + $0x1520] sm:$0xff]
        %v975 = vld [vmem:[#allocation5 + $0x1528] sm:$0xff]
        %v976 = vld [vmem:[#allocation5 + $0x1530] sm:$0xff]
        %v977 = vld [vmem:[#allocation5 + $0x1538] sm:$0xff]
        %v978 = vld [vmem:[#allocation5 + $0x1540] sm:$0xff]
        %v979 = vld [vmem:[#allocation5 + $0x1548] sm:$0xff]
        %v980 = vld [vmem:[#allocation5 + $0x1550] sm:$0xff]
        %v981 = vld [vmem:[#allocation5 + $0x1558] sm:$0xff]
        %v982 = vld [vmem:[#allocation5 + $0x1560] sm:$0xff]
        %v983 = vld [vmem:[#allocation5 + $0x1568] sm:$0xff]
        %v984 = vld [vmem:[#allocation5 + $0x1570] sm:$0xff]
        %v985 = vld [vmem:[#allocation5 + $0x1578] sm:$0xff]
        %v986 = vld [vmem:[#allocation5 + $0x1580] sm:$0xff]
        %v987 = vld [vmem:[#allocation5 + $0x1588] sm:$0xff]
        %v988 = vld [vmem:[#allocation5 + $0x1590] sm:$0xff]
        %v989 = vld [vmem:[#allocation5 + $0x1598] sm:$0xff]
        %v990 = vld [vmem:[#allocation5 + $0x15a0] sm:$0xff]
        %v991 = vld [vmem:[#allocation5 + $0x15a8] sm:$0xff]
        %v992 = vld [vmem:[#allocation5 + $0x15b0] sm:$0xff]
        %v993 = vld [vmem:[#allocation5 + $0x15b8] sm:$0xff]
        %v994 = vld [vmem:[#allocation5 + $0x15c0] sm:$0xff]
        %v995 = vld [vmem:[#allocation5 + $0x15c8] sm:$0xff]
        %v996 = vld [vmem:[#allocation5 + $0x15d0] sm:$0xff]
        %v997 = vld [vmem:[#allocation5 + $0x15d8] sm:$0xff]
        %v998 = vld [vmem:[#allocation5 + $0x15e0] sm:$0xff]
        %v999 = vld [vmem:[#allocation5 + $0x15e8] sm:$0xff]
        %v1000 = vld [vmem:[#allocation5 + $0x15f0] sm:$0xff]
        %v1001 = vld [vmem:[#allocation5 + $0x15f8] sm:$0xff]
        %v1002 = vld [vmem:[#allocation5 + $0x1600] sm:$0xff]
        %v1003 = vld [vmem:[#allocation5 + $0x1608] sm:$0xff]
        %v1004 = vld [vmem:[#allocation5 + $0x1610] sm:$0xff]
        %v1005 = vld [vmem:[#allocation5 + $0x1618] sm:$0xff]
        %v1006 = vld [vmem:[#allocation5 + $0x1620] sm:$0xff]
        %v1007 = vld [vmem:[#allocation5 + $0x1628] sm:$0xff]
        %v1008 = vld [vmem:[#allocation5 + $0x1630] sm:$0xff]
        %v1009 = vld [vmem:[#allocation5 + $0x1638] sm:$0xff]
        %v1010 = vld [vmem:[#allocation5 + $0x1640] sm:$0xff]
        %v1011 = vld [vmem:[#allocation5 + $0x1648] sm:$0xff]
        %v1012 = vld [vmem:[#allocation5 + $0x1650] sm:$0xff]
        %v1013 = vld [vmem:[#allocation5 + $0x1658] sm:$0xff]
        %v1014 = vld [vmem:[#allocation5 + $0x1660] sm:$0xff]
        %v1015 = vld [vmem:[#allocation5 + $0x1668] sm:$0xff]
        %v1016 = vld [vmem:[#allocation5 + $0x1670] sm:$0xff]
        %v1017 = vld [vmem:[#allocation5 + $0x1678] sm:$0xff]
        %v1018 = vld [vmem:[#allocation5 + $0x1680] sm:$0xff]
        %v1019 = vld [vmem:[#allocation5 + $0x1688] sm:$0xff]
        %v1020 = vld [vmem:[#allocation5 + $0x1690] sm:$0xff]
        %v1021 = vld [vmem:[#allocation5 + $0x1698] sm:$0xff]
        %v1022 = vld [vmem:[#allocation5 + $0x16a0] sm:$0xff]
        %v1023 = vld [vmem:[#allocation5 + $0x16a8] sm:$0xff]
        %v1024 = vld [vmem:[#allocation5 + $0x16b0] sm:$0xff]
        %v1025 = vld [vmem:[#allocation5 + $0x16b8] sm:$0xff]
        %v1026 = vld [vmem:[#allocation5 + $0x16c0] sm:$0xff]
        %v1027 = vld [vmem:[#allocation5 + $0x16c8] sm:$0xff]
        %v1028 = vld [vmem:[#allocation5 + $0x16d0] sm:$0xff]
        %v1029 = vld [vmem:[#allocation5 + $0x16d8] sm:$0xff]
        %v1030 = vld [vmem:[#allocation5 + $0x16e0] sm:$0xff]
        %v1031 = vld [vmem:[#allocation5 + $0x16e8] sm:$0xff]
        %v1032 = vld [vmem:[#allocation5 + $0x16f0] sm:$0xff]
        %v1033 = vld [vmem:[#allocation5 + $0x16f8] sm:$0xff]
        %v1034 = vld [vmem:[#allocation5 + $0x1700] sm:$0xff]
        %v1035 = vld [vmem:[#allocation5 + $0x1708] sm:$0xff]
        %v1036 = vld [vmem:[#allocation5 + $0x1710] sm:$0xff]
        %v1037 = vld [vmem:[#allocation5 + $0x1718] sm:$0xff]
        %v1038 = vld [vmem:[#allocation5 + $0x1720] sm:$0xff]
        %v1039 = vld [vmem:[#allocation5 + $0x1728] sm:$0xff]
        %v1040 = vld [vmem:[#allocation5 + $0x1730] sm:$0xff]
        %v1041 = vld [vmem:[#allocation5 + $0x1738] sm:$0xff]
        %v1042 = vld [vmem:[#allocation5 + $0x1740] sm:$0xff]
        %v1043 = vld [vmem:[#allocation5 + $0x1748] sm:$0xff]
        %v1044 = vld [vmem:[#allocation5 + $0x1750] sm:$0xff]
        %v1045 = vld [vmem:[#allocation5 + $0x1758] sm:$0xff]
        %v1046 = vld [vmem:[#allocation5 + $0x1760] sm:$0xff]
        %v1047 = vld [vmem:[#allocation5 + $0x1768] sm:$0xff]
        %v1048 = vld [vmem:[#allocation5 + $0x1770] sm:$0xff]
        %v1049 = vld [vmem:[#allocation5 + $0x1778] sm:$0xff]
        %v1050 = vld [vmem:[#allocation5 + $0x1780] sm:$0xff]
        %v1051 = vld [vmem:[#allocation5 + $0x1788] sm:$0xff]
        %v1052 = vld [vmem:[#allocation5 + $0x1790] sm:$0xff]
        %v1053 = vld [vmem:[#allocation5 + $0x1798] sm:$0xff]
        %v1054 = vld [vmem:[#allocation5 + $0x17a0] sm:$0xff]
        %v1055 = vld [vmem:[#allocation5 + $0x17a8] sm:$0xff]
        %v1056 = vld [vmem:[#allocation5 + $0x17b0] sm:$0xff]
        %v1057 = vld [vmem:[#allocation5 + $0x17b8] sm:$0xff]
        %v1058 = vld [vmem:[#allocation5 + $0x17c0] sm:$0xff]
        %v1059 = vld [vmem:[#allocation5 + $0x17c8] sm:$0xff]
        %v1060 = vld [vmem:[#allocation5 + $0x17d0] sm:$0xff]
        %v1061 = vld [vmem:[#allocation5 + $0x17d8] sm:$0xff]
        %v1062 = vld [vmem:[#allocation5 + $0x17e0] sm:$0xff]
        %v1063 = vld [vmem:[#allocation5 + $0x17e8] sm:$0xff]
        %v1064 = vld [vmem:[#allocation5 + $0x17f0] sm:$0xff]
        %v1065 = vld [vmem:[#allocation5 + $0x17f8] sm:$0xff]
        %v1066 = vld [vmem:[#allocation5 + $0x1800] sm:$0xff]
        %v1067 = vld [vmem:[#allocation5 + $0x1808] sm:$0xff]
        %v1068 = vld [vmem:[#allocation5 + $0x1810] sm:$0xff]
        %v1069 = vld [vmem:[#allocation5 + $0x1818] sm:$0xff]
        %v1070 = vld [vmem:[#allocation5 + $0x1820] sm:$0xff]
        %v1071 = vld [vmem:[#allocation5 + $0x1828] sm:$0xff]
        %v1072 = vld [vmem:[#allocation5 + $0x1830] sm:$0xff]
        %v1073 = vld [vmem:[#allocation5 + $0x1838] sm:$0xff]
        %v1074 = vld [vmem:[#allocation5 + $0x1840] sm:$0xff]
        %v1075 = vld [vmem:[#allocation5 + $0x1848] sm:$0xff]
        %v1076 = vld [vmem:[#allocation5 + $0x1850] sm:$0xff]
        %v1077 = vld [vmem:[#allocation5 + $0x1858] sm:$0xff]
        %v1078 = vld [vmem:[#allocation5 + $0x1860] sm:$0xff]
        %v1079 = vld [vmem:[#allocation5 + $0x1868] sm:$0xff]
        %v1080 = vld [vmem:[#allocation5 + $0x1870] sm:$0xff]
        %v1081 = vld [vmem:[#allocation5 + $0x1878] sm:$0xff]
        %v1082 = vld [vmem:[#allocation5 + $0x1880] sm:$0xff]
        %v1083 = vld [vmem:[#allocation5 + $0x1888] sm:$0xff]
        %v1084 = vld [vmem:[#allocation5 + $0x1890] sm:$0xff]
        %v1085 = vld [vmem:[#allocation5 + $0x1898] sm:$0xff]
        %v1086 = vld [vmem:[#allocation5 + $0x18a0] sm:$0xff]
        %v1087 = vld [vmem:[#allocation5 + $0x18a8] sm:$0xff]
        %v1088 = vld [vmem:[#allocation5 + $0x18b0] sm:$0xff]
        %v1089 = vld [vmem:[#allocation5 + $0x18b8] sm:$0xff]
        %v1090 = vld [vmem:[#allocation5 + $0x18c0] sm:$0xff]
        %v1091 = vld [vmem:[#allocation5 + $0x18c8] sm:$0xff]
        %v1092 = vld [vmem:[#allocation5 + $0x18d0] sm:$0xff]
        %v1093 = vld [vmem:[#allocation5 + $0x18d8] sm:$0xff]
        %v1094 = vld [vmem:[#allocation5 + $0x18e0] sm:$0xff]
        %v1095 = vld [vmem:[#allocation5 + $0x18e8] sm:$0xff]
        %v1096 = vld [vmem:[#allocation5 + $0x18f0] sm:$0xff]
        %v1097 = vld [vmem:[#allocation5 + $0x18f8] sm:$0xff]
        %v1098 = vld [vmem:[#allocation5 + $0x1900] sm:$0xff]
        %v1099 = vld [vmem:[#allocation5 + $0x1908] sm:$0xff]
        %v1100 = vld [vmem:[#allocation5 + $0x1910] sm:$0xff]
        %v1101 = vld [vmem:[#allocation5 + $0x1918] sm:$0xff]
        %v1102 = vld [vmem:[#allocation5 + $0x1920] sm:$0xff]
        %v1103 = vld [vmem:[#allocation5 + $0x1928] sm:$0xff]
        %v1104 = vld [vmem:[#allocation5 + $0x1930] sm:$0xff]
        %v1105 = vld [vmem:[#allocation5 + $0x1938] sm:$0xff]
        %v1106 = vld [vmem:[#allocation5 + $0x1940] sm:$0xff]
        %v1107 = vld [vmem:[#allocation5 + $0x1948] sm:$0xff]
        %v1108 = vld [vmem:[#allocation5 + $0x1950] sm:$0xff]
        %v1109 = vld [vmem:[#allocation5 + $0x1958] sm:$0xff]
        %v1110 = vld [vmem:[#allocation5 + $0x1960] sm:$0xff]
        %v1111 = vld [vmem:[#allocation5 + $0x1968] sm:$0xff]
        %v1112 = vld [vmem:[#allocation5 + $0x1970] sm:$0xff]
        %v1113 = vld [vmem:[#allocation5 + $0x1978] sm:$0xff]
        %v1114 = vld [vmem:[#allocation5 + $0x1980] sm:$0xff]
        %v1115 = vld [vmem:[#allocation5 + $0x1988] sm:$0xff]
        %v1116 = vld [vmem:[#allocation5 + $0x1990] sm:$0xff]
        %v1117 = vld [vmem:[#allocation5 + $0x1998] sm:$0xff]
        %v1118 = vld [vmem:[#allocation5 + $0x19a0] sm:$0xff]
        %v1119 = vld [vmem:[#allocation5 + $0x19a8] sm:$0xff]
        %v1120 = vld [vmem:[#allocation5 + $0x19b0] sm:$0xff]
        %v1121 = vld [vmem:[#allocation5 + $0x19b8] sm:$0xff]
        %v1122 = vld [vmem:[#allocation5 + $0x19c0] sm:$0xff]
        %v1123 = vld [vmem:[#allocation5 + $0x19c8] sm:$0xff]
        %v1124 = vld [vmem:[#allocation5 + $0x19d0] sm:$0xff]
        %v1125 = vld [vmem:[#allocation5 + $0x19d8] sm:$0xff]
        %v1126 = vld [vmem:[#allocation5 + $0x19e0] sm:$0xff]
        %v1127 = vld [vmem:[#allocation5 + $0x19e8] sm:$0xff]
        %v1128 = vld [vmem:[#allocation5 + $0x19f0] sm:$0xff]
        %v1129 = vld [vmem:[#allocation5 + $0x19f8] sm:$0xff]
        %v1130 = vld [vmem:[#allocation5 + $0x1a00] sm:$0xff]
        %v1131 = vld [vmem:[#allocation5 + $0x1a08] sm:$0xff]
        %v1132 = vld [vmem:[#allocation5 + $0x1a10] sm:$0xff]
        %v1133 = vld [vmem:[#allocation5 + $0x1a18] sm:$0xff]
        %v1134 = vld [vmem:[#allocation5 + $0x1a20] sm:$0xff]
        %v1135 = vld [vmem:[#allocation5 + $0x1a28] sm:$0xff]
        %v1136 = vld [vmem:[#allocation5 + $0x1a30] sm:$0xff]
        %v1137 = vld [vmem:[#allocation5 + $0x1a38] sm:$0xff]
        %v1138 = vld [vmem:[#allocation5 + $0x1a40] sm:$0xff]
        %v1139 = vld [vmem:[#allocation5 + $0x1a48] sm:$0xff]
        %v1140 = vld [vmem:[#allocation5 + $0x1a50] sm:$0xff]
        %v1141 = vld [vmem:[#allocation5 + $0x1a58] sm:$0xff]
        %v1142 = vld [vmem:[#allocation5 + $0x1a60] sm:$0xff]
        %v1143 = vld [vmem:[#allocation5 + $0x1a68] sm:$0xff]
        %v1144 = vld [vmem:[#allocation5 + $0x1a70] sm:$0xff]
        %v1145 = vld [vmem:[#allocation5 + $0x1a78] sm:$0xff]
        %v1146 = vld [vmem:[#allocation5 + $0x1a80] sm:$0xff]
        %v1147 = vld [vmem:[#allocation5 + $0x1a88] sm:$0xff]
        %v1148 = vld [vmem:[#allocation5 + $0x1a90] sm:$0xff]
        %v1149 = vld [vmem:[#allocation5 + $0x1a98] sm:$0xff]
        %v1150 = vld [vmem:[#allocation5 + $0x1aa0] sm:$0xff]
        %v1151 = vld [vmem:[#allocation5 + $0x1aa8] sm:$0xff]
        %v1152 = vld [vmem:[#allocation5 + $0x1ab0] sm:$0xff]
        %v1153 = vld [vmem:[#allocation5 + $0x1ab8] sm:$0xff]
        %v1154 = vld [vmem:[#allocation5 + $0x1ac0] sm:$0xff]
        %v1155 = vld [vmem:[#allocation5 + $0x1ac8] sm:$0xff]
        %v1156 = vld [vmem:[#allocation5 + $0x1ad0] sm:$0xff]
        %v1157 = vld [vmem:[#allocation5 + $0x1ad8] sm:$0xff]
        %v1158 = vld [vmem:[#allocation5 + $0x1ae0] sm:$0xff]
        %v1159 = vld [vmem:[#allocation5 + $0x1ae8] sm:$0xff]
        %v1160 = vld [vmem:[#allocation5 + $0x1af0] sm:$0xff]
        %v1161 = vld [vmem:[#allocation5 + $0x1af8] sm:$0xff]
        %v1162 = vld [vmem:[#allocation7] sm:$0xff]
        %v1163 = vld [vmem:[#allocation7 + $0x8] sm:$0xff]
        %v1164 = vld [vmem:[#allocation7 + $0x10] sm:$0x3]
        %v1168 = vlaneseq
        %v1169 = vshrl.u32 %v1168, 7
        %v1170 = vsub.s32 0, %v1169
        %v1171 = vrot.slane %v1162, %v1170
        %v1172 = vlaneseq
        %v1173 = vshrl.u32 %v1172, 7
        %v1174 = vsub.s32 1, %v1173
        %v1175 = vrot.slane %v1162, %v1174
        %v1176 = vlaneseq
        %v1177 = vshrl.u32 %v1176, 7
        %v1178 = vsub.s32 2, %v1177
        %v1179 = vrot.slane %v1162, %v1178
        %v1180 = vlaneseq
        %v1181 = vshrl.u32 %v1180, 7
        %v1182 = vsub.s32 3, %v1181
        %v1183 = vrot.slane %v1162, %v1182
        %v1184 = vlaneseq
        %v1185 = vshrl.u32 %v1184, 7
        %v1186 = vsub.s32 4, %v1185
        %v1187 = vrot.slane %v1162, %v1186
        %v1188 = vlaneseq
        %v1189 = vshrl.u32 %v1188, 7
        %v1190 = vsub.s32 5, %v1189
        %v1191 = vrot.slane %v1162, %v1190
        %v1192 = vlaneseq
        %v1193 = vshrl.u32 %v1192, 7
        %v1194 = vsub.s32 6, %v1193
        %v1195 = vrot.slane %v1162, %v1194
        %v1196 = vlaneseq
        %v1197 = vshrl.u32 %v1196, 7
        %v1198 = vsub.s32 7, %v1197
        %v1199 = vrot.slane %v1162, %v1198
        %v1200 = vlaneseq
        %v1201 = vshrl.u32 %v1200, 7
        %v1202 = vsub.s32 0, %v1201
        %v1203 = vrot.slane %v1163, %v1202
        %v1204 = vlaneseq
        %v1205 = vshrl.u32 %v1204, 7
        %v1206 = vsub.s32 1, %v1205
        %v1207 = vrot.slane %v1163, %v1206
        %v1208 = vlaneseq
        %v1209 = vshrl.u32 %v1208, 7
        %v1210 = vsub.s32 2, %v1209
        %v1211 = vrot.slane %v1163, %v1210
        %v1212 = vlaneseq
        %v1213 = vshrl.u32 %v1212, 7
        %v1214 = vsub.s32 3, %v1213
        %v1215 = vrot.slane %v1163, %v1214
        %v1216 = vlaneseq
        %v1217 = vshrl.u32 %v1216, 7
        %v1218 = vsub.s32 4, %v1217
        %v1219 = vrot.slane %v1163, %v1218
        %v1220 = vlaneseq
        %v1221 = vshrl.u32 %v1220, 7
        %v1222 = vsub.s32 5, %v1221
        %v1223 = vrot.slane %v1163, %v1222
        %v1224 = vlaneseq
        %v1225 = vshrl.u32 %v1224, 7
        %v1226 = vsub.s32 6, %v1225
        %v1227 = vrot.slane %v1163, %v1226
        %v1228 = vlaneseq
        %v1229 = vshrl.u32 %v1228, 7
        %v1230 = vsub.s32 7, %v1229
        %v1231 = vrot.slane %v1163, %v1230
        %v1232 = vlaneseq
        %v1233 = vshrl.u32 %v1232, 7
        %v1234 = vsub.s32 0, %v1233
        %v1235 = vrot.slane %v1164, %v1234
        %v1236 = vlaneseq
        %v1237 = vshrl.u32 %v1236, 7
        %v1238 = vsub.s32 1, %v1237
        %v1239 = vrot.slane %v1164, %v1238
        %v2122 = vunpack.c.l.b16 %v298
        %v2123 = vunpack.c.h.b16 %v298
        %v2124 = vunpack.c.l.b16 %v299
        %v2125 = vunpack.c.h.b16 %v299
        %v2126 = vunpack.c.l.b16 %v300
        %v2127 = vunpack.c.h.b16 %v300
        %v2128 = vunpack.c.l.b16 %v301
        %v2129 = vunpack.c.h.b16 %v301
        %v2130 = vunpack.c.l.b16 %v302
        %v2131 = vunpack.c.h.b16 %v302
        %v2132 = vunpack.c.l.b16 %v303
        %v2133 = vunpack.c.h.b16 %v303
        %v2134 = vunpack.c.l.b16 %v304
        %v2135 = vunpack.c.h.b16 %v304
        %v2136 = vunpack.c.l.b16 %v305
        %v2137 = vunpack.c.h.b16 %v305
        %v2138 = vunpack.c.l.b16 %v306
        %v2139 = vunpack.c.h.b16 %v306
        %v2140 = vunpack.c.l.b16 %v307
        %v2141 = vunpack.c.h.b16 %v307
        %v2142 = vunpack.c.l.b16 %v308
        %v2143 = vunpack.c.h.b16 %v308
        %v2144 = vunpack.c.l.b16 %v309
        %v2145 = vunpack.c.h.b16 %v309
        %v2146 = vunpack.c.l.b16 %v310
        %v2147 = vunpack.c.h.b16 %v310
        %v2148 = vunpack.c.l.b16 %v311
        %v2149 = vunpack.c.h.b16 %v311
        %v2150 = vunpack.c.l.b16 %v312
        %v2151 = vunpack.c.h.b16 %v312
        %v2152 = vunpack.c.l.b16 %v313
        %v2153 = vunpack.c.h.b16 %v313
        %v2154 = vunpack.c.l.b16 %v314
        %v2155 = vunpack.c.h.b16 %v314
        %v2156 = vunpack.c.l.b16 %v315
        %v2157 = vunpack.c.h.b16 %v315
        %v2158 = vunpack.c.l.b16 %v316
        %v2159 = vunpack.c.h.b16 %v316
        %v2160 = vunpack.c.l.b16 %v317
        %v2161 = vunpack.c.h.b16 %v317
        %v2162 = vunpack.c.l.b16 %v318
        %v2163 = vunpack.c.h.b16 %v318
        %v2164 = vunpack.c.l.b16 %v319
        %v2165 = vunpack.c.h.b16 %v319
        %v2166 = vunpack.c.l.b16 %v320
        %v2167 = vunpack.c.h.b16 %v320
        %v2168 = vunpack.c.l.b16 %v321
        %v2169 = vunpack.c.h.b16 %v321
        %v2170 = vunpack.c.l.b16 %v322
        %v2171 = vunpack.c.h.b16 %v322
        %v2172 = vunpack.c.l.b16 %v323
        %v2173 = vunpack.c.h.b16 %v323
        %v2174 = vunpack.c.l.b16 %v324
        %v2175 = vunpack.c.h.b16 %v324
        %v2176 = vunpack.c.l.b16 %v325
        %v2177 = vunpack.c.h.b16 %v325
        %v2178 = vunpack.c.l.b16 %v326
        %v2179 = vunpack.c.h.b16 %v326
        %v2180 = vunpack.c.l.b16 %v327
        %v2181 = vunpack.c.h.b16 %v327
        %v2182 = vunpack.c.l.b16 %v328
        %v2183 = vunpack.c.h.b16 %v328
        %v2184 = vunpack.c.l.b16 %v329
        %v2185 = vunpack.c.h.b16 %v329
        %v2186 = vunpack.c.l.b16 %v330
        %v2187 = vunpack.c.h.b16 %v330
        %v2188 = vunpack.c.l.b16 %v331
        %v2189 = vunpack.c.h.b16 %v331
        %v2190 = vunpack.c.l.b16 %v332
        %v2191 = vunpack.c.h.b16 %v332
        %v2192 = vunpack.c.l.b16 %v333
        %v2193 = vunpack.c.h.b16 %v333
        %v2194 = vunpack.c.l.b16 %v334
        %v2195 = vunpack.c.h.b16 %v334
        %v2196 = vunpack.c.l.b16 %v335
        %v2197 = vunpack.c.h.b16 %v335
        %v2198 = vunpack.c.l.b16 %v336
        %v2199 = vunpack.c.h.b16 %v336
        %v2200 = vunpack.c.l.b16 %v337
        %v2201 = vunpack.c.h.b16 %v337
        %v2202 = vunpack.c.l.b16 %v338
        %v2203 = vunpack.c.h.b16 %v338
        %v2204 = vunpack.c.l.b16 %v339
        %v2205 = vunpack.c.h.b16 %v339
        %v2206 = vunpack.c.l.b16 %v340
        %v2207 = vunpack.c.h.b16 %v340
        %v2208 = vunpack.c.l.b16 %v341
        %v2209 = vunpack.c.h.b16 %v341
        %v2210 = vunpack.c.l.b16 %v342
        %v2211 = vunpack.c.h.b16 %v342
        %v2212 = vunpack.c.l.b16 %v343
        %v2213 = vunpack.c.h.b16 %v343
        %v2214 = vunpack.c.l.b16 %v344
        %v2215 = vunpack.c.h.b16 %v344
        %v2216 = vunpack.c.l.b16 %v345
        %v2217 = vunpack.c.h.b16 %v345
        %v2218 = vunpack.c.l.b16 %v346
        %v2219 = vunpack.c.h.b16 %v346
        %v2220 = vunpack.c.l.b16 %v347
        %v2221 = vunpack.c.h.b16 %v347
        %v2222 = vunpack.c.l.b16 %v348
        %v2223 = vunpack.c.h.b16 %v348
        %v2224 = vunpack.c.l.b16 %v349
        %v2225 = vunpack.c.h.b16 %v349
        %v2226 = vunpack.c.l.b16 %v350
        %v2227 = vunpack.c.h.b16 %v350
        %v2228 = vunpack.c.l.b16 %v351
        %v2229 = vunpack.c.h.b16 %v351
        %v2230 = vunpack.c.l.b16 %v352
        %v2231 = vunpack.c.h.b16 %v352
        %v2232 = vunpack.c.l.b16 %v353
        %v2233 = vunpack.c.h.b16 %v353
        %v2234 = vunpack.c.l.b16 %v354
        %v2235 = vunpack.c.h.b16 %v354
        %v2236 = vunpack.c.l.b16 %v355
        %v2237 = vunpack.c.h.b16 %v355
        %v2238 = vunpack.c.l.b16 %v356
        %v2239 = vunpack.c.h.b16 %v356
        %v2240 = vunpack.c.l.b16 %v357
        %v2241 = vunpack.c.h.b16 %v357
        %v2242 = vunpack.c.l.b16 %v358
        %v2243 = vunpack.c.h.b16 %v358
        %v2244 = vunpack.c.l.b16 %v359
        %v2245 = vunpack.c.h.b16 %v359
        %v2246 = vunpack.c.l.b16 %v360
        %v2247 = vunpack.c.h.b16 %v360
        %v2248 = vunpack.c.l.b16 %v361
        %v2249 = vunpack.c.h.b16 %v361
        %v2250 = vunpack.c.l.b16 %v362
        %v2251 = vunpack.c.h.b16 %v362
        %v2252 = vunpack.c.l.b16 %v363
        %v2253 = vunpack.c.h.b16 %v363
        %v2254 = vunpack.c.l.b16 %v364
        %v2255 = vunpack.c.h.b16 %v364
        %v2256 = vunpack.c.l.b16 %v365
        %v2257 = vunpack.c.h.b16 %v365
        %v2258 = vunpack.c.l.b16 %v366
        %v2259 = vunpack.c.h.b16 %v366
        %v2260 = vunpack.c.l.b16 %v367
        %v2261 = vunpack.c.h.b16 %v367
        %v2262 = vunpack.c.l.b16 %v368
        %v2263 = vunpack.c.h.b16 %v368
        %v2264 = vunpack.c.l.b16 %v369
        %v2265 = vunpack.c.h.b16 %v369
        %v2266 = vunpack.c.l.b16 %v370
        %v2267 = vunpack.c.h.b16 %v370
        %v2268 = vunpack.c.l.b16 %v371
        %v2269 = vunpack.c.h.b16 %v371
        %v2270 = vunpack.c.l.b16 %v372
        %v2271 = vunpack.c.h.b16 %v372
        %v2272 = vunpack.c.l.b16 %v373
        %v2273 = vunpack.c.h.b16 %v373
        %v2274 = vunpack.c.l.b16 %v374
        %v2275 = vunpack.c.h.b16 %v374
        %v2276 = vunpack.c.l.b16 %v375
        %v2277 = vunpack.c.h.b16 %v375
        %v2278 = vunpack.c.l.b16 %v376
        %v2279 = vunpack.c.h.b16 %v376
        %v2280 = vunpack.c.l.b16 %v377
        %v2281 = vunpack.c.h.b16 %v377
        %v2282 = vunpack.c.l.b16 %v378
        %v2283 = vunpack.c.h.b16 %v378
        %v2284 = vunpack.c.l.b16 %v379
        %v2285 = vunpack.c.h.b16 %v379
        %v2286 = vunpack.c.l.b16 %v380
        %v2287 = vunpack.c.h.b16 %v380
        %v2288 = vunpack.c.l.b16 %v381
        %v2289 = vunpack.c.h.b16 %v381
        %v2290 = vunpack.c.l.b16 %v382
        %v2291 = vunpack.c.h.b16 %v382
        %v2292 = vunpack.c.l.b16 %v383
        %v2293 = vunpack.c.h.b16 %v383
        %v2294 = vunpack.c.l.b16 %v384
        %v2295 = vunpack.c.h.b16 %v384
        %v2296 = vunpack.c.l.b16 %v385
        %v2297 = vunpack.c.h.b16 %v385
        %v2298 = vunpack.c.l.b16 %v386
        %v2299 = vunpack.c.h.b16 %v386
        %v2300 = vunpack.c.l.b16 %v387
        %v2301 = vunpack.c.h.b16 %v387
        %v2302 = vunpack.c.l.b16 %v388
        %v2303 = vunpack.c.h.b16 %v388
        %v2304 = vunpack.c.l.b16 %v389
        %v2305 = vunpack.c.h.b16 %v389
        %v2306 = vunpack.c.l.b16 %v390
        %v2307 = vunpack.c.h.b16 %v390
        %v2308 = vunpack.c.l.b16 %v391
        %v2309 = vunpack.c.h.b16 %v391
        %v2310 = vunpack.c.l.b16 %v392
        %v2311 = vunpack.c.h.b16 %v392
        %v2312 = vunpack.c.l.b16 %v393
        %v2313 = vunpack.c.h.b16 %v393
        %v2314 = vunpack.c.l.b16 %v394
        %v2315 = vunpack.c.h.b16 %v394
        %v2316 = vunpack.c.l.b16 %v395
        %v2317 = vunpack.c.h.b16 %v395
        %v2318 = vunpack.c.l.b16 %v396
        %v2319 = vunpack.c.h.b16 %v396
        %v2320 = vunpack.c.l.b16 %v397
        %v2321 = vunpack.c.h.b16 %v397
        %v2322 = vunpack.c.l.b16 %v398
        %v2323 = vunpack.c.h.b16 %v398
        %v2324 = vunpack.c.l.b16 %v399
        %v2325 = vunpack.c.h.b16 %v399
        %v2326 = vunpack.c.l.b16 %v400
        %v2327 = vunpack.c.h.b16 %v400
        %v2328 = vunpack.c.l.b16 %v401
        %v2329 = vunpack.c.h.b16 %v401
        %v2330 = vunpack.c.l.b16 %v402
        %v2331 = vunpack.c.h.b16 %v402
        %v2332 = vunpack.c.l.b16 %v403
        %v2333 = vunpack.c.h.b16 %v403
        %v2334 = vunpack.c.l.b16 %v404
        %v2335 = vunpack.c.h.b16 %v404
        %v2336 = vunpack.c.l.b16 %v405
        %v2337 = vunpack.c.h.b16 %v405
        %v2338 = vunpack.c.l.b16 %v406
        %v2339 = vunpack.c.h.b16 %v406
        %v2340 = vunpack.c.l.b16 %v407
        %v2341 = vunpack.c.h.b16 %v407
        %v2342 = vunpack.c.l.b16 %v408
        %v2343 = vunpack.c.h.b16 %v408
        %v2344 = vunpack.c.l.b16 %v409
        %v2345 = vunpack.c.h.b16 %v409
        %v2346 = vunpack.c.l.b16 %v410
        %v2347 = vunpack.c.h.b16 %v410
        %v2348 = vunpack.c.l.b16 %v411
        %v2349 = vunpack.c.h.b16 %v411
        %v2350 = vunpack.c.l.b16 %v412
        %v2351 = vunpack.c.h.b16 %v412
        %v2352 = vunpack.c.l.b16 %v413
        %v2353 = vunpack.c.h.b16 %v413
        %v2354 = vunpack.c.l.b16 %v414
        %v2355 = vunpack.c.h.b16 %v414
        %v2356 = vunpack.c.l.b16 %v415
        %v2357 = vunpack.c.h.b16 %v415
        %v2358 = vunpack.c.l.b16 %v416
        %v2359 = vunpack.c.h.b16 %v416
        %v2360 = vunpack.c.l.b16 %v417
        %v2361 = vunpack.c.h.b16 %v417
        %v2362 = vunpack.c.l.b16 %v418
        %v2363 = vunpack.c.h.b16 %v418
        %v2364 = vunpack.c.l.b16 %v419
        %v2365 = vunpack.c.h.b16 %v419
        %v2366 = vunpack.c.l.b16 %v420
        %v2367 = vunpack.c.h.b16 %v420
        %v2368 = vunpack.c.l.b16 %v421
        %v2369 = vunpack.c.h.b16 %v421
        %v2370 = vunpack.c.l.b16 %v422
        %v2371 = vunpack.c.h.b16 %v422
        %v2372 = vunpack.c.l.b16 %v423
        %v2373 = vunpack.c.h.b16 %v423
        %v2374 = vunpack.c.l.b16 %v424
        %v2375 = vunpack.c.h.b16 %v424
        %v2376 = vunpack.c.l.b16 %v425
        %v2377 = vunpack.c.h.b16 %v425
        %v2378 = vunpack.c.l.b16 %v426
        %v2379 = vunpack.c.h.b16 %v426
        %v2380 = vunpack.c.l.b16 %v427
        %v2381 = vunpack.c.h.b16 %v427
        %v2382 = vunpack.c.l.b16 %v428
        %v2383 = vunpack.c.h.b16 %v428
        %v2384 = vunpack.c.l.b16 %v429
        %v2385 = vunpack.c.h.b16 %v429
        %v2386 = vunpack.c.l.b16 %v430
        %v2387 = vunpack.c.h.b16 %v430
        %v2388 = vunpack.c.l.b16 %v431
        %v2389 = vunpack.c.h.b16 %v431
        %v2390 = vunpack.c.l.b16 %v432
        %v2391 = vunpack.c.h.b16 %v432
        %v2392 = vunpack.c.l.b16 %v433
        %v2393 = vunpack.c.h.b16 %v433
        %v2394 = vunpack.c.l.b16 %v434
        %v2395 = vunpack.c.h.b16 %v434
        %v2396 = vunpack.c.l.b16 %v435
        %v2397 = vunpack.c.h.b16 %v435
        %v2398 = vunpack.c.l.b16 %v436
        %v2399 = vunpack.c.h.b16 %v436
        %v2400 = vunpack.c.l.b16 %v437
        %v2401 = vunpack.c.h.b16 %v437
        %v2402 = vunpack.c.l.b16 %v438
        %v2403 = vunpack.c.h.b16 %v438
        %v2404 = vunpack.c.l.b16 %v439
        %v2405 = vunpack.c.h.b16 %v439
        %v2406 = vunpack.c.l.b16 %v440
        %v2407 = vunpack.c.h.b16 %v440
        %v2408 = vunpack.c.l.b16 %v441
        %v2409 = vunpack.c.h.b16 %v441
        %v2410 = vunpack.c.l.b16 %v442
        %v2411 = vunpack.c.h.b16 %v442
        %v2412 = vunpack.c.l.b16 %v443
        %v2413 = vunpack.c.h.b16 %v443
        %v2414 = vunpack.c.l.b16 %v444
        %v2415 = vunpack.c.h.b16 %v444
        %v2416 = vunpack.c.l.b16 %v445
        %v2417 = vunpack.c.h.b16 %v445
        %v2418 = vunpack.c.l.b16 %v446
        %v2419 = vunpack.c.h.b16 %v446
        %v2420 = vunpack.c.l.b16 %v447
        %v2421 = vunpack.c.h.b16 %v447
        %v2422 = vunpack.c.l.b16 %v448
        %v2423 = vunpack.c.h.b16 %v448
        %v2424 = vunpack.c.l.b16 %v449
        %v2425 = vunpack.c.h.b16 %v449
        %v2426 = vunpack.c.l.b16 %v450
        %v2427 = vunpack.c.h.b16 %v450
        %v2428 = vunpack.c.l.b16 %v451
        %v2429 = vunpack.c.h.b16 %v451
        %v2430 = vunpack.c.l.b16 %v452
        %v2431 = vunpack.c.h.b16 %v452
        %v2432 = vunpack.c.l.b16 %v453
        %v2433 = vunpack.c.h.b16 %v453
        %v2434 = vunpack.c.l.b16 %v454
        %v2435 = vunpack.c.h.b16 %v454
        %v2436 = vunpack.c.l.b16 %v455
        %v2437 = vunpack.c.h.b16 %v455
        %v2438 = vunpack.c.l.b16 %v456
        %v2439 = vunpack.c.h.b16 %v456
        %v2440 = vunpack.c.l.b16 %v457
        %v2441 = vunpack.c.h.b16 %v457
        %v2442 = vunpack.c.l.b16 %v458
        %v2443 = vunpack.c.h.b16 %v458
        %v2444 = vunpack.c.l.b16 %v459
        %v2445 = vunpack.c.h.b16 %v459
        %v2446 = vunpack.c.l.b16 %v460
        %v2447 = vunpack.c.h.b16 %v460
        %v2448 = vunpack.c.l.b16 %v461
        %v2449 = vunpack.c.h.b16 %v461
        %v2450 = vunpack.c.l.b16 %v462
        %v2451 = vunpack.c.h.b16 %v462
        %v2452 = vunpack.c.l.b16 %v463
        %v2453 = vunpack.c.h.b16 %v463
        %v2454 = vunpack.c.l.b16 %v464
        %v2455 = vunpack.c.h.b16 %v464
        %v2456 = vunpack.c.l.b16 %v465
        %v2457 = vunpack.c.h.b16 %v465
        %v2458 = vunpack.c.l.b16 %v466
        %v2459 = vunpack.c.h.b16 %v466
        %v2460 = vunpack.c.l.b16 %v467
        %v2461 = vunpack.c.h.b16 %v467
        %v2462 = vunpack.c.l.b16 %v468
        %v2463 = vunpack.c.h.b16 %v468
        %v2464 = vunpack.c.l.b16 %v469
        %v2465 = vunpack.c.h.b16 %v469
        %v2466 = vunpack.c.l.b16 %v470
        %v2467 = vunpack.c.h.b16 %v470
        %v2468 = vunpack.c.l.b16 %v471
        %v2469 = vunpack.c.h.b16 %v471
        %v2470 = vunpack.c.l.b16 %v472
        %v2471 = vunpack.c.h.b16 %v472
        %v2472 = vunpack.c.l.b16 %v473
        %v2473 = vunpack.c.h.b16 %v473
        %v2474 = vunpack.c.l.b16 %v474
        %v2475 = vunpack.c.h.b16 %v474
        %v2476 = vunpack.c.l.b16 %v475
        %v2477 = vunpack.c.h.b16 %v475
        %v2478 = vunpack.c.l.b16 %v476
        %v2479 = vunpack.c.h.b16 %v476
        %v2480 = vunpack.c.l.b16 %v477
        %v2481 = vunpack.c.h.b16 %v477
        %v2482 = vunpack.c.l.b16 %v478
        %v2483 = vunpack.c.h.b16 %v478
        %v2484 = vunpack.c.l.b16 %v479
        %v2485 = vunpack.c.h.b16 %v479
        %v2486 = vunpack.c.l.b16 %v480
        %v2487 = vunpack.c.h.b16 %v480
        %v2488 = vunpack.c.l.b16 %v481
        %v2489 = vunpack.c.h.b16 %v481
        %v2490 = vunpack.c.l.b16 %v482
        %v2491 = vunpack.c.h.b16 %v482
        %v2492 = vunpack.c.l.b16 %v483
        %v2493 = vunpack.c.h.b16 %v483
        %v2494 = vunpack.c.l.b16 %v484
        %v2495 = vunpack.c.h.b16 %v484
        %v2496 = vunpack.c.l.b16 %v485
        %v2497 = vunpack.c.h.b16 %v485
        %v2498 = vunpack.c.l.b16 %v486
        %v2499 = vunpack.c.h.b16 %v486
        %v2500 = vunpack.c.l.b16 %v487
        %v2501 = vunpack.c.h.b16 %v487
        %v2502 = vunpack.c.l.b16 %v488
        %v2503 = vunpack.c.h.b16 %v488
        %v2504 = vunpack.c.l.b16 %v489
        %v2505 = vunpack.c.h.b16 %v489
        %v2506 = vunpack.c.l.b16 %v490
        %v2507 = vunpack.c.h.b16 %v490
        %v2508 = vunpack.c.l.b16 %v491
        %v2509 = vunpack.c.h.b16 %v491
        %v2510 = vunpack.c.l.b16 %v492
        %v2511 = vunpack.c.h.b16 %v492
        %v2512 = vunpack.c.l.b16 %v493
        %v2513 = vunpack.c.h.b16 %v493
        %v2514 = vunpack.c.l.b16 %v494
        %v2515 = vunpack.c.h.b16 %v494
        %v2516 = vunpack.c.l.b16 %v495
        %v2517 = vunpack.c.h.b16 %v495
        %v2518 = vunpack.c.l.b16 %v496
        %v2519 = vunpack.c.h.b16 %v496
        %v2520 = vunpack.c.l.b16 %v497
        %v2521 = vunpack.c.h.b16 %v497
        %v2522 = vunpack.c.l.b16 %v498
        %v2523 = vunpack.c.h.b16 %v498
        %v2524 = vunpack.c.l.b16 %v499
        %v2525 = vunpack.c.h.b16 %v499
        %v2526 = vunpack.c.l.b16 %v500
        %v2527 = vunpack.c.h.b16 %v500
        %v2528 = vunpack.c.l.b16 %v501
        %v2529 = vunpack.c.h.b16 %v501
        %v2530 = vunpack.c.l.b16 %v502
        %v2531 = vunpack.c.h.b16 %v502
        %v2532 = vunpack.c.l.b16 %v503
        %v2533 = vunpack.c.h.b16 %v503
        %v2534 = vunpack.c.l.b16 %v504
        %v2535 = vunpack.c.h.b16 %v504
        %v2536 = vunpack.c.l.b16 %v505
        %v2537 = vunpack.c.h.b16 %v505
        %v2538 = vunpack.c.l.b16 %v506
        %v2539 = vunpack.c.h.b16 %v506
        %v2540 = vunpack.c.l.b16 %v507
        %v2541 = vunpack.c.h.b16 %v507
        %v2542 = vunpack.c.l.b16 %v508
        %v2543 = vunpack.c.h.b16 %v508
        %v2544 = vunpack.c.l.b16 %v509
        %v2545 = vunpack.c.h.b16 %v509
        %v2546 = vunpack.c.l.b16 %v510
        %v2547 = vunpack.c.h.b16 %v510
        %v2548 = vunpack.c.l.b16 %v511
        %v2549 = vunpack.c.h.b16 %v511
        %v2550 = vunpack.c.l.b16 %v512
        %v2551 = vunpack.c.h.b16 %v512
        %v2552 = vunpack.c.l.b16 %v513
        %v2553 = vunpack.c.h.b16 %v513
        %v2554 = vunpack.c.l.b16 %v514
        %v2555 = vunpack.c.h.b16 %v514
        %v2556 = vunpack.c.l.b16 %v515
        %v2557 = vunpack.c.h.b16 %v515
        %v2558 = vunpack.c.l.b16 %v516
        %v2559 = vunpack.c.h.b16 %v516
        %v2560 = vunpack.c.l.b16 %v517
        %v2561 = vunpack.c.h.b16 %v517
        %v2562 = vunpack.c.l.b16 %v518
        %v2563 = vunpack.c.h.b16 %v518
        %v2564 = vunpack.c.l.b16 %v519
        %v2565 = vunpack.c.h.b16 %v519
        %v2566 = vunpack.c.l.b16 %v520
        %v2567 = vunpack.c.h.b16 %v520
        %v2568 = vunpack.c.l.b16 %v521
        %v2569 = vunpack.c.h.b16 %v521
        %v2570 = vunpack.c.l.b16 %v522
        %v2571 = vunpack.c.h.b16 %v522
        %v2572 = vunpack.c.l.b16 %v523
        %v2573 = vunpack.c.h.b16 %v523
        %v2574 = vunpack.c.l.b16 %v524
        %v2575 = vunpack.c.h.b16 %v524
        %v2576 = vunpack.c.l.b16 %v525
        %v2577 = vunpack.c.h.b16 %v525
        %v2578 = vunpack.c.l.b16 %v526
        %v2579 = vunpack.c.h.b16 %v526
        %v2580 = vunpack.c.l.b16 %v527
        %v2581 = vunpack.c.h.b16 %v527
        %v2582 = vunpack.c.l.b16 %v528
        %v2583 = vunpack.c.h.b16 %v528
        %v2584 = vunpack.c.l.b16 %v529
        %v2585 = vunpack.c.h.b16 %v529
        %v2586 = vunpack.c.l.b16 %v530
        %v2587 = vunpack.c.h.b16 %v530
        %v2588 = vunpack.c.l.b16 %v531
        %v2589 = vunpack.c.h.b16 %v531
        %v2590 = vunpack.c.l.b16 %v532
        %v2591 = vunpack.c.h.b16 %v532
        %v2592 = vunpack.c.l.b16 %v533
        %v2593 = vunpack.c.h.b16 %v533
        %v2594 = vunpack.c.l.b16 %v534
        %v2595 = vunpack.c.h.b16 %v534
        %v2596 = vunpack.c.l.b16 %v535
        %v2597 = vunpack.c.h.b16 %v535
        %v2598 = vunpack.c.l.b16 %v536
        %v2599 = vunpack.c.h.b16 %v536
        %v2600 = vunpack.c.l.b16 %v537
        %v2601 = vunpack.c.h.b16 %v537
        %v2602 = vunpack.c.l.b16 %v538
        %v2603 = vunpack.c.h.b16 %v538
        %v2604 = vunpack.c.l.b16 %v539
        %v2605 = vunpack.c.h.b16 %v539
        %v2606 = vunpack.c.l.b16 %v540
        %v2607 = vunpack.c.h.b16 %v540
        %v2608 = vunpack.c.l.b16 %v541
        %v2609 = vunpack.c.h.b16 %v541
        %v2610 = vunpack.c.l.b16 %v542
        %v2611 = vunpack.c.h.b16 %v542
        %v2612 = vunpack.c.l.b16 %v543
        %v2613 = vunpack.c.h.b16 %v543
        %v2614 = vunpack.c.l.b16 %v544
        %v2615 = vunpack.c.h.b16 %v544
        %v2616 = vunpack.c.l.b16 %v545
        %v2617 = vunpack.c.h.b16 %v545
        %v2618 = vunpack.c.l.b16 %v546
        %v2619 = vunpack.c.h.b16 %v546
        %v2620 = vunpack.c.l.b16 %v547
        %v2621 = vunpack.c.h.b16 %v547
        %v2622 = vunpack.c.l.b16 %v548
        %v2623 = vunpack.c.h.b16 %v548
        %v2624 = vunpack.c.l.b16 %v549
        %v2625 = vunpack.c.h.b16 %v549
        %v2626 = vunpack.c.l.b16 %v550
        %v2627 = vunpack.c.h.b16 %v550
        %v2628 = vunpack.c.l.b16 %v551
        %v2629 = vunpack.c.h.b16 %v551
        %v2630 = vunpack.c.l.b16 %v552
        %v2631 = vunpack.c.h.b16 %v552
        %v2632 = vunpack.c.l.b16 %v553
        %v2633 = vunpack.c.h.b16 %v553
        %v2634 = vunpack.c.l.b16 %v554
        %v2635 = vunpack.c.h.b16 %v554
        %v2636 = vunpack.c.l.b16 %v555
        %v2637 = vunpack.c.h.b16 %v555
        %v2638 = vunpack.c.l.b16 %v556
        %v2639 = vunpack.c.h.b16 %v556
        %v2640 = vunpack.c.l.b16 %v557
        %v2641 = vunpack.c.h.b16 %v557
        %v2642 = vunpack.c.l.b16 %v558
        %v2643 = vunpack.c.h.b16 %v558
        %v2644 = vunpack.c.l.b16 %v559
        %v2645 = vunpack.c.h.b16 %v559
        %v2646 = vunpack.c.l.b16 %v560
        %v2647 = vunpack.c.h.b16 %v560
        %v2648 = vunpack.c.l.b16 %v561
        %v2649 = vunpack.c.h.b16 %v561
        %v2650 = vunpack.c.l.b16 %v562
        %v2651 = vunpack.c.h.b16 %v562
        %v2652 = vunpack.c.l.b16 %v563
        %v2653 = vunpack.c.h.b16 %v563
        %v2654 = vunpack.c.l.b16 %v564
        %v2655 = vunpack.c.h.b16 %v564
        %v2656 = vunpack.c.l.b16 %v565
        %v2657 = vunpack.c.h.b16 %v565
        %v2658 = vunpack.c.l.b16 %v566
        %v2659 = vunpack.c.h.b16 %v566
        %v2660 = vunpack.c.l.b16 %v567
        %v2661 = vunpack.c.h.b16 %v567
        %v2662 = vunpack.c.l.b16 %v568
        %v2663 = vunpack.c.h.b16 %v568
        %v2664 = vunpack.c.l.b16 %v569
        %v2665 = vunpack.c.h.b16 %v569
        %v2666 = vunpack.c.l.b16 %v570
        %v2667 = vunpack.c.h.b16 %v570
        %v2668 = vunpack.c.l.b16 %v571
        %v2669 = vunpack.c.h.b16 %v571
        %v2670 = vunpack.c.l.b16 %v572
        %v2671 = vunpack.c.h.b16 %v572
        %v2672 = vunpack.c.l.b16 %v573
        %v2673 = vunpack.c.h.b16 %v573
        %v2674 = vunpack.c.l.b16 %v574
        %v2675 = vunpack.c.h.b16 %v574
        %v2676 = vunpack.c.l.b16 %v575
        %v2677 = vunpack.c.h.b16 %v575
        %v2678 = vunpack.c.l.b16 %v576
        %v2679 = vunpack.c.h.b16 %v576
        %v2680 = vunpack.c.l.b16 %v577
        %v2681 = vunpack.c.h.b16 %v577
        %v2682 = vunpack.c.l.b16 %v578
        %v2683 = vunpack.c.h.b16 %v578
        %v2684 = vunpack.c.l.b16 %v579
        %v2685 = vunpack.c.h.b16 %v579
        %v2686 = vunpack.c.l.b16 %v580
        %v2687 = vunpack.c.h.b16 %v580
        %v2688 = vunpack.c.l.b16 %v581
        %v2689 = vunpack.c.h.b16 %v581
        %v2690 = vunpack.c.l.b16 %v582
        %v2691 = vunpack.c.h.b16 %v582
        %v2692 = vunpack.c.l.b16 %v583
        %v2693 = vunpack.c.h.b16 %v583
        %v2694 = vunpack.c.l.b16 %v584
        %v2695 = vunpack.c.h.b16 %v584
        %v2696 = vunpack.c.l.b16 %v585
        %v2697 = vunpack.c.h.b16 %v585
        %v2698 = vunpack.c.l.b16 %v586
        %v2699 = vunpack.c.h.b16 %v586
        %v2700 = vunpack.c.l.b16 %v587
        %v2701 = vunpack.c.h.b16 %v587
        %v2702 = vunpack.c.l.b16 %v588
        %v2703 = vunpack.c.h.b16 %v588
        %v2704 = vunpack.c.l.b16 %v589
        %v2705 = vunpack.c.h.b16 %v589
        %v2706 = vunpack.c.l.b16 %v590
        %v2707 = vunpack.c.h.b16 %v590
        %v2708 = vunpack.c.l.b16 %v591
        %v2709 = vunpack.c.h.b16 %v591
        %v2710 = vunpack.c.l.b16 %v592
        %v2711 = vunpack.c.h.b16 %v592
        %v2712 = vunpack.c.l.b16 %v593
        %v2713 = vunpack.c.h.b16 %v593
        %v2714 = vunpack.c.l.b16 %v594
        %v2715 = vunpack.c.h.b16 %v594
        %v2716 = vunpack.c.l.b16 %v595
        %v2717 = vunpack.c.h.b16 %v595
        %v2718 = vunpack.c.l.b16 %v596
        %v2719 = vunpack.c.h.b16 %v596
        %v2720 = vunpack.c.l.b16 %v597
        %v2721 = vunpack.c.h.b16 %v597
        %v2722 = vunpack.c.l.b16 %v598
        %v2723 = vunpack.c.h.b16 %v598
        %v2724 = vunpack.c.l.b16 %v599
        %v2725 = vunpack.c.h.b16 %v599
        %v2726 = vunpack.c.l.b16 %v600
        %v2727 = vunpack.c.h.b16 %v600
        %v2728 = vunpack.c.l.b16 %v601
        %v2729 = vunpack.c.h.b16 %v601
        %v2730 = vunpack.c.l.b16 %v602
        %v2731 = vunpack.c.h.b16 %v602
        %v2732 = vunpack.c.l.b16 %v603
        %v2733 = vunpack.c.h.b16 %v603
        %v2734 = vunpack.c.l.b16 %v604
        %v2735 = vunpack.c.h.b16 %v604
        %v2736 = vunpack.c.l.b16 %v605
        %v2737 = vunpack.c.h.b16 %v605
        %v2738 = vunpack.c.l.b16 %v606
        %v2739 = vunpack.c.h.b16 %v606
        %v2740 = vunpack.c.l.b16 %v607
        %v2741 = vunpack.c.h.b16 %v607
        %v2742 = vunpack.c.l.b16 %v608
        %v2743 = vunpack.c.h.b16 %v608
        %v2744 = vunpack.c.l.b16 %v609
        %v2745 = vunpack.c.h.b16 %v609
        %v2746 = vunpack.c.l.b16 %v610
        %v2747 = vunpack.c.h.b16 %v610
        %v2748 = vunpack.c.l.b16 %v611
        %v2749 = vunpack.c.h.b16 %v611
        %v2750 = vunpack.c.l.b16 %v612
        %v2751 = vunpack.c.h.b16 %v612
        %v2752 = vunpack.c.l.b16 %v613
        %v2753 = vunpack.c.h.b16 %v613
        %v2754 = vunpack.c.l.b16 %v614
        %v2755 = vunpack.c.h.b16 %v614
        %v2756 = vunpack.c.l.b16 %v615
        %v2757 = vunpack.c.h.b16 %v615
        %v2758 = vunpack.c.l.b16 %v616
        %v2759 = vunpack.c.h.b16 %v616
        %v2760 = vunpack.c.l.b16 %v617
        %v2761 = vunpack.c.h.b16 %v617
        %v2762 = vunpack.c.l.b16 %v618
        %v2763 = vunpack.c.h.b16 %v618
        %v2764 = vunpack.c.l.b16 %v619
        %v2765 = vunpack.c.h.b16 %v619
        %v2766 = vunpack.c.l.b16 %v620
        %v2767 = vunpack.c.h.b16 %v620
        %v2768 = vunpack.c.l.b16 %v621
        %v2769 = vunpack.c.h.b16 %v621
        %v2770 = vunpack.c.l.b16 %v622
        %v2771 = vunpack.c.h.b16 %v622
        %v2772 = vunpack.c.l.b16 %v623
        %v2773 = vunpack.c.h.b16 %v623
        %v2774 = vunpack.c.l.b16 %v624
        %v2775 = vunpack.c.h.b16 %v624
        %v2776 = vunpack.c.l.b16 %v625
        %v2777 = vunpack.c.h.b16 %v625
        %v2778 = vunpack.c.l.b16 %v626
        %v2779 = vunpack.c.h.b16 %v626
        %v2780 = vunpack.c.l.b16 %v627
        %v2781 = vunpack.c.h.b16 %v627
        %v2782 = vunpack.c.l.b16 %v628
        %v2783 = vunpack.c.h.b16 %v628
        %v2784 = vunpack.c.l.b16 %v629
        %v2785 = vunpack.c.h.b16 %v629
        %v2786 = vunpack.c.l.b16 %v630
        %v2787 = vunpack.c.h.b16 %v630
        %v2788 = vunpack.c.l.b16 %v631
        %v2789 = vunpack.c.h.b16 %v631
        %v2790 = vunpack.c.l.b16 %v632
        %v2791 = vunpack.c.h.b16 %v632
        %v2792 = vunpack.c.l.b16 %v633
        %v2793 = vunpack.c.h.b16 %v633
        %v2794 = vunpack.c.l.b16 %v634
        %v2795 = vunpack.c.h.b16 %v634
        %v2796 = vunpack.c.l.b16 %v635
        %v2797 = vunpack.c.h.b16 %v635
        %v2798 = vunpack.c.l.b16 %v636
        %v2799 = vunpack.c.h.b16 %v636
        %v2800 = vunpack.c.l.b16 %v637
        %v2801 = vunpack.c.h.b16 %v637
        %v2802 = vunpack.c.l.b16 %v638
        %v2803 = vunpack.c.h.b16 %v638
        %v2804 = vunpack.c.l.b16 %v639
        %v2805 = vunpack.c.h.b16 %v639
        %v2806 = vunpack.c.l.b16 %v640
        %v2807 = vunpack.c.h.b16 %v640
        %v2808 = vunpack.c.l.b16 %v641
        %v2809 = vunpack.c.h.b16 %v641
        %v2810 = vunpack.c.l.b16 %v642
        %v2811 = vunpack.c.h.b16 %v642
        %v2812 = vunpack.c.l.b16 %v643
        %v2813 = vunpack.c.h.b16 %v643
        %v2814 = vunpack.c.l.b16 %v644
        %v2815 = vunpack.c.h.b16 %v644
        %v2816 = vunpack.c.l.b16 %v645
        %v2817 = vunpack.c.h.b16 %v645
        %v2818 = vunpack.c.l.b16 %v646
        %v2819 = vunpack.c.h.b16 %v646
        %v2820 = vunpack.c.l.b16 %v647
        %v2821 = vunpack.c.h.b16 %v647
        %v2822 = vunpack.c.l.b16 %v648
        %v2823 = vunpack.c.h.b16 %v648
        %v2824 = vunpack.c.l.b16 %v649
        %v2825 = vunpack.c.h.b16 %v649
        %v2826 = vunpack.c.l.b16 %v650
        %v2827 = vunpack.c.h.b16 %v650
        %v2828 = vunpack.c.l.b16 %v651
        %v2829 = vunpack.c.h.b16 %v651
        %v2830 = vunpack.c.l.b16 %v652
        %v2831 = vunpack.c.h.b16 %v652
        %v2832 = vunpack.c.l.b16 %v653
        %v2833 = vunpack.c.h.b16 %v653
        %v2834 = vunpack.c.l.b16 %v654
        %v2835 = vunpack.c.h.b16 %v654
        %v2836 = vunpack.c.l.b16 %v655
        %v2837 = vunpack.c.h.b16 %v655
        %v2838 = vunpack.c.l.b16 %v656
        %v2839 = vunpack.c.h.b16 %v656
        %v2840 = vunpack.c.l.b16 %v657
        %v2841 = vunpack.c.h.b16 %v657
        %v2842 = vunpack.c.l.b16 %v658
        %v2843 = vunpack.c.h.b16 %v658
        %v2844 = vunpack.c.l.b16 %v659
        %v2845 = vunpack.c.h.b16 %v659
        %v2846 = vunpack.c.l.b16 %v660
        %v2847 = vunpack.c.h.b16 %v660
        %v2848 = vunpack.c.l.b16 %v661
        %v2849 = vunpack.c.h.b16 %v661
        %v2850 = vunpack.c.l.b16 %v662
        %v2851 = vunpack.c.h.b16 %v662
        %v2852 = vunpack.c.l.b16 %v663
        %v2853 = vunpack.c.h.b16 %v663
        %v2854 = vunpack.c.l.b16 %v664
        %v2855 = vunpack.c.h.b16 %v664
        %v2856 = vunpack.c.l.b16 %v665
        %v2857 = vunpack.c.h.b16 %v665
        %v2858 = vunpack.c.l.b16 %v666
        %v2859 = vunpack.c.h.b16 %v666
        %v2860 = vunpack.c.l.b16 %v667
        %v2861 = vunpack.c.h.b16 %v667
        %v2862 = vunpack.c.l.b16 %v668
        %v2863 = vunpack.c.h.b16 %v668
        %v2864 = vunpack.c.l.b16 %v669
        %v2865 = vunpack.c.h.b16 %v669
        %v2866 = vunpack.c.l.b16 %v670
        %v2867 = vunpack.c.h.b16 %v670
        %v2868 = vunpack.c.l.b16 %v671
        %v2869 = vunpack.c.h.b16 %v671
        %v2870 = vunpack.c.l.b16 %v672
        %v2871 = vunpack.c.h.b16 %v672
        %v2872 = vunpack.c.l.b16 %v673
        %v2873 = vunpack.c.h.b16 %v673
        %v2874 = vunpack.c.l.b16 %v674
        %v2875 = vunpack.c.h.b16 %v674
        %v2876 = vunpack.c.l.b16 %v675
        %v2877 = vunpack.c.h.b16 %v675
        %v2878 = vunpack.c.l.b16 %v676
        %v2879 = vunpack.c.h.b16 %v676
        %v2880 = vunpack.c.l.b16 %v677
        %v2881 = vunpack.c.h.b16 %v677
        %v2882 = vunpack.c.l.b16 %v678
        %v2883 = vunpack.c.h.b16 %v678
        %v2884 = vunpack.c.l.b16 %v679
        %v2885 = vunpack.c.h.b16 %v679
        %v2886 = vunpack.c.l.b16 %v680
        %v2887 = vunpack.c.h.b16 %v680
        %v2888 = vunpack.c.l.b16 %v681
        %v2889 = vunpack.c.h.b16 %v681
        %v2890 = vunpack.c.l.b16 %v682
        %v2891 = vunpack.c.h.b16 %v682
        %v2892 = vunpack.c.l.b16 %v683
        %v2893 = vunpack.c.h.b16 %v683
        %v2894 = vunpack.c.l.b16 %v684
        %v2895 = vunpack.c.h.b16 %v684
        %v2896 = vunpack.c.l.b16 %v685
        %v2897 = vunpack.c.h.b16 %v685
        %v2898 = vunpack.c.l.b16 %v686
        %v2899 = vunpack.c.h.b16 %v686
        %v2900 = vunpack.c.l.b16 %v687
        %v2901 = vunpack.c.h.b16 %v687
        %v2902 = vunpack.c.l.b16 %v688
        %v2903 = vunpack.c.h.b16 %v688
        %v2904 = vunpack.c.l.b16 %v689
        %v2905 = vunpack.c.h.b16 %v689
        %v2906 = vunpack.c.l.b16 %v690
        %v2907 = vunpack.c.h.b16 %v690
        %v2908 = vunpack.c.l.b16 %v691
        %v2909 = vunpack.c.h.b16 %v691
        %v2910 = vunpack.c.l.b16 %v692
        %v2911 = vunpack.c.h.b16 %v692
        %v2912 = vunpack.c.l.b16 %v693
        %v2913 = vunpack.c.h.b16 %v693
        %v2914 = vunpack.c.l.b16 %v694
        %v2915 = vunpack.c.h.b16 %v694
        %v2916 = vunpack.c.l.b16 %v695
        %v2917 = vunpack.c.h.b16 %v695
        %v2918 = vunpack.c.l.b16 %v696
        %v2919 = vunpack.c.h.b16 %v696
        %v2920 = vunpack.c.l.b16 %v697
        %v2921 = vunpack.c.h.b16 %v697
        %v2922 = vunpack.c.l.b16 %v698
        %v2923 = vunpack.c.h.b16 %v698
        %v2924 = vunpack.c.l.b16 %v699
        %v2925 = vunpack.c.h.b16 %v699
        %v2926 = vunpack.c.l.b16 %v700
        %v2927 = vunpack.c.h.b16 %v700
        %v2928 = vunpack.c.l.b16 %v701
        %v2929 = vunpack.c.h.b16 %v701
        %v2930 = vunpack.c.l.b16 %v702
        %v2931 = vunpack.c.h.b16 %v702
        %v2932 = vunpack.c.l.b16 %v703
        %v2933 = vunpack.c.h.b16 %v703
        %v2934 = vunpack.c.l.b16 %v704
        %v2935 = vunpack.c.h.b16 %v704
        %v2936 = vunpack.c.l.b16 %v705
        %v2937 = vunpack.c.h.b16 %v705
        %v2938 = vunpack.c.l.b16 %v706
        %v2939 = vunpack.c.h.b16 %v706
        %v2940 = vunpack.c.l.b16 %v707
        %v2941 = vunpack.c.h.b16 %v707
        %v2942 = vunpack.c.l.b16 %v708
        %v2943 = vunpack.c.h.b16 %v708
        %v2944 = vunpack.c.l.b16 %v709
        %v2945 = vunpack.c.h.b16 %v709
        %v2946 = vunpack.c.l.b16 %v710
        %v2947 = vunpack.c.h.b16 %v710
        %v2948 = vunpack.c.l.b16 %v711
        %v2949 = vunpack.c.h.b16 %v711
        %v2950 = vunpack.c.l.b16 %v712
        %v2951 = vunpack.c.h.b16 %v712
        %v2952 = vunpack.c.l.b16 %v713
        %v2953 = vunpack.c.h.b16 %v713
        %v2954 = vunpack.c.l.b16 %v714
        %v2955 = vunpack.c.h.b16 %v714
        %v2956 = vunpack.c.l.b16 %v715
        %v2957 = vunpack.c.h.b16 %v715
        %v2958 = vunpack.c.l.b16 %v716
        %v2959 = vunpack.c.h.b16 %v716
        %v2960 = vunpack.c.l.b16 %v717
        %v2961 = vunpack.c.h.b16 %v717
        %v2962 = vunpack.c.l.b16 %v718
        %v2963 = vunpack.c.h.b16 %v718
        %v2964 = vunpack.c.l.b16 %v719
        %v2965 = vunpack.c.h.b16 %v719
        %v2966 = vunpack.c.l.b16 %v720
        %v2967 = vunpack.c.h.b16 %v720
        %v2968 = vunpack.c.l.b16 %v721
        %v2969 = vunpack.c.h.b16 %v721
        %v2970 = vunpack.c.l.b16 %v722
        %v2971 = vunpack.c.h.b16 %v722
        %v2972 = vunpack.c.l.b16 %v723
        %v2973 = vunpack.c.h.b16 %v723
        %v2974 = vunpack.c.l.b16 %v724
        %v2975 = vunpack.c.h.b16 %v724
        %v2976 = vunpack.c.l.b16 %v725
        %v2977 = vunpack.c.h.b16 %v725
        %v2978 = vunpack.c.l.b16 %v726
        %v2979 = vunpack.c.h.b16 %v726
        %v2980 = vunpack.c.l.b16 %v727
        %v2981 = vunpack.c.h.b16 %v727
        %v2982 = vunpack.c.l.b16 %v728
        %v2983 = vunpack.c.h.b16 %v728
        %v2984 = vunpack.c.l.b16 %v729
        %v2985 = vunpack.c.h.b16 %v729
        %v2986 = vunpack.c.l.b16 %v730
        %v2987 = vunpack.c.h.b16 %v730
        %v2988 = vunpack.c.l.b16 %v731
        %v2989 = vunpack.c.h.b16 %v731
        %v2990 = vunpack.c.l.b16 %v732
        %v2991 = vunpack.c.h.b16 %v732
        %v2992 = vunpack.c.l.b16 %v733
        %v2993 = vunpack.c.h.b16 %v733
        %v2994 = vunpack.c.l.b16 %v734
        %v2995 = vunpack.c.h.b16 %v734
        %v2996 = vunpack.c.l.b16 %v735
        %v2997 = vunpack.c.h.b16 %v735
        %v2998 = vunpack.c.l.b16 %v736
        %v2999 = vunpack.c.h.b16 %v736
        %v3000 = vunpack.c.l.b16 %v737
        %v3001 = vunpack.c.h.b16 %v737
        %v3002 = vunpack.c.l.b16 %v738
        %v3003 = vunpack.c.h.b16 %v738
        %v3004 = vunpack.c.l.b16 %v739
        %v3005 = vunpack.c.h.b16 %v739
        %v3006 = vunpack.c.l.b16 %v740
        %v3007 = vunpack.c.h.b16 %v740
        %v3008 = vunpack.c.l.b16 %v741
        %v3009 = vunpack.c.h.b16 %v741
        %v3010 = vunpack.c.l.b16 %v742
        %v3011 = vunpack.c.h.b16 %v742
        %v3012 = vunpack.c.l.b16 %v743
        %v3013 = vunpack.c.h.b16 %v743
        %v3014 = vunpack.c.l.b16 %v744
        %v3015 = vunpack.c.h.b16 %v744
        %v3016 = vunpack.c.l.b16 %v745
        %v3017 = vunpack.c.h.b16 %v745
        %v3018 = vunpack.c.l.b16 %v746
        %v3019 = vunpack.c.h.b16 %v746
        %v3020 = vunpack.c.l.b16 %v747
        %v3021 = vunpack.c.h.b16 %v747
        %v3022 = vunpack.c.l.b16 %v748
        %v3023 = vunpack.c.h.b16 %v748
        %v3024 = vunpack.c.l.b16 %v749
        %v3025 = vunpack.c.h.b16 %v749
        %v3026 = vunpack.c.l.b16 %v750
        %v3027 = vunpack.c.h.b16 %v750
        %v3028 = vunpack.c.l.b16 %v751
        %v3029 = vunpack.c.h.b16 %v751
        %v3030 = vunpack.c.l.b16 %v752
        %v3031 = vunpack.c.h.b16 %v752
        %v3032 = vunpack.c.l.b16 %v753
        %v3033 = vunpack.c.h.b16 %v753
        %v3034 = vunpack.c.l.b16 %v754
        %v3035 = vunpack.c.h.b16 %v754
        %v3036 = vunpack.c.l.b16 %v755
        %v3037 = vunpack.c.h.b16 %v755
        %v3038 = vunpack.c.l.b16 %v756
        %v3039 = vunpack.c.h.b16 %v756
        %v3040 = vunpack.c.l.b16 %v757
        %v3041 = vunpack.c.h.b16 %v757
        %v3042 = vunpack.c.l.b16 %v758
        %v3043 = vunpack.c.h.b16 %v758
        %v3044 = vunpack.c.l.b16 %v759
        %v3045 = vunpack.c.h.b16 %v759
        %v3046 = vunpack.c.l.b16 %v760
        %v3047 = vunpack.c.h.b16 %v760
        %v3048 = vunpack.c.l.b16 %v761
        %v3049 = vunpack.c.h.b16 %v761
        %v3050 = vunpack.c.l.b16 %v762
        %v3051 = vunpack.c.h.b16 %v762
        %v3052 = vunpack.c.l.b16 %v763
        %v3053 = vunpack.c.h.b16 %v763
        %v3054 = vunpack.c.l.b16 %v764
        %v3055 = vunpack.c.h.b16 %v764
        %v3056 = vunpack.c.l.b16 %v765
        %v3057 = vunpack.c.h.b16 %v765
        %v3058 = vunpack.c.l.b16 %v766
        %v3059 = vunpack.c.h.b16 %v766
        %v3060 = vunpack.c.l.b16 %v767
        %v3061 = vunpack.c.h.b16 %v767
        %v3062 = vunpack.c.l.b16 %v768
        %v3063 = vunpack.c.h.b16 %v768
        %v3064 = vunpack.c.l.b16 %v769
        %v3065 = vunpack.c.h.b16 %v769
        %v3066 = vunpack.c.l.b16 %v770
        %v3067 = vunpack.c.h.b16 %v770
        %v3068 = vunpack.c.l.b16 %v771
        %v3069 = vunpack.c.h.b16 %v771
        %v3070 = vunpack.c.l.b16 %v772
        %v3071 = vunpack.c.h.b16 %v772
        %v3072 = vunpack.c.l.b16 %v773
        %v3073 = vunpack.c.h.b16 %v773
        %v3074 = vunpack.c.l.b16 %v774
        %v3075 = vunpack.c.h.b16 %v774
        %v3076 = vunpack.c.l.b16 %v775
        %v3077 = vunpack.c.h.b16 %v775
        %v3078 = vunpack.c.l.b16 %v776
        %v3079 = vunpack.c.h.b16 %v776
        %v3080 = vunpack.c.l.b16 %v777
        %v3081 = vunpack.c.h.b16 %v777
        %v3082 = vunpack.c.l.b16 %v778
        %v3083 = vunpack.c.h.b16 %v778
        %v3084 = vunpack.c.l.b16 %v779
        %v3085 = vunpack.c.h.b16 %v779
        %v3086 = vunpack.c.l.b16 %v780
        %v3087 = vunpack.c.h.b16 %v780
        %v3088 = vunpack.c.l.b16 %v781
        %v3089 = vunpack.c.h.b16 %v781
        %v3090 = vunpack.c.l.b16 %v782
        %v3091 = vunpack.c.h.b16 %v782
        %v3092 = vunpack.c.l.b16 %v783
        %v3093 = vunpack.c.h.b16 %v783
        %v3094 = vunpack.c.l.b16 %v784
        %v3095 = vunpack.c.h.b16 %v784
        %v3096 = vunpack.c.l.b16 %v785
        %v3097 = vunpack.c.h.b16 %v785
        %v3098 = vunpack.c.l.b16 %v786
        %v3099 = vunpack.c.h.b16 %v786
        %v3100 = vunpack.c.l.b16 %v787
        %v3101 = vunpack.c.h.b16 %v787
        %v3102 = vunpack.c.l.b16 %v788
        %v3103 = vunpack.c.h.b16 %v788
        %v3104 = vunpack.c.l.b16 %v789
        %v3105 = vunpack.c.h.b16 %v789
        %v3106 = vunpack.c.l.b16 %v790
        %v3107 = vunpack.c.h.b16 %v790
        %v3108 = vunpack.c.l.b16 %v791
        %v3109 = vunpack.c.h.b16 %v791
        %v3110 = vunpack.c.l.b16 %v792
        %v3111 = vunpack.c.h.b16 %v792
        %v3112 = vunpack.c.l.b16 %v793
        %v3113 = vunpack.c.h.b16 %v793
        %v3114 = vunpack.c.l.b16 %v794
        %v3115 = vunpack.c.h.b16 %v794
        %v3116 = vunpack.c.l.b16 %v795
        %v3117 = vunpack.c.h.b16 %v795
        %v3118 = vunpack.c.l.b16 %v796
        %v3119 = vunpack.c.h.b16 %v796
        %v3120 = vunpack.c.l.b16 %v797
        %v3121 = vunpack.c.h.b16 %v797
        %v3122 = vunpack.c.l.b16 %v798
        %v3123 = vunpack.c.h.b16 %v798
        %v3124 = vunpack.c.l.b16 %v799
        %v3125 = vunpack.c.h.b16 %v799
        %v3126 = vunpack.c.l.b16 %v800
        %v3127 = vunpack.c.h.b16 %v800
        %v3128 = vunpack.c.l.b16 %v801
        %v3129 = vunpack.c.h.b16 %v801
        %v3130 = vunpack.c.l.b16 %v802
        %v3131 = vunpack.c.h.b16 %v802
        %v3132 = vunpack.c.l.b16 %v803
        %v3133 = vunpack.c.h.b16 %v803
        %v3134 = vunpack.c.l.b16 %v804
        %v3135 = vunpack.c.h.b16 %v804
        %v3136 = vunpack.c.l.b16 %v805
        %v3137 = vunpack.c.h.b16 %v805
        %v3138 = vunpack.c.l.b16 %v806
        %v3139 = vunpack.c.h.b16 %v806
        %v3140 = vunpack.c.l.b16 %v807
        %v3141 = vunpack.c.h.b16 %v807
        %v3142 = vunpack.c.l.b16 %v808
        %v3143 = vunpack.c.h.b16 %v808
        %v3144 = vunpack.c.l.b16 %v809
        %v3145 = vunpack.c.h.b16 %v809
        %v3146 = vunpack.c.l.b16 %v810
        %v3147 = vunpack.c.h.b16 %v810
        %v3148 = vunpack.c.l.b16 %v811
        %v3149 = vunpack.c.h.b16 %v811
        %v3150 = vunpack.c.l.b16 %v812
        %v3151 = vunpack.c.h.b16 %v812
        %v3152 = vunpack.c.l.b16 %v813
        %v3153 = vunpack.c.h.b16 %v813
        %v3154 = vunpack.c.l.b16 %v814
        %v3155 = vunpack.c.h.b16 %v814
        %v3156 = vunpack.c.l.b16 %v815
        %v3157 = vunpack.c.h.b16 %v815
        %v3158 = vunpack.c.l.b16 %v816
        %v3159 = vunpack.c.h.b16 %v816
        %v3160 = vunpack.c.l.b16 %v817
        %v3161 = vunpack.c.h.b16 %v817
        %v3162 = vunpack.c.l.b16 %v818
        %v3163 = vunpack.c.h.b16 %v818
        %v3164 = vunpack.c.l.b16 %v819
        %v3165 = vunpack.c.h.b16 %v819
        %v3166 = vunpack.c.l.b16 %v820
        %v3167 = vunpack.c.h.b16 %v820
        %v3168 = vunpack.c.l.b16 %v821
        %v3169 = vunpack.c.h.b16 %v821
        %v3170 = vunpack.c.l.b16 %v822
        %v3171 = vunpack.c.h.b16 %v822
        %v3172 = vunpack.c.l.b16 %v823
        %v3173 = vunpack.c.h.b16 %v823
        %v3174 = vunpack.c.l.b16 %v824
        %v3175 = vunpack.c.h.b16 %v824
        %v3176 = vunpack.c.l.b16 %v825
        %v3177 = vunpack.c.h.b16 %v825
        %v3178 = vunpack.c.l.b16 %v826
        %v3179 = vunpack.c.h.b16 %v826
        %v3180 = vunpack.c.l.b16 %v827
        %v3181 = vunpack.c.h.b16 %v827
        %v3182 = vunpack.c.l.b16 %v828
        %v3183 = vunpack.c.h.b16 %v828
        %v3184 = vunpack.c.l.b16 %v829
        %v3185 = vunpack.c.h.b16 %v829
        %v3186 = vunpack.c.l.b16 %v830
        %v3187 = vunpack.c.h.b16 %v830
        %v3188 = vunpack.c.l.b16 %v831
        %v3189 = vunpack.c.h.b16 %v831
        %v3190 = vunpack.c.l.b16 %v832
        %v3191 = vunpack.c.h.b16 %v832
        %v3192 = vunpack.c.l.b16 %v833
        %v3193 = vunpack.c.h.b16 %v833
        %v3194 = vunpack.c.l.b16 %v834
        %v3195 = vunpack.c.h.b16 %v834
        %v3196 = vunpack.c.l.b16 %v835
        %v3197 = vunpack.c.h.b16 %v835
        %v3198 = vunpack.c.l.b16 %v836
        %v3199 = vunpack.c.h.b16 %v836
        %v3200 = vunpack.c.l.b16 %v837
        %v3201 = vunpack.c.h.b16 %v837
        %v3202 = vunpack.c.l.b16 %v838
        %v3203 = vunpack.c.h.b16 %v838
        %v3204 = vunpack.c.l.b16 %v839
        %v3205 = vunpack.c.h.b16 %v839
        %v3206 = vunpack.c.l.b16 %v840
        %v3207 = vunpack.c.h.b16 %v840
        %v3208 = vunpack.c.l.b16 %v841
        %v3209 = vunpack.c.h.b16 %v841
        %v3210 = vunpack.c.l.b16 %v842
        %v3211 = vunpack.c.h.b16 %v842
        %v3212 = vunpack.c.l.b16 %v843
        %v3213 = vunpack.c.h.b16 %v843
        %v3214 = vunpack.c.l.b16 %v844
        %v3215 = vunpack.c.h.b16 %v844
        %v3216 = vunpack.c.l.b16 %v845
        %v3217 = vunpack.c.h.b16 %v845
        %v3218 = vunpack.c.l.b16 %v846
        %v3219 = vunpack.c.h.b16 %v846
        %v3220 = vunpack.c.l.b16 %v847
        %v3221 = vunpack.c.h.b16 %v847
        %v3222 = vunpack.c.l.b16 %v848
        %v3223 = vunpack.c.h.b16 %v848
        %v3224 = vunpack.c.l.b16 %v849
        %v3225 = vunpack.c.h.b16 %v849
        %v3226 = vunpack.c.l.b16 %v850
        %v3227 = vunpack.c.h.b16 %v850
        %v3228 = vunpack.c.l.b16 %v851
        %v3229 = vunpack.c.h.b16 %v851
        %v3230 = vunpack.c.l.b16 %v852
        %v3231 = vunpack.c.h.b16 %v852
        %v3232 = vunpack.c.l.b16 %v853
        %v3233 = vunpack.c.h.b16 %v853
        %v3234 = vunpack.c.l.b16 %v854
        %v3235 = vunpack.c.h.b16 %v854
        %v3236 = vunpack.c.l.b16 %v855
        %v3237 = vunpack.c.h.b16 %v855
        %v3238 = vunpack.c.l.b16 %v856
        %v3239 = vunpack.c.h.b16 %v856
        %v3240 = vunpack.c.l.b16 %v857
        %v3241 = vunpack.c.h.b16 %v857
        %v3242 = vunpack.c.l.b16 %v858
        %v3243 = vunpack.c.h.b16 %v858
        %v3244 = vunpack.c.l.b16 %v859
        %v3245 = vunpack.c.h.b16 %v859
        %v3246 = vunpack.c.l.b16 %v860
        %v3247 = vunpack.c.h.b16 %v860
        %v3248 = vunpack.c.l.b16 %v861
        %v3249 = vunpack.c.h.b16 %v861
        %v3250 = vunpack.c.l.b16 %v862
        %v3251 = vunpack.c.h.b16 %v862
        %v3252 = vunpack.c.l.b16 %v863
        %v3253 = vunpack.c.h.b16 %v863
        %v3254 = vunpack.c.l.b16 %v864
        %v3255 = vunpack.c.h.b16 %v864
        %v3256 = vunpack.c.l.b16 %v865
        %v3257 = vunpack.c.h.b16 %v865
        %v3258 = vunpack.c.l.b16 %v866
        %v3259 = vunpack.c.h.b16 %v866
        %v3260 = vunpack.c.l.b16 %v867
        %v3261 = vunpack.c.h.b16 %v867
        %v3262 = vunpack.c.l.b16 %v868
        %v3263 = vunpack.c.h.b16 %v868
        %v3264 = vunpack.c.l.b16 %v869
        %v3265 = vunpack.c.h.b16 %v869
        %v3266 = vunpack.c.l.b16 %v870
        %v3267 = vunpack.c.h.b16 %v870
        %v3268 = vunpack.c.l.b16 %v871
        %v3269 = vunpack.c.h.b16 %v871
        %v3270 = vunpack.c.l.b16 %v872
        %v3271 = vunpack.c.h.b16 %v872
        %v3272 = vunpack.c.l.b16 %v873
        %v3273 = vunpack.c.h.b16 %v873
        %v3274 = vunpack.c.l.b16 %v874
        %v3275 = vunpack.c.h.b16 %v874
        %v3276 = vunpack.c.l.b16 %v875
        %v3277 = vunpack.c.h.b16 %v875
        %v3278 = vunpack.c.l.b16 %v876
        %v3279 = vunpack.c.h.b16 %v876
        %v3280 = vunpack.c.l.b16 %v877
        %v3281 = vunpack.c.h.b16 %v877
        %v3282 = vunpack.c.l.b16 %v878
        %v3283 = vunpack.c.h.b16 %v878
        %v3284 = vunpack.c.l.b16 %v879
        %v3285 = vunpack.c.h.b16 %v879
        %v3286 = vunpack.c.l.b16 %v880
        %v3287 = vunpack.c.h.b16 %v880
        %v3288 = vunpack.c.l.b16 %v881
        %v3289 = vunpack.c.h.b16 %v881
        %v3290 = vunpack.c.l.b16 %v882
        %v3291 = vunpack.c.h.b16 %v882
        %v3292 = vunpack.c.l.b16 %v883
        %v3293 = vunpack.c.h.b16 %v883
        %v3294 = vunpack.c.l.b16 %v884
        %v3295 = vunpack.c.h.b16 %v884
        %v3296 = vunpack.c.l.b16 %v885
        %v3297 = vunpack.c.h.b16 %v885
        %v3298 = vunpack.c.l.b16 %v886
        %v3299 = vunpack.c.h.b16 %v886
        %v3300 = vunpack.c.l.b16 %v887
        %v3301 = vunpack.c.h.b16 %v887
        %v3302 = vunpack.c.l.b16 %v888
        %v3303 = vunpack.c.h.b16 %v888
        %v3304 = vunpack.c.l.b16 %v889
        %v3305 = vunpack.c.h.b16 %v889
        %v3306 = vunpack.c.l.b16 %v890
        %v3307 = vunpack.c.h.b16 %v890
        %v3308 = vunpack.c.l.b16 %v891
        %v3309 = vunpack.c.h.b16 %v891
        %v3310 = vunpack.c.l.b16 %v892
        %v3311 = vunpack.c.h.b16 %v892
        %v3312 = vunpack.c.l.b16 %v893
        %v3313 = vunpack.c.h.b16 %v893
        %v3314 = vunpack.c.l.b16 %v894
        %v3315 = vunpack.c.h.b16 %v894
        %v3316 = vunpack.c.l.b16 %v895
        %v3317 = vunpack.c.h.b16 %v895
        %v3318 = vunpack.c.l.b16 %v896
        %v3319 = vunpack.c.h.b16 %v896
        %v3320 = vunpack.c.l.b16 %v897
        %v3321 = vunpack.c.h.b16 %v897
        %v3322 = vunpack.c.l.b16 %v898
        %v3323 = vunpack.c.h.b16 %v898
        %v3324 = vunpack.c.l.b16 %v899
        %v3325 = vunpack.c.h.b16 %v899
        %v3326 = vunpack.c.l.b16 %v900
        %v3327 = vunpack.c.h.b16 %v900
        %v3328 = vunpack.c.l.b16 %v901
        %v3329 = vunpack.c.h.b16 %v901
        %v3330 = vunpack.c.l.b16 %v902
        %v3331 = vunpack.c.h.b16 %v902
        %v3332 = vunpack.c.l.b16 %v903
        %v3333 = vunpack.c.h.b16 %v903
        %v3334 = vunpack.c.l.b16 %v904
        %v3335 = vunpack.c.h.b16 %v904
        %v3336 = vunpack.c.l.b16 %v905
        %v3337 = vunpack.c.h.b16 %v905
        %v3338 = vunpack.c.l.b16 %v906
        %v3339 = vunpack.c.h.b16 %v906
        %v3340 = vunpack.c.l.b16 %v907
        %v3341 = vunpack.c.h.b16 %v907
        %v3342 = vunpack.c.l.b16 %v908
        %v3343 = vunpack.c.h.b16 %v908
        %v3344 = vunpack.c.l.b16 %v909
        %v3345 = vunpack.c.h.b16 %v909
        %v3346 = vunpack.c.l.b16 %v910
        %v3347 = vunpack.c.h.b16 %v910
        %v3348 = vunpack.c.l.b16 %v911
        %v3349 = vunpack.c.h.b16 %v911
        %v3350 = vunpack.c.l.b16 %v912
        %v3351 = vunpack.c.h.b16 %v912
        %v3352 = vunpack.c.l.b16 %v913
        %v3353 = vunpack.c.h.b16 %v913
        %v3354 = vunpack.c.l.b16 %v914
        %v3355 = vunpack.c.h.b16 %v914
        %v3356 = vunpack.c.l.b16 %v915
        %v3357 = vunpack.c.h.b16 %v915
        %v3358 = vunpack.c.l.b16 %v916
        %v3359 = vunpack.c.h.b16 %v916
        %v3360 = vunpack.c.l.b16 %v917
        %v3361 = vunpack.c.h.b16 %v917
        %v3362 = vunpack.c.l.b16 %v918
        %v3363 = vunpack.c.h.b16 %v918
        %v3364 = vunpack.c.l.b16 %v919
        %v3365 = vunpack.c.h.b16 %v919
        %v3366 = vunpack.c.l.b16 %v920
        %v3367 = vunpack.c.h.b16 %v920
        %v3368 = vunpack.c.l.b16 %v921
        %v3369 = vunpack.c.h.b16 %v921
        %v3370 = vunpack.c.l.b16 %v922
        %v3371 = vunpack.c.h.b16 %v922
        %v3372 = vunpack.c.l.b16 %v923
        %v3373 = vunpack.c.h.b16 %v923
        %v3374 = vunpack.c.l.b16 %v924
        %v3375 = vunpack.c.h.b16 %v924
        %v3376 = vunpack.c.l.b16 %v925
        %v3377 = vunpack.c.h.b16 %v925
        %v3378 = vunpack.c.l.b16 %v926
        %v3379 = vunpack.c.h.b16 %v926
        %v3380 = vunpack.c.l.b16 %v927
        %v3381 = vunpack.c.h.b16 %v927
        %v3382 = vunpack.c.l.b16 %v928
        %v3383 = vunpack.c.h.b16 %v928
        %v3384 = vunpack.c.l.b16 %v929
        %v3385 = vunpack.c.h.b16 %v929
        %v3386 = vunpack.c.l.b16 %v930
        %v3387 = vunpack.c.h.b16 %v930
        %v3388 = vunpack.c.l.b16 %v931
        %v3389 = vunpack.c.h.b16 %v931
        %v3390 = vunpack.c.l.b16 %v932
        %v3391 = vunpack.c.h.b16 %v932
        %v3392 = vunpack.c.l.b16 %v933
        %v3393 = vunpack.c.h.b16 %v933
        %v3394 = vunpack.c.l.b16 %v934
        %v3395 = vunpack.c.h.b16 %v934
        %v3396 = vunpack.c.l.b16 %v935
        %v3397 = vunpack.c.h.b16 %v935
        %v3398 = vunpack.c.l.b16 %v936
        %v3399 = vunpack.c.h.b16 %v936
        %v3400 = vunpack.c.l.b16 %v937
        %v3401 = vunpack.c.h.b16 %v937
        %v3402 = vunpack.c.l.b16 %v938
        %v3403 = vunpack.c.h.b16 %v938
        %v3404 = vunpack.c.l.b16 %v939
        %v3405 = vunpack.c.h.b16 %v939
        %v3406 = vunpack.c.l.b16 %v940
        %v3407 = vunpack.c.h.b16 %v940
        %v3408 = vunpack.c.l.b16 %v941
        %v3409 = vunpack.c.h.b16 %v941
        %v3410 = vunpack.c.l.b16 %v942
        %v3411 = vunpack.c.h.b16 %v942
        %v3412 = vunpack.c.l.b16 %v943
        %v3413 = vunpack.c.h.b16 %v943
        %v3414 = vunpack.c.l.b16 %v944
        %v3415 = vunpack.c.h.b16 %v944
        %v3416 = vunpack.c.l.b16 %v945
        %v3417 = vunpack.c.h.b16 %v945
        %v3418 = vunpack.c.l.b16 %v946
        %v3419 = vunpack.c.h.b16 %v946
        %v3420 = vunpack.c.l.b16 %v947
        %v3421 = vunpack.c.h.b16 %v947
        %v3422 = vunpack.c.l.b16 %v948
        %v3423 = vunpack.c.h.b16 %v948
        %v3424 = vunpack.c.l.b16 %v949
        %v3425 = vunpack.c.h.b16 %v949
        %v3426 = vunpack.c.l.b16 %v950
        %v3427 = vunpack.c.h.b16 %v950
        %v3428 = vunpack.c.l.b16 %v951
        %v3429 = vunpack.c.h.b16 %v951
        %v3430 = vunpack.c.l.b16 %v952
        %v3431 = vunpack.c.h.b16 %v952
        %v3432 = vunpack.c.l.b16 %v953
        %v3433 = vunpack.c.h.b16 %v953
        %v3434 = vunpack.c.l.b16 %v954
        %v3435 = vunpack.c.h.b16 %v954
        %v3436 = vunpack.c.l.b16 %v955
        %v3437 = vunpack.c.h.b16 %v955
        %v3438 = vunpack.c.l.b16 %v956
        %v3439 = vunpack.c.h.b16 %v956
        %v3440 = vunpack.c.l.b16 %v957
        %v3441 = vunpack.c.h.b16 %v957
        %v3442 = vunpack.c.l.b16 %v958
        %v3443 = vunpack.c.h.b16 %v958
        %v3444 = vunpack.c.l.b16 %v959
        %v3445 = vunpack.c.h.b16 %v959
        %v3446 = vunpack.c.l.b16 %v960
        %v3447 = vunpack.c.h.b16 %v960
        %v3448 = vunpack.c.l.b16 %v961
        %v3449 = vunpack.c.h.b16 %v961
        %v3450 = vunpack.c.l.b16 %v962
        %v3451 = vunpack.c.h.b16 %v962
        %v3452 = vunpack.c.l.b16 %v963
        %v3453 = vunpack.c.h.b16 %v963
        %v3454 = vunpack.c.l.b16 %v964
        %v3455 = vunpack.c.h.b16 %v964
        %v3456 = vunpack.c.l.b16 %v965
        %v3457 = vunpack.c.h.b16 %v965
        %v3458 = vunpack.c.l.b16 %v966
        %v3459 = vunpack.c.h.b16 %v966
        %v3460 = vunpack.c.l.b16 %v967
        %v3461 = vunpack.c.h.b16 %v967
        %v3462 = vunpack.c.l.b16 %v968
        %v3463 = vunpack.c.h.b16 %v968
        %v3464 = vunpack.c.l.b16 %v969
        %v3465 = vunpack.c.h.b16 %v969
        %v3466 = vunpack.c.l.b16 %v970
        %v3467 = vunpack.c.h.b16 %v970
        %v3468 = vunpack.c.l.b16 %v971
        %v3469 = vunpack.c.h.b16 %v971
        %v3470 = vunpack.c.l.b16 %v972
        %v3471 = vunpack.c.h.b16 %v972
        %v3472 = vunpack.c.l.b16 %v973
        %v3473 = vunpack.c.h.b16 %v973
        %v3474 = vunpack.c.l.b16 %v974
        %v3475 = vunpack.c.h.b16 %v974
        %v3476 = vunpack.c.l.b16 %v975
        %v3477 = vunpack.c.h.b16 %v975
        %v3478 = vunpack.c.l.b16 %v976
        %v3479 = vunpack.c.h.b16 %v976
        %v3480 = vunpack.c.l.b16 %v977
        %v3481 = vunpack.c.h.b16 %v977
        %v3482 = vunpack.c.l.b16 %v978
        %v3483 = vunpack.c.h.b16 %v978
        %v3484 = vunpack.c.l.b16 %v979
        %v3485 = vunpack.c.h.b16 %v979
        %v3486 = vunpack.c.l.b16 %v980
        %v3487 = vunpack.c.h.b16 %v980
        %v3488 = vunpack.c.l.b16 %v981
        %v3489 = vunpack.c.h.b16 %v981
        %v3490 = vunpack.c.l.b16 %v982
        %v3491 = vunpack.c.h.b16 %v982
        %v3492 = vunpack.c.l.b16 %v983
        %v3493 = vunpack.c.h.b16 %v983
        %v3494 = vunpack.c.l.b16 %v984
        %v3495 = vunpack.c.h.b16 %v984
        %v3496 = vunpack.c.l.b16 %v985
        %v3497 = vunpack.c.h.b16 %v985
        %v3498 = vunpack.c.l.b16 %v986
        %v3499 = vunpack.c.h.b16 %v986
        %v3500 = vunpack.c.l.b16 %v987
        %v3501 = vunpack.c.h.b16 %v987
        %v3502 = vunpack.c.l.b16 %v988
        %v3503 = vunpack.c.h.b16 %v988
        %v3504 = vunpack.c.l.b16 %v989
        %v3505 = vunpack.c.h.b16 %v989
        %v3506 = vunpack.c.l.b16 %v990
        %v3507 = vunpack.c.h.b16 %v990
        %v3508 = vunpack.c.l.b16 %v991
        %v3509 = vunpack.c.h.b16 %v991
        %v3510 = vunpack.c.l.b16 %v992
        %v3511 = vunpack.c.h.b16 %v992
        %v3512 = vunpack.c.l.b16 %v993
        %v3513 = vunpack.c.h.b16 %v993
        %v3514 = vunpack.c.l.b16 %v994
        %v3515 = vunpack.c.h.b16 %v994
        %v3516 = vunpack.c.l.b16 %v995
        %v3517 = vunpack.c.h.b16 %v995
        %v3518 = vunpack.c.l.b16 %v996
        %v3519 = vunpack.c.h.b16 %v996
        %v3520 = vunpack.c.l.b16 %v997
        %v3521 = vunpack.c.h.b16 %v997
        %v3522 = vunpack.c.l.b16 %v998
        %v3523 = vunpack.c.h.b16 %v998
        %v3524 = vunpack.c.l.b16 %v999
        %v3525 = vunpack.c.h.b16 %v999
        %v3526 = vunpack.c.l.b16 %v1000
        %v3527 = vunpack.c.h.b16 %v1000
        %v3528 = vunpack.c.l.b16 %v1001
        %v3529 = vunpack.c.h.b16 %v1001
        %v3530 = vunpack.c.l.b16 %v1002
        %v3531 = vunpack.c.h.b16 %v1002
        %v3532 = vunpack.c.l.b16 %v1003
        %v3533 = vunpack.c.h.b16 %v1003
        %v3534 = vunpack.c.l.b16 %v1004
        %v3535 = vunpack.c.h.b16 %v1004
        %v3536 = vunpack.c.l.b16 %v1005
        %v3537 = vunpack.c.h.b16 %v1005
        %v3538 = vunpack.c.l.b16 %v1006
        %v3539 = vunpack.c.h.b16 %v1006
        %v3540 = vunpack.c.l.b16 %v1007
        %v3541 = vunpack.c.h.b16 %v1007
        %v3542 = vunpack.c.l.b16 %v1008
        %v3543 = vunpack.c.h.b16 %v1008
        %v3544 = vunpack.c.l.b16 %v1009
        %v3545 = vunpack.c.h.b16 %v1009
        %v3546 = vunpack.c.l.b16 %v1010
        %v3547 = vunpack.c.h.b16 %v1010
        %v3548 = vunpack.c.l.b16 %v1011
        %v3549 = vunpack.c.h.b16 %v1011
        %v3550 = vunpack.c.l.b16 %v1012
        %v3551 = vunpack.c.h.b16 %v1012
        %v3552 = vunpack.c.l.b16 %v1013
        %v3553 = vunpack.c.h.b16 %v1013
        %v3554 = vunpack.c.l.b16 %v1014
        %v3555 = vunpack.c.h.b16 %v1014
        %v3556 = vunpack.c.l.b16 %v1015
        %v3557 = vunpack.c.h.b16 %v1015
        %v3558 = vunpack.c.l.b16 %v1016
        %v3559 = vunpack.c.h.b16 %v1016
        %v3560 = vunpack.c.l.b16 %v1017
        %v3561 = vunpack.c.h.b16 %v1017
        %v3562 = vunpack.c.l.b16 %v1018
        %v3563 = vunpack.c.h.b16 %v1018
        %v3564 = vunpack.c.l.b16 %v1019
        %v3565 = vunpack.c.h.b16 %v1019
        %v3566 = vunpack.c.l.b16 %v1020
        %v3567 = vunpack.c.h.b16 %v1020
        %v3568 = vunpack.c.l.b16 %v1021
        %v3569 = vunpack.c.h.b16 %v1021
        %v3570 = vunpack.c.l.b16 %v1022
        %v3571 = vunpack.c.h.b16 %v1022
        %v3572 = vunpack.c.l.b16 %v1023
        %v3573 = vunpack.c.h.b16 %v1023
        %v3574 = vunpack.c.l.b16 %v1024
        %v3575 = vunpack.c.h.b16 %v1024
        %v3576 = vunpack.c.l.b16 %v1025
        %v3577 = vunpack.c.h.b16 %v1025
        %v3578 = vunpack.c.l.b16 %v1026
        %v3579 = vunpack.c.h.b16 %v1026
        %v3580 = vunpack.c.l.b16 %v1027
        %v3581 = vunpack.c.h.b16 %v1027
        %v3582 = vunpack.c.l.b16 %v1028
        %v3583 = vunpack.c.h.b16 %v1028
        %v3584 = vunpack.c.l.b16 %v1029
        %v3585 = vunpack.c.h.b16 %v1029
        %v3586 = vunpack.c.l.b16 %v1030
        %v3587 = vunpack.c.h.b16 %v1030
        %v3588 = vunpack.c.l.b16 %v1031
        %v3589 = vunpack.c.h.b16 %v1031
        %v3590 = vunpack.c.l.b16 %v1032
        %v3591 = vunpack.c.h.b16 %v1032
        %v3592 = vunpack.c.l.b16 %v1033
        %v3593 = vunpack.c.h.b16 %v1033
        %v3594 = vunpack.c.l.b16 %v1034
        %v3595 = vunpack.c.h.b16 %v1034
        %v3596 = vunpack.c.l.b16 %v1035
        %v3597 = vunpack.c.h.b16 %v1035
        %v3598 = vunpack.c.l.b16 %v1036
        %v3599 = vunpack.c.h.b16 %v1036
        %v3600 = vunpack.c.l.b16 %v1037
        %v3601 = vunpack.c.h.b16 %v1037
        %v3602 = vunpack.c.l.b16 %v1038
        %v3603 = vunpack.c.h.b16 %v1038
        %v3604 = vunpack.c.l.b16 %v1039
        %v3605 = vunpack.c.h.b16 %v1039
        %v3606 = vunpack.c.l.b16 %v1040
        %v3607 = vunpack.c.h.b16 %v1040
        %v3608 = vunpack.c.l.b16 %v1041
        %v3609 = vunpack.c.h.b16 %v1041
        %v3610 = vunpack.c.l.b16 %v1042
        %v3611 = vunpack.c.h.b16 %v1042
        %v3612 = vunpack.c.l.b16 %v1043
        %v3613 = vunpack.c.h.b16 %v1043
        %v3614 = vunpack.c.l.b16 %v1044
        %v3615 = vunpack.c.h.b16 %v1044
        %v3616 = vunpack.c.l.b16 %v1045
        %v3617 = vunpack.c.h.b16 %v1045
        %v3618 = vunpack.c.l.b16 %v1046
        %v3619 = vunpack.c.h.b16 %v1046
        %v3620 = vunpack.c.l.b16 %v1047
        %v3621 = vunpack.c.h.b16 %v1047
        %v3622 = vunpack.c.l.b16 %v1048
        %v3623 = vunpack.c.h.b16 %v1048
        %v3624 = vunpack.c.l.b16 %v1049
        %v3625 = vunpack.c.h.b16 %v1049
        %v3626 = vunpack.c.l.b16 %v1050
        %v3627 = vunpack.c.h.b16 %v1050
        %v3628 = vunpack.c.l.b16 %v1051
        %v3629 = vunpack.c.h.b16 %v1051
        %v3630 = vunpack.c.l.b16 %v1052
        %v3631 = vunpack.c.h.b16 %v1052
        %v3632 = vunpack.c.l.b16 %v1053
        %v3633 = vunpack.c.h.b16 %v1053
        %v3634 = vunpack.c.l.b16 %v1054
        %v3635 = vunpack.c.h.b16 %v1054
        %v3636 = vunpack.c.l.b16 %v1055
        %v3637 = vunpack.c.h.b16 %v1055
        %v3638 = vunpack.c.l.b16 %v1056
        %v3639 = vunpack.c.h.b16 %v1056
        %v3640 = vunpack.c.l.b16 %v1057
        %v3641 = vunpack.c.h.b16 %v1057
        %v3642 = vunpack.c.l.b16 %v1058
        %v3643 = vunpack.c.h.b16 %v1058
        %v3644 = vunpack.c.l.b16 %v1059
        %v3645 = vunpack.c.h.b16 %v1059
        %v3646 = vunpack.c.l.b16 %v1060
        %v3647 = vunpack.c.h.b16 %v1060
        %v3648 = vunpack.c.l.b16 %v1061
        %v3649 = vunpack.c.h.b16 %v1061
        %v3650 = vunpack.c.l.b16 %v1062
        %v3651 = vunpack.c.h.b16 %v1062
        %v3652 = vunpack.c.l.b16 %v1063
        %v3653 = vunpack.c.h.b16 %v1063
        %v3654 = vunpack.c.l.b16 %v1064
        %v3655 = vunpack.c.h.b16 %v1064
        %v3656 = vunpack.c.l.b16 %v1065
        %v3657 = vunpack.c.h.b16 %v1065
        %v3658 = vunpack.c.l.b16 %v1066
        %v3659 = vunpack.c.h.b16 %v1066
        %v3660 = vunpack.c.l.b16 %v1067
        %v3661 = vunpack.c.h.b16 %v1067
        %v3662 = vunpack.c.l.b16 %v1068
        %v3663 = vunpack.c.h.b16 %v1068
        %v3664 = vunpack.c.l.b16 %v1069
        %v3665 = vunpack.c.h.b16 %v1069
        %v3666 = vunpack.c.l.b16 %v1070
        %v3667 = vunpack.c.h.b16 %v1070
        %v3668 = vunpack.c.l.b16 %v1071
        %v3669 = vunpack.c.h.b16 %v1071
        %v3670 = vunpack.c.l.b16 %v1072
        %v3671 = vunpack.c.h.b16 %v1072
        %v3672 = vunpack.c.l.b16 %v1073
        %v3673 = vunpack.c.h.b16 %v1073
        %v3674 = vunpack.c.l.b16 %v1074
        %v3675 = vunpack.c.h.b16 %v1074
        %v3676 = vunpack.c.l.b16 %v1075
        %v3677 = vunpack.c.h.b16 %v1075
        %v3678 = vunpack.c.l.b16 %v1076
        %v3679 = vunpack.c.h.b16 %v1076
        %v3680 = vunpack.c.l.b16 %v1077
        %v3681 = vunpack.c.h.b16 %v1077
        %v3682 = vunpack.c.l.b16 %v1078
        %v3683 = vunpack.c.h.b16 %v1078
        %v3684 = vunpack.c.l.b16 %v1079
        %v3685 = vunpack.c.h.b16 %v1079
        %v3686 = vunpack.c.l.b16 %v1080
        %v3687 = vunpack.c.h.b16 %v1080
        %v3688 = vunpack.c.l.b16 %v1081
        %v3689 = vunpack.c.h.b16 %v1081
        %v3690 = vunpack.c.l.b16 %v1082
        %v3691 = vunpack.c.h.b16 %v1082
        %v3692 = vunpack.c.l.b16 %v1083
        %v3693 = vunpack.c.h.b16 %v1083
        %v3694 = vunpack.c.l.b16 %v1084
        %v3695 = vunpack.c.h.b16 %v1084
        %v3696 = vunpack.c.l.b16 %v1085
        %v3697 = vunpack.c.h.b16 %v1085
        %v3698 = vunpack.c.l.b16 %v1086
        %v3699 = vunpack.c.h.b16 %v1086
        %v3700 = vunpack.c.l.b16 %v1087
        %v3701 = vunpack.c.h.b16 %v1087
        %v3702 = vunpack.c.l.b16 %v1088
        %v3703 = vunpack.c.h.b16 %v1088
        %v3704 = vunpack.c.l.b16 %v1089
        %v3705 = vunpack.c.h.b16 %v1089
        %v3706 = vunpack.c.l.b16 %v1090
        %v3707 = vunpack.c.h.b16 %v1090
        %v3708 = vunpack.c.l.b16 %v1091
        %v3709 = vunpack.c.h.b16 %v1091
        %v3710 = vunpack.c.l.b16 %v1092
        %v3711 = vunpack.c.h.b16 %v1092
        %v3712 = vunpack.c.l.b16 %v1093
        %v3713 = vunpack.c.h.b16 %v1093
        %v3714 = vunpack.c.l.b16 %v1094
        %v3715 = vunpack.c.h.b16 %v1094
        %v3716 = vunpack.c.l.b16 %v1095
        %v3717 = vunpack.c.h.b16 %v1095
        %v3718 = vunpack.c.l.b16 %v1096
        %v3719 = vunpack.c.h.b16 %v1096
        %v3720 = vunpack.c.l.b16 %v1097
        %v3721 = vunpack.c.h.b16 %v1097
        %v3722 = vunpack.c.l.b16 %v1098
        %v3723 = vunpack.c.h.b16 %v1098
        %v3724 = vunpack.c.l.b16 %v1099
        %v3725 = vunpack.c.h.b16 %v1099
        %v3726 = vunpack.c.l.b16 %v1100
        %v3727 = vunpack.c.h.b16 %v1100
        %v3728 = vunpack.c.l.b16 %v1101
        %v3729 = vunpack.c.h.b16 %v1101
        %v3730 = vunpack.c.l.b16 %v1102
        %v3731 = vunpack.c.h.b16 %v1102
        %v3732 = vunpack.c.l.b16 %v1103
        %v3733 = vunpack.c.h.b16 %v1103
        %v3734 = vunpack.c.l.b16 %v1104
        %v3735 = vunpack.c.h.b16 %v1104
        %v3736 = vunpack.c.l.b16 %v1105
        %v3737 = vunpack.c.h.b16 %v1105
        %v3738 = vunpack.c.l.b16 %v1106
        %v3739 = vunpack.c.h.b16 %v1106
        %v3740 = vunpack.c.l.b16 %v1107
        %v3741 = vunpack.c.h.b16 %v1107
        %v3742 = vunpack.c.l.b16 %v1108
        %v3743 = vunpack.c.h.b16 %v1108
        %v3744 = vunpack.c.l.b16 %v1109
        %v3745 = vunpack.c.h.b16 %v1109
        %v3746 = vunpack.c.l.b16 %v1110
        %v3747 = vunpack.c.h.b16 %v1110
        %v3748 = vunpack.c.l.b16 %v1111
        %v3749 = vunpack.c.h.b16 %v1111
        %v3750 = vunpack.c.l.b16 %v1112
        %v3751 = vunpack.c.h.b16 %v1112
        %v3752 = vunpack.c.l.b16 %v1113
        %v3753 = vunpack.c.h.b16 %v1113
        %v3754 = vunpack.c.l.b16 %v1114
        %v3755 = vunpack.c.h.b16 %v1114
        %v3756 = vunpack.c.l.b16 %v1115
        %v3757 = vunpack.c.h.b16 %v1115
        %v3758 = vunpack.c.l.b16 %v1116
        %v3759 = vunpack.c.h.b16 %v1116
        %v3760 = vunpack.c.l.b16 %v1117
        %v3761 = vunpack.c.h.b16 %v1117
        %v3762 = vunpack.c.l.b16 %v1118
        %v3763 = vunpack.c.h.b16 %v1118
        %v3764 = vunpack.c.l.b16 %v1119
        %v3765 = vunpack.c.h.b16 %v1119
        %v3766 = vunpack.c.l.b16 %v1120
        %v3767 = vunpack.c.h.b16 %v1120
        %v3768 = vunpack.c.l.b16 %v1121
        %v3769 = vunpack.c.h.b16 %v1121
        %v3770 = vunpack.c.l.b16 %v1122
        %v3771 = vunpack.c.h.b16 %v1122
        %v3772 = vunpack.c.l.b16 %v1123
        %v3773 = vunpack.c.h.b16 %v1123
        %v3774 = vunpack.c.l.b16 %v1124
        %v3775 = vunpack.c.h.b16 %v1124
        %v3776 = vunpack.c.l.b16 %v1125
        %v3777 = vunpack.c.h.b16 %v1125
        %v3778 = vunpack.c.l.b16 %v1126
        %v3779 = vunpack.c.h.b16 %v1126
        %v3780 = vunpack.c.l.b16 %v1127
        %v3781 = vunpack.c.h.b16 %v1127
        %v3782 = vunpack.c.l.b16 %v1128
        %v3783 = vunpack.c.h.b16 %v1128
        %v3784 = vunpack.c.l.b16 %v1129
        %v3785 = vunpack.c.h.b16 %v1129
        %v3786 = vunpack.c.l.b16 %v1130
        %v3787 = vunpack.c.h.b16 %v1130
        %v3788 = vunpack.c.l.b16 %v1131
        %v3789 = vunpack.c.h.b16 %v1131
        %v3790 = vunpack.c.l.b16 %v1132
        %v3791 = vunpack.c.h.b16 %v1132
        %v3792 = vunpack.c.l.b16 %v1133
        %v3793 = vunpack.c.h.b16 %v1133
        %v3794 = vunpack.c.l.b16 %v1134
        %v3795 = vunpack.c.h.b16 %v1134
        %v3796 = vunpack.c.l.b16 %v1135
        %v3797 = vunpack.c.h.b16 %v1135
        %v3798 = vunpack.c.l.b16 %v1136
        %v3799 = vunpack.c.h.b16 %v1136
        %v3800 = vunpack.c.l.b16 %v1137
        %v3801 = vunpack.c.h.b16 %v1137
        %v3802 = vunpack.c.l.b16 %v1138
        %v3803 = vunpack.c.h.b16 %v1138
        %v3804 = vunpack.c.l.b16 %v1139
        %v3805 = vunpack.c.h.b16 %v1139
        %v3806 = vunpack.c.l.b16 %v1140
        %v3807 = vunpack.c.h.b16 %v1140
        %v3808 = vunpack.c.l.b16 %v1141
        %v3809 = vunpack.c.h.b16 %v1141
        %v3810 = vunpack.c.l.b16 %v1142
        %v3811 = vunpack.c.h.b16 %v1142
        %v3812 = vunpack.c.l.b16 %v1143
        %v3813 = vunpack.c.h.b16 %v1143
        %v3814 = vunpack.c.l.b16 %v1144
        %v3815 = vunpack.c.h.b16 %v1144
        %v3816 = vunpack.c.l.b16 %v1145
        %v3817 = vunpack.c.h.b16 %v1145
        %v3818 = vunpack.c.l.b16 %v1146
        %v3819 = vunpack.c.h.b16 %v1146
        %v3820 = vunpack.c.l.b16 %v1147
        %v3821 = vunpack.c.h.b16 %v1147
        %v3822 = vunpack.c.l.b16 %v1148
        %v3823 = vunpack.c.h.b16 %v1148
        %v3824 = vunpack.c.l.b16 %v1149
        %v3825 = vunpack.c.h.b16 %v1149
        %v3826 = vunpack.c.l.b16 %v1150
        %v3827 = vunpack.c.h.b16 %v1150
        %v3828 = vunpack.c.l.b16 %v1151
        %v3829 = vunpack.c.h.b16 %v1151
        %v3830 = vunpack.c.l.b16 %v1152
        %v3831 = vunpack.c.h.b16 %v1152
        %v3832 = vunpack.c.l.b16 %v1153
        %v3833 = vunpack.c.h.b16 %v1153
        %v3834 = vunpack.c.l.b16 %v1154
        %v3835 = vunpack.c.h.b16 %v1154
        %v3836 = vunpack.c.l.b16 %v1155
        %v3837 = vunpack.c.h.b16 %v1155
        %v3838 = vunpack.c.l.b16 %v1156
        %v3839 = vunpack.c.h.b16 %v1156
        %v3840 = vunpack.c.l.b16 %v1157
        %v3841 = vunpack.c.h.b16 %v1157
        %v3842 = vunpack.c.l.b16 %v1158
        %v3843 = vunpack.c.h.b16 %v1158
        %v3844 = vunpack.c.l.b16 %v1159
        %v3845 = vunpack.c.h.b16 %v1159
        %v3846 = vunpack.c.l.b16 %v1160
        %v3847 = vunpack.c.h.b16 %v1160
        %v3848 = vunpack.c.l.b16 %v1161
        %v3849 = vunpack.c.h.b16 %v1161
        %v3850 = vpack.c.b16 %v2140, %v2122
        %v3851 = vpack.c.b16 %v2141, %v2123
        %v3852 = vpack.c.b16 %v2142, %v2124
        %v3853 = vpack.c.b16 %v2143, %v2125
        %v3854 = vpack.c.b16 %v2144, %v2126
        %v3855 = vpack.c.b16 %v2145, %v2127
        %v3856 = vpack.c.b16 %v2146, %v2128
        %v3857 = vpack.c.b16 %v2147, %v2129
        %v3858 = vpack.c.b16 %v2148, %v2130
        %v3859 = vpack.c.b16 %v2149, %v2131
        %v3860 = vpack.c.b16 %v2150, %v2132
        %v3861 = vpack.c.b16 %v2151, %v2133
        %v3862 = vpack.c.b16 %v2152, %v2134
        %v3863 = vpack.c.b16 %v2153, %v2135
        %v3864 = vpack.c.b16 %v2154, %v2136
        %v3865 = vpack.c.b16 %v2155, %v2137
        %v3866 = vpack.c.b16 %v2156, %v2138
        %v3867 = vpack.c.b16 %v2157, %v2139
        %v3868 = vpack.c.b16 %v2176, %v2158
        %v3869 = vpack.c.b16 %v2177, %v2159
        %v3870 = vpack.c.b16 %v2178, %v2160
        %v3871 = vpack.c.b16 %v2179, %v2161
        %v3872 = vpack.c.b16 %v2180, %v2162
        %v3873 = vpack.c.b16 %v2181, %v2163
        %v3874 = vpack.c.b16 %v2182, %v2164
        %v3875 = vpack.c.b16 %v2183, %v2165
        %v3876 = vpack.c.b16 %v2184, %v2166
        %v3877 = vpack.c.b16 %v2185, %v2167
        %v3878 = vpack.c.b16 %v2186, %v2168
        %v3879 = vpack.c.b16 %v2187, %v2169
        %v3880 = vpack.c.b16 %v2188, %v2170
        %v3881 = vpack.c.b16 %v2189, %v2171
        %v3882 = vpack.c.b16 %v2190, %v2172
        %v3883 = vpack.c.b16 %v2191, %v2173
        %v3884 = vpack.c.b16 %v2192, %v2174
        %v3885 = vpack.c.b16 %v2193, %v2175
        %v3886 = vpack.c.b16 %v2212, %v2194
        %v3887 = vpack.c.b16 %v2213, %v2195
        %v3888 = vpack.c.b16 %v2214, %v2196
        %v3889 = vpack.c.b16 %v2215, %v2197
        %v3890 = vpack.c.b16 %v2216, %v2198
        %v3891 = vpack.c.b16 %v2217, %v2199
        %v3892 = vpack.c.b16 %v2218, %v2200
        %v3893 = vpack.c.b16 %v2219, %v2201
        %v3894 = vpack.c.b16 %v2220, %v2202
        %v3895 = vpack.c.b16 %v2221, %v2203
        %v3896 = vpack.c.b16 %v2222, %v2204
        %v3897 = vpack.c.b16 %v2223, %v2205
        %v3898 = vpack.c.b16 %v2224, %v2206
        %v3899 = vpack.c.b16 %v2225, %v2207
        %v3900 = vpack.c.b16 %v2226, %v2208
        %v3901 = vpack.c.b16 %v2227, %v2209
        %v3902 = vpack.c.b16 %v2228, %v2210
        %v3903 = vpack.c.b16 %v2229, %v2211
        %v3904 = vpack.c.b16 %v2248, %v2230
        %v3905 = vpack.c.b16 %v2249, %v2231
        %v3906 = vpack.c.b16 %v2250, %v2232
        %v3907 = vpack.c.b16 %v2251, %v2233
        %v3908 = vpack.c.b16 %v2252, %v2234
        %v3909 = vpack.c.b16 %v2253, %v2235
        %v3910 = vpack.c.b16 %v2254, %v2236
        %v3911 = vpack.c.b16 %v2255, %v2237
        %v3912 = vpack.c.b16 %v2256, %v2238
        %v3913 = vpack.c.b16 %v2257, %v2239
        %v3914 = vpack.c.b16 %v2258, %v2240
        %v3915 = vpack.c.b16 %v2259, %v2241
        %v3916 = vpack.c.b16 %v2260, %v2242
        %v3917 = vpack.c.b16 %v2261, %v2243
        %v3918 = vpack.c.b16 %v2262, %v2244
        %v3919 = vpack.c.b16 %v2263, %v2245
        %v3920 = vpack.c.b16 %v2264, %v2246
        %v3921 = vpack.c.b16 %v2265, %v2247
        %v3922 = vpack.c.b16 %v2284, %v2266
        %v3923 = vpack.c.b16 %v2285, %v2267
        %v3924 = vpack.c.b16 %v2286, %v2268
        %v3925 = vpack.c.b16 %v2287, %v2269
        %v3926 = vpack.c.b16 %v2288, %v2270
        %v3927 = vpack.c.b16 %v2289, %v2271
        %v3928 = vpack.c.b16 %v2290, %v2272
        %v3929 = vpack.c.b16 %v2291, %v2273
        %v3930 = vpack.c.b16 %v2292, %v2274
        %v3931 = vpack.c.b16 %v2293, %v2275
        %v3932 = vpack.c.b16 %v2294, %v2276
        %v3933 = vpack.c.b16 %v2295, %v2277
        %v3934 = vpack.c.b16 %v2296, %v2278
        %v3935 = vpack.c.b16 %v2297, %v2279
        %v3936 = vpack.c.b16 %v2298, %v2280
        %v3937 = vpack.c.b16 %v2299, %v2281
        %v3938 = vpack.c.b16 %v2300, %v2282
        %v3939 = vpack.c.b16 %v2301, %v2283
        %v3940 = vpack.c.b16 %v2320, %v2302
        %v3941 = vpack.c.b16 %v2321, %v2303
        %v3942 = vpack.c.b16 %v2322, %v2304
        %v3943 = vpack.c.b16 %v2323, %v2305
        %v3944 = vpack.c.b16 %v2324, %v2306
        %v3945 = vpack.c.b16 %v2325, %v2307
        %v3946 = vpack.c.b16 %v2326, %v2308
        %v3947 = vpack.c.b16 %v2327, %v2309
        %v3948 = vpack.c.b16 %v2328, %v2310
        %v3949 = vpack.c.b16 %v2329, %v2311
        %v3950 = vpack.c.b16 %v2330, %v2312
        %v3951 = vpack.c.b16 %v2331, %v2313
        %v3952 = vpack.c.b16 %v2332, %v2314
        %v3953 = vpack.c.b16 %v2333, %v2315
        %v3954 = vpack.c.b16 %v2334, %v2316
        %v3955 = vpack.c.b16 %v2335, %v2317
        %v3956 = vpack.c.b16 %v2336, %v2318
        %v3957 = vpack.c.b16 %v2337, %v2319
        %v3958 = vpack.c.b16 %v2356, %v2338
        %v3959 = vpack.c.b16 %v2357, %v2339
        %v3960 = vpack.c.b16 %v2358, %v2340
        %v3961 = vpack.c.b16 %v2359, %v2341
        %v3962 = vpack.c.b16 %v2360, %v2342
        %v3963 = vpack.c.b16 %v2361, %v2343
        %v3964 = vpack.c.b16 %v2362, %v2344
        %v3965 = vpack.c.b16 %v2363, %v2345
        %v3966 = vpack.c.b16 %v2364, %v2346
        %v3967 = vpack.c.b16 %v2365, %v2347
        %v3968 = vpack.c.b16 %v2366, %v2348
        %v3969 = vpack.c.b16 %v2367, %v2349
        %v3970 = vpack.c.b16 %v2368, %v2350
        %v3971 = vpack.c.b16 %v2369, %v2351
        %v3972 = vpack.c.b16 %v2370, %v2352
        %v3973 = vpack.c.b16 %v2371, %v2353
        %v3974 = vpack.c.b16 %v2372, %v2354
        %v3975 = vpack.c.b16 %v2373, %v2355
        %v3976 = vpack.c.b16 %v2392, %v2374
        %v3977 = vpack.c.b16 %v2393, %v2375
        %v3978 = vpack.c.b16 %v2394, %v2376
        %v3979 = vpack.c.b16 %v2395, %v2377
        %v3980 = vpack.c.b16 %v2396, %v2378
        %v3981 = vpack.c.b16 %v2397, %v2379
        %v3982 = vpack.c.b16 %v2398, %v2380
        %v3983 = vpack.c.b16 %v2399, %v2381
        %v3984 = vpack.c.b16 %v2400, %v2382
        %v3985 = vpack.c.b16 %v2401, %v2383
        %v3986 = vpack.c.b16 %v2402, %v2384
        %v3987 = vpack.c.b16 %v2403, %v2385
        %v3988 = vpack.c.b16 %v2404, %v2386
        %v3989 = vpack.c.b16 %v2405, %v2387
        %v3990 = vpack.c.b16 %v2406, %v2388
        %v3991 = vpack.c.b16 %v2407, %v2389
        %v3992 = vpack.c.b16 %v2408, %v2390
        %v3993 = vpack.c.b16 %v2409, %v2391
        %v3994 = vpack.c.b16 %v2428, %v2410
        %v3995 = vpack.c.b16 %v2429, %v2411
        %v3996 = vpack.c.b16 %v2430, %v2412
        %v3997 = vpack.c.b16 %v2431, %v2413
        %v3998 = vpack.c.b16 %v2432, %v2414
        %v3999 = vpack.c.b16 %v2433, %v2415
        %v4000 = vpack.c.b16 %v2434, %v2416
        %v4001 = vpack.c.b16 %v2435, %v2417
        %v4002 = vpack.c.b16 %v2436, %v2418
        %v4003 = vpack.c.b16 %v2437, %v2419
        %v4004 = vpack.c.b16 %v2438, %v2420
        %v4005 = vpack.c.b16 %v2439, %v2421
        %v4006 = vpack.c.b16 %v2440, %v2422
        %v4007 = vpack.c.b16 %v2441, %v2423
        %v4008 = vpack.c.b16 %v2442, %v2424
        %v4009 = vpack.c.b16 %v2443, %v2425
        %v4010 = vpack.c.b16 %v2444, %v2426
        %v4011 = vpack.c.b16 %v2445, %v2427
        %v4012 = vpack.c.b16 %v2464, %v2446
        %v4013 = vpack.c.b16 %v2465, %v2447
        %v4014 = vpack.c.b16 %v2466, %v2448
        %v4015 = vpack.c.b16 %v2467, %v2449
        %v4016 = vpack.c.b16 %v2468, %v2450
        %v4017 = vpack.c.b16 %v2469, %v2451
        %v4018 = vpack.c.b16 %v2470, %v2452
        %v4019 = vpack.c.b16 %v2471, %v2453
        %v4020 = vpack.c.b16 %v2472, %v2454
        %v4021 = vpack.c.b16 %v2473, %v2455
        %v4022 = vpack.c.b16 %v2474, %v2456
        %v4023 = vpack.c.b16 %v2475, %v2457
        %v4024 = vpack.c.b16 %v2476, %v2458
        %v4025 = vpack.c.b16 %v2477, %v2459
        %v4026 = vpack.c.b16 %v2478, %v2460
        %v4027 = vpack.c.b16 %v2479, %v2461
        %v4028 = vpack.c.b16 %v2480, %v2462
        %v4029 = vpack.c.b16 %v2481, %v2463
        %v4030 = vpack.c.b16 %v2500, %v2482
        %v4031 = vpack.c.b16 %v2501, %v2483
        %v4032 = vpack.c.b16 %v2502, %v2484
        %v4033 = vpack.c.b16 %v2503, %v2485
        %v4034 = vpack.c.b16 %v2504, %v2486
        %v4035 = vpack.c.b16 %v2505, %v2487
        %v4036 = vpack.c.b16 %v2506, %v2488
        %v4037 = vpack.c.b16 %v2507, %v2489
        %v4038 = vpack.c.b16 %v2508, %v2490
        %v4039 = vpack.c.b16 %v2509, %v2491
        %v4040 = vpack.c.b16 %v2510, %v2492
        %v4041 = vpack.c.b16 %v2511, %v2493
        %v4042 = vpack.c.b16 %v2512, %v2494
        %v4043 = vpack.c.b16 %v2513, %v2495
        %v4044 = vpack.c.b16 %v2514, %v2496
        %v4045 = vpack.c.b16 %v2515, %v2497
        %v4046 = vpack.c.b16 %v2516, %v2498
        %v4047 = vpack.c.b16 %v2517, %v2499
        %v4048 = vpack.c.b16 %v2536, %v2518
        %v4049 = vpack.c.b16 %v2537, %v2519
        %v4050 = vpack.c.b16 %v2538, %v2520
        %v4051 = vpack.c.b16 %v2539, %v2521
        %v4052 = vpack.c.b16 %v2540, %v2522
        %v4053 = vpack.c.b16 %v2541, %v2523
        %v4054 = vpack.c.b16 %v2542, %v2524
        %v4055 = vpack.c.b16 %v2543, %v2525
        %v4056 = vpack.c.b16 %v2544, %v2526
        %v4057 = vpack.c.b16 %v2545, %v2527
        %v4058 = vpack.c.b16 %v2546, %v2528
        %v4059 = vpack.c.b16 %v2547, %v2529
        %v4060 = vpack.c.b16 %v2548, %v2530
        %v4061 = vpack.c.b16 %v2549, %v2531
        %v4062 = vpack.c.b16 %v2550, %v2532
        %v4063 = vpack.c.b16 %v2551, %v2533
        %v4064 = vpack.c.b16 %v2552, %v2534
        %v4065 = vpack.c.b16 %v2553, %v2535
        %v4066 = vpack.c.b16 %v2572, %v2554
        %v4067 = vpack.c.b16 %v2573, %v2555
        %v4068 = vpack.c.b16 %v2574, %v2556
        %v4069 = vpack.c.b16 %v2575, %v2557
        %v4070 = vpack.c.b16 %v2576, %v2558
        %v4071 = vpack.c.b16 %v2577, %v2559
        %v4072 = vpack.c.b16 %v2578, %v2560
        %v4073 = vpack.c.b16 %v2579, %v2561
        %v4074 = vpack.c.b16 %v2580, %v2562
        %v4075 = vpack.c.b16 %v2581, %v2563
        %v4076 = vpack.c.b16 %v2582, %v2564
        %v4077 = vpack.c.b16 %v2583, %v2565
        %v4078 = vpack.c.b16 %v2584, %v2566
        %v4079 = vpack.c.b16 %v2585, %v2567
        %v4080 = vpack.c.b16 %v2586, %v2568
        %v4081 = vpack.c.b16 %v2587, %v2569
        %v4082 = vpack.c.b16 %v2588, %v2570
        %v4083 = vpack.c.b16 %v2589, %v2571
        %v4084 = vpack.c.b16 %v2608, %v2590
        %v4085 = vpack.c.b16 %v2609, %v2591
        %v4086 = vpack.c.b16 %v2610, %v2592
        %v4087 = vpack.c.b16 %v2611, %v2593
        %v4088 = vpack.c.b16 %v2612, %v2594
        %v4089 = vpack.c.b16 %v2613, %v2595
        %v4090 = vpack.c.b16 %v2614, %v2596
        %v4091 = vpack.c.b16 %v2615, %v2597
        %v4092 = vpack.c.b16 %v2616, %v2598
        %v4093 = vpack.c.b16 %v2617, %v2599
        %v4094 = vpack.c.b16 %v2618, %v2600
        %v4095 = vpack.c.b16 %v2619, %v2601
        %v4096 = vpack.c.b16 %v2620, %v2602
        %v4097 = vpack.c.b16 %v2621, %v2603
        %v4098 = vpack.c.b16 %v2622, %v2604
        %v4099 = vpack.c.b16 %v2623, %v2605
        %v4100 = vpack.c.b16 %v2624, %v2606
        %v4101 = vpack.c.b16 %v2625, %v2607
        %v4102 = vpack.c.b16 %v2644, %v2626
        %v4103 = vpack.c.b16 %v2645, %v2627
        %v4104 = vpack.c.b16 %v2646, %v2628
        %v4105 = vpack.c.b16 %v2647, %v2629
        %v4106 = vpack.c.b16 %v2648, %v2630
        %v4107 = vpack.c.b16 %v2649, %v2631
        %v4108 = vpack.c.b16 %v2650, %v2632
        %v4109 = vpack.c.b16 %v2651, %v2633
        %v4110 = vpack.c.b16 %v2652, %v2634
        %v4111 = vpack.c.b16 %v2653, %v2635
        %v4112 = vpack.c.b16 %v2654, %v2636
        %v4113 = vpack.c.b16 %v2655, %v2637
        %v4114 = vpack.c.b16 %v2656, %v2638
        %v4115 = vpack.c.b16 %v2657, %v2639
        %v4116 = vpack.c.b16 %v2658, %v2640
        %v4117 = vpack.c.b16 %v2659, %v2641
        %v4118 = vpack.c.b16 %v2660, %v2642
        %v4119 = vpack.c.b16 %v2661, %v2643
        %v4120 = vpack.c.b16 %v2680, %v2662
        %v4121 = vpack.c.b16 %v2681, %v2663
        %v4122 = vpack.c.b16 %v2682, %v2664
        %v4123 = vpack.c.b16 %v2683, %v2665
        %v4124 = vpack.c.b16 %v2684, %v2666
        %v4125 = vpack.c.b16 %v2685, %v2667
        %v4126 = vpack.c.b16 %v2686, %v2668
        %v4127 = vpack.c.b16 %v2687, %v2669
        %v4128 = vpack.c.b16 %v2688, %v2670
        %v4129 = vpack.c.b16 %v2689, %v2671
        %v4130 = vpack.c.b16 %v2690, %v2672
        %v4131 = vpack.c.b16 %v2691, %v2673
        %v4132 = vpack.c.b16 %v2692, %v2674
        %v4133 = vpack.c.b16 %v2693, %v2675
        %v4134 = vpack.c.b16 %v2694, %v2676
        %v4135 = vpack.c.b16 %v2695, %v2677
        %v4136 = vpack.c.b16 %v2696, %v2678
        %v4137 = vpack.c.b16 %v2697, %v2679
        %v4138 = vpack.c.b16 %v2716, %v2698
        %v4139 = vpack.c.b16 %v2717, %v2699
        %v4140 = vpack.c.b16 %v2718, %v2700
        %v4141 = vpack.c.b16 %v2719, %v2701
        %v4142 = vpack.c.b16 %v2720, %v2702
        %v4143 = vpack.c.b16 %v2721, %v2703
        %v4144 = vpack.c.b16 %v2722, %v2704
        %v4145 = vpack.c.b16 %v2723, %v2705
        %v4146 = vpack.c.b16 %v2724, %v2706
        %v4147 = vpack.c.b16 %v2725, %v2707
        %v4148 = vpack.c.b16 %v2726, %v2708
        %v4149 = vpack.c.b16 %v2727, %v2709
        %v4150 = vpack.c.b16 %v2728, %v2710
        %v4151 = vpack.c.b16 %v2729, %v2711
        %v4152 = vpack.c.b16 %v2730, %v2712
        %v4153 = vpack.c.b16 %v2731, %v2713
        %v4154 = vpack.c.b16 %v2732, %v2714
        %v4155 = vpack.c.b16 %v2733, %v2715
        %v4156 = vpack.c.b16 %v2752, %v2734
        %v4157 = vpack.c.b16 %v2753, %v2735
        %v4158 = vpack.c.b16 %v2754, %v2736
        %v4159 = vpack.c.b16 %v2755, %v2737
        %v4160 = vpack.c.b16 %v2756, %v2738
        %v4161 = vpack.c.b16 %v2757, %v2739
        %v4162 = vpack.c.b16 %v2758, %v2740
        %v4163 = vpack.c.b16 %v2759, %v2741
        %v4164 = vpack.c.b16 %v2760, %v2742
        %v4165 = vpack.c.b16 %v2761, %v2743
        %v4166 = vpack.c.b16 %v2762, %v2744
        %v4167 = vpack.c.b16 %v2763, %v2745
        %v4168 = vpack.c.b16 %v2764, %v2746
        %v4169 = vpack.c.b16 %v2765, %v2747
        %v4170 = vpack.c.b16 %v2766, %v2748
        %v4171 = vpack.c.b16 %v2767, %v2749
        %v4172 = vpack.c.b16 %v2768, %v2750
        %v4173 = vpack.c.b16 %v2769, %v2751
        %v4174 = vpack.c.b16 %v2788, %v2770
        %v4175 = vpack.c.b16 %v2789, %v2771
        %v4176 = vpack.c.b16 %v2790, %v2772
        %v4177 = vpack.c.b16 %v2791, %v2773
        %v4178 = vpack.c.b16 %v2792, %v2774
        %v4179 = vpack.c.b16 %v2793, %v2775
        %v4180 = vpack.c.b16 %v2794, %v2776
        %v4181 = vpack.c.b16 %v2795, %v2777
        %v4182 = vpack.c.b16 %v2796, %v2778
        %v4183 = vpack.c.b16 %v2797, %v2779
        %v4184 = vpack.c.b16 %v2798, %v2780
        %v4185 = vpack.c.b16 %v2799, %v2781
        %v4186 = vpack.c.b16 %v2800, %v2782
        %v4187 = vpack.c.b16 %v2801, %v2783
        %v4188 = vpack.c.b16 %v2802, %v2784
        %v4189 = vpack.c.b16 %v2803, %v2785
        %v4190 = vpack.c.b16 %v2804, %v2786
        %v4191 = vpack.c.b16 %v2805, %v2787
        %v4192 = vpack.c.b16 %v2824, %v2806
        %v4193 = vpack.c.b16 %v2825, %v2807
        %v4194 = vpack.c.b16 %v2826, %v2808
        %v4195 = vpack.c.b16 %v2827, %v2809
        %v4196 = vpack.c.b16 %v2828, %v2810
        %v4197 = vpack.c.b16 %v2829, %v2811
        %v4198 = vpack.c.b16 %v2830, %v2812
        %v4199 = vpack.c.b16 %v2831, %v2813
        %v4200 = vpack.c.b16 %v2832, %v2814
        %v4201 = vpack.c.b16 %v2833, %v2815
        %v4202 = vpack.c.b16 %v2834, %v2816
        %v4203 = vpack.c.b16 %v2835, %v2817
        %v4204 = vpack.c.b16 %v2836, %v2818
        %v4205 = vpack.c.b16 %v2837, %v2819
        %v4206 = vpack.c.b16 %v2838, %v2820
        %v4207 = vpack.c.b16 %v2839, %v2821
        %v4208 = vpack.c.b16 %v2840, %v2822
        %v4209 = vpack.c.b16 %v2841, %v2823
        %v4210 = vpack.c.b16 %v2860, %v2842
        %v4211 = vpack.c.b16 %v2861, %v2843
        %v4212 = vpack.c.b16 %v2862, %v2844
        %v4213 = vpack.c.b16 %v2863, %v2845
        %v4214 = vpack.c.b16 %v2864, %v2846
        %v4215 = vpack.c.b16 %v2865, %v2847
        %v4216 = vpack.c.b16 %v2866, %v2848
        %v4217 = vpack.c.b16 %v2867, %v2849
        %v4218 = vpack.c.b16 %v2868, %v2850
        %v4219 = vpack.c.b16 %v2869, %v2851
        %v4220 = vpack.c.b16 %v2870, %v2852
        %v4221 = vpack.c.b16 %v2871, %v2853
        %v4222 = vpack.c.b16 %v2872, %v2854
        %v4223 = vpack.c.b16 %v2873, %v2855
        %v4224 = vpack.c.b16 %v2874, %v2856
        %v4225 = vpack.c.b16 %v2875, %v2857
        %v4226 = vpack.c.b16 %v2876, %v2858
        %v4227 = vpack.c.b16 %v2877, %v2859
        %v4228 = vpack.c.b16 %v2896, %v2878
        %v4229 = vpack.c.b16 %v2897, %v2879
        %v4230 = vpack.c.b16 %v2898, %v2880
        %v4231 = vpack.c.b16 %v2899, %v2881
        %v4232 = vpack.c.b16 %v2900, %v2882
        %v4233 = vpack.c.b16 %v2901, %v2883
        %v4234 = vpack.c.b16 %v2902, %v2884
        %v4235 = vpack.c.b16 %v2903, %v2885
        %v4236 = vpack.c.b16 %v2904, %v2886
        %v4237 = vpack.c.b16 %v2905, %v2887
        %v4238 = vpack.c.b16 %v2906, %v2888
        %v4239 = vpack.c.b16 %v2907, %v2889
        %v4240 = vpack.c.b16 %v2908, %v2890
        %v4241 = vpack.c.b16 %v2909, %v2891
        %v4242 = vpack.c.b16 %v2910, %v2892
        %v4243 = vpack.c.b16 %v2911, %v2893
        %v4244 = vpack.c.b16 %v2912, %v2894
        %v4245 = vpack.c.b16 %v2913, %v2895
        %v4246 = vpack.c.b16 %v2932, %v2914
        %v4247 = vpack.c.b16 %v2933, %v2915
        %v4248 = vpack.c.b16 %v2934, %v2916
        %v4249 = vpack.c.b16 %v2935, %v2917
        %v4250 = vpack.c.b16 %v2936, %v2918
        %v4251 = vpack.c.b16 %v2937, %v2919
        %v4252 = vpack.c.b16 %v2938, %v2920
        %v4253 = vpack.c.b16 %v2939, %v2921
        %v4254 = vpack.c.b16 %v2940, %v2922
        %v4255 = vpack.c.b16 %v2941, %v2923
        %v4256 = vpack.c.b16 %v2942, %v2924
        %v4257 = vpack.c.b16 %v2943, %v2925
        %v4258 = vpack.c.b16 %v2944, %v2926
        %v4259 = vpack.c.b16 %v2945, %v2927
        %v4260 = vpack.c.b16 %v2946, %v2928
        %v4261 = vpack.c.b16 %v2947, %v2929
        %v4262 = vpack.c.b16 %v2948, %v2930
        %v4263 = vpack.c.b16 %v2949, %v2931
        %v4264 = vpack.c.b16 %v2968, %v2950
        %v4265 = vpack.c.b16 %v2969, %v2951
        %v4266 = vpack.c.b16 %v2970, %v2952
        %v4267 = vpack.c.b16 %v2971, %v2953
        %v4268 = vpack.c.b16 %v2972, %v2954
        %v4269 = vpack.c.b16 %v2973, %v2955
        %v4270 = vpack.c.b16 %v2974, %v2956
        %v4271 = vpack.c.b16 %v2975, %v2957
        %v4272 = vpack.c.b16 %v2976, %v2958
        %v4273 = vpack.c.b16 %v2977, %v2959
        %v4274 = vpack.c.b16 %v2978, %v2960
        %v4275 = vpack.c.b16 %v2979, %v2961
        %v4276 = vpack.c.b16 %v2980, %v2962
        %v4277 = vpack.c.b16 %v2981, %v2963
        %v4278 = vpack.c.b16 %v2982, %v2964
        %v4279 = vpack.c.b16 %v2983, %v2965
        %v4280 = vpack.c.b16 %v2984, %v2966
        %v4281 = vpack.c.b16 %v2985, %v2967
        %v4282 = vpack.c.b16 %v3004, %v2986
        %v4283 = vpack.c.b16 %v3005, %v2987
        %v4284 = vpack.c.b16 %v3006, %v2988
        %v4285 = vpack.c.b16 %v3007, %v2989
        %v4286 = vpack.c.b16 %v3008, %v2990
        %v4287 = vpack.c.b16 %v3009, %v2991
        %v4288 = vpack.c.b16 %v3010, %v2992
        %v4289 = vpack.c.b16 %v3011, %v2993
        %v4290 = vpack.c.b16 %v3012, %v2994
        %v4291 = vpack.c.b16 %v3013, %v2995
        %v4292 = vpack.c.b16 %v3014, %v2996
        %v4293 = vpack.c.b16 %v3015, %v2997
        %v4294 = vpack.c.b16 %v3016, %v2998
        %v4295 = vpack.c.b16 %v3017, %v2999
        %v4296 = vpack.c.b16 %v3018, %v3000
        %v4297 = vpack.c.b16 %v3019, %v3001
        %v4298 = vpack.c.b16 %v3020, %v3002
        %v4299 = vpack.c.b16 %v3021, %v3003
        %v4300 = vpack.c.b16 %v3040, %v3022
        %v4301 = vpack.c.b16 %v3041, %v3023
        %v4302 = vpack.c.b16 %v3042, %v3024
        %v4303 = vpack.c.b16 %v3043, %v3025
        %v4304 = vpack.c.b16 %v3044, %v3026
        %v4305 = vpack.c.b16 %v3045, %v3027
        %v4306 = vpack.c.b16 %v3046, %v3028
        %v4307 = vpack.c.b16 %v3047, %v3029
        %v4308 = vpack.c.b16 %v3048, %v3030
        %v4309 = vpack.c.b16 %v3049, %v3031
        %v4310 = vpack.c.b16 %v3050, %v3032
        %v4311 = vpack.c.b16 %v3051, %v3033
        %v4312 = vpack.c.b16 %v3052, %v3034
        %v4313 = vpack.c.b16 %v3053, %v3035
        %v4314 = vpack.c.b16 %v3054, %v3036
        %v4315 = vpack.c.b16 %v3055, %v3037
        %v4316 = vpack.c.b16 %v3056, %v3038
        %v4317 = vpack.c.b16 %v3057, %v3039
        %v4318 = vpack.c.b16 %v3076, %v3058
        %v4319 = vpack.c.b16 %v3077, %v3059
        %v4320 = vpack.c.b16 %v3078, %v3060
        %v4321 = vpack.c.b16 %v3079, %v3061
        %v4322 = vpack.c.b16 %v3080, %v3062
        %v4323 = vpack.c.b16 %v3081, %v3063
        %v4324 = vpack.c.b16 %v3082, %v3064
        %v4325 = vpack.c.b16 %v3083, %v3065
        %v4326 = vpack.c.b16 %v3084, %v3066
        %v4327 = vpack.c.b16 %v3085, %v3067
        %v4328 = vpack.c.b16 %v3086, %v3068
        %v4329 = vpack.c.b16 %v3087, %v3069
        %v4330 = vpack.c.b16 %v3088, %v3070
        %v4331 = vpack.c.b16 %v3089, %v3071
        %v4332 = vpack.c.b16 %v3090, %v3072
        %v4333 = vpack.c.b16 %v3091, %v3073
        %v4334 = vpack.c.b16 %v3092, %v3074
        %v4335 = vpack.c.b16 %v3093, %v3075
        %v4336 = vpack.c.b16 %v3112, %v3094
        %v4337 = vpack.c.b16 %v3113, %v3095
        %v4338 = vpack.c.b16 %v3114, %v3096
        %v4339 = vpack.c.b16 %v3115, %v3097
        %v4340 = vpack.c.b16 %v3116, %v3098
        %v4341 = vpack.c.b16 %v3117, %v3099
        %v4342 = vpack.c.b16 %v3118, %v3100
        %v4343 = vpack.c.b16 %v3119, %v3101
        %v4344 = vpack.c.b16 %v3120, %v3102
        %v4345 = vpack.c.b16 %v3121, %v3103
        %v4346 = vpack.c.b16 %v3122, %v3104
        %v4347 = vpack.c.b16 %v3123, %v3105
        %v4348 = vpack.c.b16 %v3124, %v3106
        %v4349 = vpack.c.b16 %v3125, %v3107
        %v4350 = vpack.c.b16 %v3126, %v3108
        %v4351 = vpack.c.b16 %v3127, %v3109
        %v4352 = vpack.c.b16 %v3128, %v3110
        %v4353 = vpack.c.b16 %v3129, %v3111
        %v4354 = vpack.c.b16 %v3148, %v3130
        %v4355 = vpack.c.b16 %v3149, %v3131
        %v4356 = vpack.c.b16 %v3150, %v3132
        %v4357 = vpack.c.b16 %v3151, %v3133
        %v4358 = vpack.c.b16 %v3152, %v3134
        %v4359 = vpack.c.b16 %v3153, %v3135
        %v4360 = vpack.c.b16 %v3154, %v3136
        %v4361 = vpack.c.b16 %v3155, %v3137
        %v4362 = vpack.c.b16 %v3156, %v3138
        %v4363 = vpack.c.b16 %v3157, %v3139
        %v4364 = vpack.c.b16 %v3158, %v3140
        %v4365 = vpack.c.b16 %v3159, %v3141
        %v4366 = vpack.c.b16 %v3160, %v3142
        %v4367 = vpack.c.b16 %v3161, %v3143
        %v4368 = vpack.c.b16 %v3162, %v3144
        %v4369 = vpack.c.b16 %v3163, %v3145
        %v4370 = vpack.c.b16 %v3164, %v3146
        %v4371 = vpack.c.b16 %v3165, %v3147
        %v4372 = vpack.c.b16 %v3184, %v3166
        %v4373 = vpack.c.b16 %v3185, %v3167
        %v4374 = vpack.c.b16 %v3186, %v3168
        %v4375 = vpack.c.b16 %v3187, %v3169
        %v4376 = vpack.c.b16 %v3188, %v3170
        %v4377 = vpack.c.b16 %v3189, %v3171
        %v4378 = vpack.c.b16 %v3190, %v3172
        %v4379 = vpack.c.b16 %v3191, %v3173
        %v4380 = vpack.c.b16 %v3192, %v3174
        %v4381 = vpack.c.b16 %v3193, %v3175
        %v4382 = vpack.c.b16 %v3194, %v3176
        %v4383 = vpack.c.b16 %v3195, %v3177
        %v4384 = vpack.c.b16 %v3196, %v3178
        %v4385 = vpack.c.b16 %v3197, %v3179
        %v4386 = vpack.c.b16 %v3198, %v3180
        %v4387 = vpack.c.b16 %v3199, %v3181
        %v4388 = vpack.c.b16 %v3200, %v3182
        %v4389 = vpack.c.b16 %v3201, %v3183
        %v4390 = vpack.c.b16 %v3220, %v3202
        %v4391 = vpack.c.b16 %v3221, %v3203
        %v4392 = vpack.c.b16 %v3222, %v3204
        %v4393 = vpack.c.b16 %v3223, %v3205
        %v4394 = vpack.c.b16 %v3224, %v3206
        %v4395 = vpack.c.b16 %v3225, %v3207
        %v4396 = vpack.c.b16 %v3226, %v3208
        %v4397 = vpack.c.b16 %v3227, %v3209
        %v4398 = vpack.c.b16 %v3228, %v3210
        %v4399 = vpack.c.b16 %v3229, %v3211
        %v4400 = vpack.c.b16 %v3230, %v3212
        %v4401 = vpack.c.b16 %v3231, %v3213
        %v4402 = vpack.c.b16 %v3232, %v3214
        %v4403 = vpack.c.b16 %v3233, %v3215
        %v4404 = vpack.c.b16 %v3234, %v3216
        %v4405 = vpack.c.b16 %v3235, %v3217
        %v4406 = vpack.c.b16 %v3236, %v3218
        %v4407 = vpack.c.b16 %v3237, %v3219
        %v4408 = vpack.c.b16 %v3256, %v3238
        %v4409 = vpack.c.b16 %v3257, %v3239
        %v4410 = vpack.c.b16 %v3258, %v3240
        %v4411 = vpack.c.b16 %v3259, %v3241
        %v4412 = vpack.c.b16 %v3260, %v3242
        %v4413 = vpack.c.b16 %v3261, %v3243
        %v4414 = vpack.c.b16 %v3262, %v3244
        %v4415 = vpack.c.b16 %v3263, %v3245
        %v4416 = vpack.c.b16 %v3264, %v3246
        %v4417 = vpack.c.b16 %v3265, %v3247
        %v4418 = vpack.c.b16 %v3266, %v3248
        %v4419 = vpack.c.b16 %v3267, %v3249
        %v4420 = vpack.c.b16 %v3268, %v3250
        %v4421 = vpack.c.b16 %v3269, %v3251
        %v4422 = vpack.c.b16 %v3270, %v3252
        %v4423 = vpack.c.b16 %v3271, %v3253
        %v4424 = vpack.c.b16 %v3272, %v3254
        %v4425 = vpack.c.b16 %v3273, %v3255
        %v4426 = vpack.c.b16 %v3292, %v3274
        %v4427 = vpack.c.b16 %v3293, %v3275
        %v4428 = vpack.c.b16 %v3294, %v3276
        %v4429 = vpack.c.b16 %v3295, %v3277
        %v4430 = vpack.c.b16 %v3296, %v3278
        %v4431 = vpack.c.b16 %v3297, %v3279
        %v4432 = vpack.c.b16 %v3298, %v3280
        %v4433 = vpack.c.b16 %v3299, %v3281
        %v4434 = vpack.c.b16 %v3300, %v3282
        %v4435 = vpack.c.b16 %v3301, %v3283
        %v4436 = vpack.c.b16 %v3302, %v3284
        %v4437 = vpack.c.b16 %v3303, %v3285
        %v4438 = vpack.c.b16 %v3304, %v3286
        %v4439 = vpack.c.b16 %v3305, %v3287
        %v4440 = vpack.c.b16 %v3306, %v3288
        %v4441 = vpack.c.b16 %v3307, %v3289
        %v4442 = vpack.c.b16 %v3308, %v3290
        %v4443 = vpack.c.b16 %v3309, %v3291
        %v4444 = vpack.c.b16 %v3328, %v3310
        %v4445 = vpack.c.b16 %v3329, %v3311
        %v4446 = vpack.c.b16 %v3330, %v3312
        %v4447 = vpack.c.b16 %v3331, %v3313
        %v4448 = vpack.c.b16 %v3332, %v3314
        %v4449 = vpack.c.b16 %v3333, %v3315
        %v4450 = vpack.c.b16 %v3334, %v3316
        %v4451 = vpack.c.b16 %v3335, %v3317
        %v4452 = vpack.c.b16 %v3336, %v3318
        %v4453 = vpack.c.b16 %v3337, %v3319
        %v4454 = vpack.c.b16 %v3338, %v3320
        %v4455 = vpack.c.b16 %v3339, %v3321
        %v4456 = vpack.c.b16 %v3340, %v3322
        %v4457 = vpack.c.b16 %v3341, %v3323
        %v4458 = vpack.c.b16 %v3342, %v3324
        %v4459 = vpack.c.b16 %v3343, %v3325
        %v4460 = vpack.c.b16 %v3344, %v3326
        %v4461 = vpack.c.b16 %v3345, %v3327
        %v4462 = vpack.c.b16 %v3364, %v3346
        %v4463 = vpack.c.b16 %v3365, %v3347
        %v4464 = vpack.c.b16 %v3366, %v3348
        %v4465 = vpack.c.b16 %v3367, %v3349
        %v4466 = vpack.c.b16 %v3368, %v3350
        %v4467 = vpack.c.b16 %v3369, %v3351
        %v4468 = vpack.c.b16 %v3370, %v3352
        %v4469 = vpack.c.b16 %v3371, %v3353
        %v4470 = vpack.c.b16 %v3372, %v3354
        %v4471 = vpack.c.b16 %v3373, %v3355
        %v4472 = vpack.c.b16 %v3374, %v3356
        %v4473 = vpack.c.b16 %v3375, %v3357
        %v4474 = vpack.c.b16 %v3376, %v3358
        %v4475 = vpack.c.b16 %v3377, %v3359
        %v4476 = vpack.c.b16 %v3378, %v3360
        %v4477 = vpack.c.b16 %v3379, %v3361
        %v4478 = vpack.c.b16 %v3380, %v3362
        %v4479 = vpack.c.b16 %v3381, %v3363
        %v4480 = vpack.c.b16 %v3400, %v3382
        %v4481 = vpack.c.b16 %v3401, %v3383
        %v4482 = vpack.c.b16 %v3402, %v3384
        %v4483 = vpack.c.b16 %v3403, %v3385
        %v4484 = vpack.c.b16 %v3404, %v3386
        %v4485 = vpack.c.b16 %v3405, %v3387
        %v4486 = vpack.c.b16 %v3406, %v3388
        %v4487 = vpack.c.b16 %v3407, %v3389
        %v4488 = vpack.c.b16 %v3408, %v3390
        %v4489 = vpack.c.b16 %v3409, %v3391
        %v4490 = vpack.c.b16 %v3410, %v3392
        %v4491 = vpack.c.b16 %v3411, %v3393
        %v4492 = vpack.c.b16 %v3412, %v3394
        %v4493 = vpack.c.b16 %v3413, %v3395
        %v4494 = vpack.c.b16 %v3414, %v3396
        %v4495 = vpack.c.b16 %v3415, %v3397
        %v4496 = vpack.c.b16 %v3416, %v3398
        %v4497 = vpack.c.b16 %v3417, %v3399
        %v4498 = vpack.c.b16 %v3436, %v3418
        %v4499 = vpack.c.b16 %v3437, %v3419
        %v4500 = vpack.c.b16 %v3438, %v3420
        %v4501 = vpack.c.b16 %v3439, %v3421
        %v4502 = vpack.c.b16 %v3440, %v3422
        %v4503 = vpack.c.b16 %v3441, %v3423
        %v4504 = vpack.c.b16 %v3442, %v3424
        %v4505 = vpack.c.b16 %v3443, %v3425
        %v4506 = vpack.c.b16 %v3444, %v3426
        %v4507 = vpack.c.b16 %v3445, %v3427
        %v4508 = vpack.c.b16 %v3446, %v3428
        %v4509 = vpack.c.b16 %v3447, %v3429
        %v4510 = vpack.c.b16 %v3448, %v3430
        %v4511 = vpack.c.b16 %v3449, %v3431
        %v4512 = vpack.c.b16 %v3450, %v3432
        %v4513 = vpack.c.b16 %v3451, %v3433
        %v4514 = vpack.c.b16 %v3452, %v3434
        %v4515 = vpack.c.b16 %v3453, %v3435
        %v4516 = vpack.c.b16 %v3472, %v3454
        %v4517 = vpack.c.b16 %v3473, %v3455
        %v4518 = vpack.c.b16 %v3474, %v3456
        %v4519 = vpack.c.b16 %v3475, %v3457
        %v4520 = vpack.c.b16 %v3476, %v3458
        %v4521 = vpack.c.b16 %v3477, %v3459
        %v4522 = vpack.c.b16 %v3478, %v3460
        %v4523 = vpack.c.b16 %v3479, %v3461
        %v4524 = vpack.c.b16 %v3480, %v3462
        %v4525 = vpack.c.b16 %v3481, %v3463
        %v4526 = vpack.c.b16 %v3482, %v3464
        %v4527 = vpack.c.b16 %v3483, %v3465
        %v4528 = vpack.c.b16 %v3484, %v3466
        %v4529 = vpack.c.b16 %v3485, %v3467
        %v4530 = vpack.c.b16 %v3486, %v3468
        %v4531 = vpack.c.b16 %v3487, %v3469
        %v4532 = vpack.c.b16 %v3488, %v3470
        %v4533 = vpack.c.b16 %v3489, %v3471
        %v4534 = vpack.c.b16 %v3508, %v3490
        %v4535 = vpack.c.b16 %v3509, %v3491
        %v4536 = vpack.c.b16 %v3510, %v3492
        %v4537 = vpack.c.b16 %v3511, %v3493
        %v4538 = vpack.c.b16 %v3512, %v3494
        %v4539 = vpack.c.b16 %v3513, %v3495
        %v4540 = vpack.c.b16 %v3514, %v3496
        %v4541 = vpack.c.b16 %v3515, %v3497
        %v4542 = vpack.c.b16 %v3516, %v3498
        %v4543 = vpack.c.b16 %v3517, %v3499
        %v4544 = vpack.c.b16 %v3518, %v3500
        %v4545 = vpack.c.b16 %v3519, %v3501
        %v4546 = vpack.c.b16 %v3520, %v3502
        %v4547 = vpack.c.b16 %v3521, %v3503
        %v4548 = vpack.c.b16 %v3522, %v3504
        %v4549 = vpack.c.b16 %v3523, %v3505
        %v4550 = vpack.c.b16 %v3524, %v3506
        %v4551 = vpack.c.b16 %v3525, %v3507
        %v4552 = vpack.c.b16 %v3544, %v3526
        %v4553 = vpack.c.b16 %v3545, %v3527
        %v4554 = vpack.c.b16 %v3546, %v3528
        %v4555 = vpack.c.b16 %v3547, %v3529
        %v4556 = vpack.c.b16 %v3548, %v3530
        %v4557 = vpack.c.b16 %v3549, %v3531
        %v4558 = vpack.c.b16 %v3550, %v3532
        %v4559 = vpack.c.b16 %v3551, %v3533
        %v4560 = vpack.c.b16 %v3552, %v3534
        %v4561 = vpack.c.b16 %v3553, %v3535
        %v4562 = vpack.c.b16 %v3554, %v3536
        %v4563 = vpack.c.b16 %v3555, %v3537
        %v4564 = vpack.c.b16 %v3556, %v3538
        %v4565 = vpack.c.b16 %v3557, %v3539
        %v4566 = vpack.c.b16 %v3558, %v3540
        %v4567 = vpack.c.b16 %v3559, %v3541
        %v4568 = vpack.c.b16 %v3560, %v3542
        %v4569 = vpack.c.b16 %v3561, %v3543
        %v4570 = vpack.c.b16 %v3580, %v3562
        %v4571 = vpack.c.b16 %v3581, %v3563
        %v4572 = vpack.c.b16 %v3582, %v3564
        %v4573 = vpack.c.b16 %v3583, %v3565
        %v4574 = vpack.c.b16 %v3584, %v3566
        %v4575 = vpack.c.b16 %v3585, %v3567
        %v4576 = vpack.c.b16 %v3586, %v3568
        %v4577 = vpack.c.b16 %v3587, %v3569
        %v4578 = vpack.c.b16 %v3588, %v3570
        %v4579 = vpack.c.b16 %v3589, %v3571
        %v4580 = vpack.c.b16 %v3590, %v3572
        %v4581 = vpack.c.b16 %v3591, %v3573
        %v4582 = vpack.c.b16 %v3592, %v3574
        %v4583 = vpack.c.b16 %v3593, %v3575
        %v4584 = vpack.c.b16 %v3594, %v3576
        %v4585 = vpack.c.b16 %v3595, %v3577
        %v4586 = vpack.c.b16 %v3596, %v3578
        %v4587 = vpack.c.b16 %v3597, %v3579
        %v4588 = vpack.c.b16 %v3616, %v3598
        %v4589 = vpack.c.b16 %v3617, %v3599
        %v4590 = vpack.c.b16 %v3618, %v3600
        %v4591 = vpack.c.b16 %v3619, %v3601
        %v4592 = vpack.c.b16 %v3620, %v3602
        %v4593 = vpack.c.b16 %v3621, %v3603
        %v4594 = vpack.c.b16 %v3622, %v3604
        %v4595 = vpack.c.b16 %v3623, %v3605
        %v4596 = vpack.c.b16 %v3624, %v3606
        %v4597 = vpack.c.b16 %v3625, %v3607
        %v4598 = vpack.c.b16 %v3626, %v3608
        %v4599 = vpack.c.b16 %v3627, %v3609
        %v4600 = vpack.c.b16 %v3628, %v3610
        %v4601 = vpack.c.b16 %v3629, %v3611
        %v4602 = vpack.c.b16 %v3630, %v3612
        %v4603 = vpack.c.b16 %v3631, %v3613
        %v4604 = vpack.c.b16 %v3632, %v3614
        %v4605 = vpack.c.b16 %v3633, %v3615
        %v4606 = vpack.c.b16 %v3652, %v3634
        %v4607 = vpack.c.b16 %v3653, %v3635
        %v4608 = vpack.c.b16 %v3654, %v3636
        %v4609 = vpack.c.b16 %v3655, %v3637
        %v4610 = vpack.c.b16 %v3656, %v3638
        %v4611 = vpack.c.b16 %v3657, %v3639
        %v4612 = vpack.c.b16 %v3658, %v3640
        %v4613 = vpack.c.b16 %v3659, %v3641
        %v4614 = vpack.c.b16 %v3660, %v3642
        %v4615 = vpack.c.b16 %v3661, %v3643
        %v4616 = vpack.c.b16 %v3662, %v3644
        %v4617 = vpack.c.b16 %v3663, %v3645
        %v4618 = vpack.c.b16 %v3664, %v3646
        %v4619 = vpack.c.b16 %v3665, %v3647
        %v4620 = vpack.c.b16 %v3666, %v3648
        %v4621 = vpack.c.b16 %v3667, %v3649
        %v4622 = vpack.c.b16 %v3668, %v3650
        %v4623 = vpack.c.b16 %v3669, %v3651
        %v4624 = vpack.c.b16 %v3688, %v3670
        %v4625 = vpack.c.b16 %v3689, %v3671
        %v4626 = vpack.c.b16 %v3690, %v3672
        %v4627 = vpack.c.b16 %v3691, %v3673
        %v4628 = vpack.c.b16 %v3692, %v3674
        %v4629 = vpack.c.b16 %v3693, %v3675
        %v4630 = vpack.c.b16 %v3694, %v3676
        %v4631 = vpack.c.b16 %v3695, %v3677
        %v4632 = vpack.c.b16 %v3696, %v3678
        %v4633 = vpack.c.b16 %v3697, %v3679
        %v4634 = vpack.c.b16 %v3698, %v3680
        %v4635 = vpack.c.b16 %v3699, %v3681
        %v4636 = vpack.c.b16 %v3700, %v3682
        %v4637 = vpack.c.b16 %v3701, %v3683
        %v4638 = vpack.c.b16 %v3702, %v3684
        %v4639 = vpack.c.b16 %v3703, %v3685
        %v4640 = vpack.c.b16 %v3704, %v3686
        %v4641 = vpack.c.b16 %v3705, %v3687
        %v4642 = vpack.c.b16 %v3724, %v3706
        %v4643 = vpack.c.b16 %v3725, %v3707
        %v4644 = vpack.c.b16 %v3726, %v3708
        %v4645 = vpack.c.b16 %v3727, %v3709
        %v4646 = vpack.c.b16 %v3728, %v3710
        %v4647 = vpack.c.b16 %v3729, %v3711
        %v4648 = vpack.c.b16 %v3730, %v3712
        %v4649 = vpack.c.b16 %v3731, %v3713
        %v4650 = vpack.c.b16 %v3732, %v3714
        %v4651 = vpack.c.b16 %v3733, %v3715
        %v4652 = vpack.c.b16 %v3734, %v3716
        %v4653 = vpack.c.b16 %v3735, %v3717
        %v4654 = vpack.c.b16 %v3736, %v3718
        %v4655 = vpack.c.b16 %v3737, %v3719
        %v4656 = vpack.c.b16 %v3738, %v3720
        %v4657 = vpack.c.b16 %v3739, %v3721
        %v4658 = vpack.c.b16 %v3740, %v3722
        %v4659 = vpack.c.b16 %v3741, %v3723
        %v4660 = vpack.c.b16 %v3760, %v3742
        %v4661 = vpack.c.b16 %v3761, %v3743
        %v4662 = vpack.c.b16 %v3762, %v3744
        %v4663 = vpack.c.b16 %v3763, %v3745
        %v4664 = vpack.c.b16 %v3764, %v3746
        %v4665 = vpack.c.b16 %v3765, %v3747
        %v4666 = vpack.c.b16 %v3766, %v3748
        %v4667 = vpack.c.b16 %v3767, %v3749
        %v4668 = vpack.c.b16 %v3768, %v3750
        %v4669 = vpack.c.b16 %v3769, %v3751
        %v4670 = vpack.c.b16 %v3770, %v3752
        %v4671 = vpack.c.b16 %v3771, %v3753
        %v4672 = vpack.c.b16 %v3772, %v3754
        %v4673 = vpack.c.b16 %v3773, %v3755
        %v4674 = vpack.c.b16 %v3774, %v3756
        %v4675 = vpack.c.b16 %v3775, %v3757
        %v4676 = vpack.c.b16 %v3776, %v3758
        %v4677 = vpack.c.b16 %v3777, %v3759
        %v4678 = vpack.c.b16 %v3796, %v3778
        %v4679 = vpack.c.b16 %v3797, %v3779
        %v4680 = vpack.c.b16 %v3798, %v3780
        %v4681 = vpack.c.b16 %v3799, %v3781
        %v4682 = vpack.c.b16 %v3800, %v3782
        %v4683 = vpack.c.b16 %v3801, %v3783
        %v4684 = vpack.c.b16 %v3802, %v3784
        %v4685 = vpack.c.b16 %v3803, %v3785
        %v4686 = vpack.c.b16 %v3804, %v3786
        %v4687 = vpack.c.b16 %v3805, %v3787
        %v4688 = vpack.c.b16 %v3806, %v3788
        %v4689 = vpack.c.b16 %v3807, %v3789
        %v4690 = vpack.c.b16 %v3808, %v3790
        %v4691 = vpack.c.b16 %v3809, %v3791
        %v4692 = vpack.c.b16 %v3810, %v3792
        %v4693 = vpack.c.b16 %v3811, %v3793
        %v4694 = vpack.c.b16 %v3812, %v3794
        %v4695 = vpack.c.b16 %v3813, %v3795
        %v4696 = vpack.c.b16 %v3832, %v3814
        %v4697 = vpack.c.b16 %v3833, %v3815
        %v4698 = vpack.c.b16 %v3834, %v3816
        %v4699 = vpack.c.b16 %v3835, %v3817
        %v4700 = vpack.c.b16 %v3836, %v3818
        %v4701 = vpack.c.b16 %v3837, %v3819
        %v4702 = vpack.c.b16 %v3838, %v3820
        %v4703 = vpack.c.b16 %v3839, %v3821
        %v4704 = vpack.c.b16 %v3840, %v3822
        %v4705 = vpack.c.b16 %v3841, %v3823
        %v4706 = vpack.c.b16 %v3842, %v3824
        %v4707 = vpack.c.b16 %v3843, %v3825
        %v4708 = vpack.c.b16 %v3844, %v3826
        %v4709 = vpack.c.b16 %v3845, %v3827
        %v4710 = vpack.c.b16 %v3846, %v3828
        %v4711 = vpack.c.b16 %v3847, %v3829
        %v4712 = vpack.c.b16 %v3848, %v3830
        %v4713 = vpack.c.b16 %v3849, %v3831
        %5578 = vmatprep.subr.bf16.mxu0 %v3977
        %5579 = vmatpush1.bf16.msra.mxu0 %v3976
        %5580 = vmatprep.subr.bf16.mxu0 %v3959
        %5581 = vmatpush1.bf16.msra.mxu0 %v3958
        %5582 = vmatprep.subr.bf16.mxu0 %v3941
        %5583 = vmatpush1.bf16.msra.mxu0 %v3940
        %5584 = vmatprep.subr.bf16.mxu0 %v3923
        %5585 = vmatpush1.bf16.msra.mxu0 %v3922
        %5586 = vmatprep.subr.bf16.mxu0 %v3905
        %5587 = vmatpush1.bf16.msra.mxu0 %v3904
        %5588 = vmatprep.subr.bf16.mxu0 %v3887
        %5589 = vmatpush1.bf16.msra.mxu0 %v3886
        %5590 = vmatprep.subr.bf16.mxu0 %v3869
        %5591 = vmatpush1.bf16.msra.mxu0 %v3868
        %5592 = vmatprep.subr.bf16.mxu0 %v3851
        %5593 = vmatpush1.bf16.msra.mxu0 %v3850
        %5594 = vmatprep.subr.bf16.mxu0 %v4121
        %5595 = vmatpush2.bf16.msra.mxu0 %v4120
        %5596 = vmatprep.subr.bf16.mxu0 %v4103
        %5597 = vmatpush2.bf16.msra.mxu0 %v4102
        %5598 = vmatprep.subr.bf16.mxu0 %v4085
        %5599 = vmatpush2.bf16.msra.mxu0 %v4084
        %5600 = vmatprep.subr.bf16.mxu0 %v4067
        %5601 = vmatpush2.bf16.msra.mxu0 %v4066
        %5602 = vmatprep.subr.bf16.mxu0 %v4049
        %5603 = vmatpush2.bf16.msra.mxu0 %v4048
        %5604 = vmatprep.subr.bf16.mxu0 %v4031
        %5605 = vmatpush2.bf16.msra.mxu0 %v4030
        %5606 = vmatprep.subr.bf16.mxu0 %v4013
        %5607 = vmatpush2.bf16.msra.mxu0 %v4012
        %5608 = vmatprep.subr.bf16.mxu0 %v3995
        %5609 = vmatpush2.bf16.msra.mxu0 %v3994
        %5610 = vmatprep.mubr.bf16.mxu0 %v293
        %5611 = vmatmul.mubr.bf16.gmra.mxu0 %v292
        %v5612 = vpop.f32.mrf.mxu0
        %v5613 = vadd.f32 %v1171, %v5612
        %v5614 = vpop.f32.mrf.mxu0
        %v5615 = vadd.f32 %v1175, %v5614
        %v5616 = vpop.f32.mrf.mxu0
        %v5617 = vpop.f32.mrf.mxu0
        %5618 = vdwg.mxu0
        %5619 = vmatprep.subr.bf16.mxu0 %v4265
        %5620 = vmatpush1.bf16.msra.mxu0 %v4264
        %5621 = vmatprep.subr.bf16.mxu0 %v4247
        %5622 = vmatpush1.bf16.msra.mxu0 %v4246
        %5623 = vmatprep.subr.bf16.mxu0 %v4229
        %5624 = vmatpush1.bf16.msra.mxu0 %v4228
        %5625 = vmatprep.subr.bf16.mxu0 %v4211
        %5626 = vmatpush1.bf16.msra.mxu0 %v4210
        %5627 = vmatprep.subr.bf16.mxu0 %v4193
        %5628 = vmatpush1.bf16.msra.mxu0 %v4192
        %5629 = vmatprep.subr.bf16.mxu0 %v4175
        %5630 = vmatpush1.bf16.msra.mxu0 %v4174
        %5631 = vmatprep.subr.bf16.mxu0 %v4157
        %5632 = vmatpush1.bf16.msra.mxu0 %v4156
        %5633 = vmatprep.subr.bf16.mxu0 %v4139
        %5634 = vmatpush1.bf16.msra.mxu0 %v4138
        %5635 = vmatprep.subr.bf16.mxu0 %v4409
        %5636 = vmatpush2.bf16.msra.mxu0 %v4408
        %5637 = vmatprep.subr.bf16.mxu0 %v4391
        %5638 = vmatpush2.bf16.msra.mxu0 %v4390
        %5639 = vmatprep.subr.bf16.mxu0 %v4373
        %5640 = vmatpush2.bf16.msra.mxu0 %v4372
        %5641 = vmatprep.subr.bf16.mxu0 %v4355
        %5642 = vmatpush2.bf16.msra.mxu0 %v4354
        %5643 = vmatprep.subr.bf16.mxu0 %v4337
        %5644 = vmatpush2.bf16.msra.mxu0 %v4336
        %5645 = vmatprep.subr.bf16.mxu0 %v4319
        %5646 = vmatpush2.bf16.msra.mxu0 %v4318
        %5647 = vmatprep.subr.bf16.mxu0 %v4301
        %5648 = vmatpush2.bf16.msra.mxu0 %v4300
        %5649 = vmatprep.subr.bf16.mxu0 %v4283
        %5650 = vmatpush2.bf16.msra.mxu0 %v4282
        %5651 = vmatprep.mubr.bf16.mxu0 %v295
        %5652 = vmatmul.mubr.bf16.gmra.mxu0 %v294
        %v5653 = vpop.f32.mrf.mxu0
        %v5654 = vadd.f32 %v5613, %v5653
        %v5655 = vpop.f32.mrf.mxu0
        %v5656 = vadd.f32 %v5615, %v5655
        %v5657 = vpop.f32.mrf.mxu0
        %v5658 = vpop.f32.mrf.mxu0
        %5659 = vdwg.mxu0
        %5660 = vmatprep.subr.bf16.mxu0 %v4553
        %5661 = vmatpush1.bf16.msra.mxu0 %v4552
        %5662 = vmatprep.subr.bf16.mxu0 %v4535
        %5663 = vmatpush1.bf16.msra.mxu0 %v4534
        %5664 = vmatprep.subr.bf16.mxu0 %v4517
        %5665 = vmatpush1.bf16.msra.mxu0 %v4516
        %5666 = vmatprep.subr.bf16.mxu0 %v4499
        %5667 = vmatpush1.bf16.msra.mxu0 %v4498
        %5668 = vmatprep.subr.bf16.mxu0 %v4481
        %5669 = vmatpush1.bf16.msra.mxu0 %v4480
        %5670 = vmatprep.subr.bf16.mxu0 %v4463
        %5671 = vmatpush1.bf16.msra.mxu0 %v4462
        %5672 = vmatprep.subr.bf16.mxu0 %v4445
        %5673 = vmatpush1.bf16.msra.mxu0 %v4444
        %5674 = vmatprep.subr.bf16.mxu0 %v4427
        %5675 = vmatpush1.bf16.msra.mxu0 %v4426
        %5676 = vmatprep.subr.bf16.mxu0 %v4697
        %5677 = vmatpush2.bf16.msra.mxu0 %v4696
        %5678 = vmatprep.subr.bf16.mxu0 %v4679
        %5679 = vmatpush2.bf16.msra.mxu0 %v4678
        %5680 = vmatprep.subr.bf16.mxu0 %v4661
        %5681 = vmatpush2.bf16.msra.mxu0 %v4660
        %5682 = vmatprep.subr.bf16.mxu0 %v4643
        %5683 = vmatpush2.bf16.msra.mxu0 %v4642
        %5684 = vmatprep.subr.bf16.mxu0 %v4625
        %5685 = vmatpush2.bf16.msra.mxu0 %v4624
        %5686 = vmatprep.subr.bf16.mxu0 %v4607
        %5687 = vmatpush2.bf16.msra.mxu0 %v4606
        %5688 = vmatprep.subr.bf16.mxu0 %v4589
        %5689 = vmatpush2.bf16.msra.mxu0 %v4588
        %5690 = vmatprep.subr.bf16.mxu0 %v4571
        %5691 = vmatpush2.bf16.msra.mxu0 %v4570
        %5692 = vmatprep.mubr.bf16.mxu0 %v297
        %5693 = vmatmul.mubr.bf16.gmra.mxu0 %v296
        %v5694 = vpop.f32.mrf.mxu0
        %v5695 = vadd.f32 %v5654, %v5694
        %v5696 = vpop.f32.mrf.mxu0
        %v5697 = vadd.f32 %v5656, %v5696
        %v5698 = vpop.f32.mrf.mxu0
        %v5699 = vpop.f32.mrf.mxu0
        %5700 = vdwg.mxu0
        %5701 = vmatprep.subr.bf16.mxu0 %v3979
        %5702 = vmatpush1.bf16.msra.mxu0 %v3978
        %5703 = vmatprep.subr.bf16.mxu0 %v3961
        %5704 = vmatpush1.bf16.msra.mxu0 %v3960
        %5705 = vmatprep.subr.bf16.mxu0 %v3943
        %5706 = vmatpush1.bf16.msra.mxu0 %v3942
        %5707 = vmatprep.subr.bf16.mxu0 %v3925
        %5708 = vmatpush1.bf16.msra.mxu0 %v3924
        %5709 = vmatprep.subr.bf16.mxu0 %v3907
        %5710 = vmatpush1.bf16.msra.mxu0 %v3906
        %5711 = vmatprep.subr.bf16.mxu0 %v3889
        %5712 = vmatpush1.bf16.msra.mxu0 %v3888
        %5713 = vmatprep.subr.bf16.mxu0 %v3871
        %5714 = vmatpush1.bf16.msra.mxu0 %v3870
        %5715 = vmatprep.subr.bf16.mxu0 %v3853
        %5716 = vmatpush1.bf16.msra.mxu0 %v3852
        %5717 = vmatprep.subr.bf16.mxu0 %v4123
        %5718 = vmatpush2.bf16.msra.mxu0 %v4122
        %5719 = vmatprep.subr.bf16.mxu0 %v4105
        %5720 = vmatpush2.bf16.msra.mxu0 %v4104
        %5721 = vmatprep.subr.bf16.mxu0 %v4087
        %5722 = vmatpush2.bf16.msra.mxu0 %v4086
        %5723 = vmatprep.subr.bf16.mxu0 %v4069
        %5724 = vmatpush2.bf16.msra.mxu0 %v4068
        %5725 = vmatprep.subr.bf16.mxu0 %v4051
        %5726 = vmatpush2.bf16.msra.mxu0 %v4050
        %5727 = vmatprep.subr.bf16.mxu0 %v4033
        %5728 = vmatpush2.bf16.msra.mxu0 %v4032
        %5729 = vmatprep.subr.bf16.mxu0 %v4015
        %5730 = vmatpush2.bf16.msra.mxu0 %v4014
        %5731 = vmatprep.subr.bf16.mxu0 %v3997
        %5732 = vmatpush2.bf16.msra.mxu0 %v3996
        %5733 = vmatprep.mubr.bf16.mxu0 %v293
        %5734 = vmatmul.mubr.bf16.gmra.mxu0 %v292
        %v5735 = vpop.f32.mrf.mxu0
        %v5736 = vadd.f32 %v1179, %v5735
        %v5737 = vpop.f32.mrf.mxu0
        %v5738 = vadd.f32 %v1183, %v5737
        %v5739 = vpop.f32.mrf.mxu0
        %v5740 = vpop.f32.mrf.mxu0
        %5741 = vdwg.mxu0
        %5742 = vmatprep.subr.bf16.mxu0 %v4267
        %5743 = vmatpush1.bf16.msra.mxu0 %v4266
        %5744 = vmatprep.subr.bf16.mxu0 %v4249
        %5745 = vmatpush1.bf16.msra.mxu0 %v4248
        %5746 = vmatprep.subr.bf16.mxu0 %v4231
        %5747 = vmatpush1.bf16.msra.mxu0 %v4230
        %5748 = vmatprep.subr.bf16.mxu0 %v4213
        %5749 = vmatpush1.bf16.msra.mxu0 %v4212
        %5750 = vmatprep.subr.bf16.mxu0 %v4195
        %5751 = vmatpush1.bf16.msra.mxu0 %v4194
        %5752 = vmatprep.subr.bf16.mxu0 %v4177
        %5753 = vmatpush1.bf16.msra.mxu0 %v4176
        %5754 = vmatprep.subr.bf16.mxu0 %v4159
        %5755 = vmatpush1.bf16.msra.mxu0 %v4158
        %5756 = vmatprep.subr.bf16.mxu0 %v4141
        %5757 = vmatpush1.bf16.msra.mxu0 %v4140
        %5758 = vmatprep.subr.bf16.mxu0 %v4411
        %5759 = vmatpush2.bf16.msra.mxu0 %v4410
        %5760 = vmatprep.subr.bf16.mxu0 %v4393
        %5761 = vmatpush2.bf16.msra.mxu0 %v4392
        %5762 = vmatprep.subr.bf16.mxu0 %v4375
        %5763 = vmatpush2.bf16.msra.mxu0 %v4374
        %5764 = vmatprep.subr.bf16.mxu0 %v4357
        %5765 = vmatpush2.bf16.msra.mxu0 %v4356
        %5766 = vmatprep.subr.bf16.mxu0 %v4339
        %5767 = vmatpush2.bf16.msra.mxu0 %v4338
        %5768 = vmatprep.subr.bf16.mxu0 %v4321
        %5769 = vmatpush2.bf16.msra.mxu0 %v4320
        %5770 = vmatprep.subr.bf16.mxu0 %v4303
        %5771 = vmatpush2.bf16.msra.mxu0 %v4302
        %5772 = vmatprep.subr.bf16.mxu0 %v4285
        %5773 = vmatpush2.bf16.msra.mxu0 %v4284
        %5774 = vmatprep.mubr.bf16.mxu0 %v295
        %5775 = vmatmul.mubr.bf16.gmra.mxu0 %v294
        %v5776 = vpop.f32.mrf.mxu0
        %v5777 = vadd.f32 %v5736, %v5776
        %v5778 = vpop.f32.mrf.mxu0
        %v5779 = vadd.f32 %v5738, %v5778
        %v5780 = vpop.f32.mrf.mxu0
        %v5781 = vpop.f32.mrf.mxu0
        %5782 = vdwg.mxu0
        %5783 = vmatprep.subr.bf16.mxu0 %v4555
        %5784 = vmatpush1.bf16.msra.mxu0 %v4554
        %5785 = vmatprep.subr.bf16.mxu0 %v4537
        %5786 = vmatpush1.bf16.msra.mxu0 %v4536
        %5787 = vmatprep.subr.bf16.mxu0 %v4519
        %5788 = vmatpush1.bf16.msra.mxu0 %v4518
        %5789 = vmatprep.subr.bf16.mxu0 %v4501
        %5790 = vmatpush1.bf16.msra.mxu0 %v4500
        %5791 = vmatprep.subr.bf16.mxu0 %v4483
        %5792 = vmatpush1.bf16.msra.mxu0 %v4482
        %5793 = vmatprep.subr.bf16.mxu0 %v4465
        %5794 = vmatpush1.bf16.msra.mxu0 %v4464
        %5795 = vmatprep.subr.bf16.mxu0 %v4447
        %5796 = vmatpush1.bf16.msra.mxu0 %v4446
        %5797 = vmatprep.subr.bf16.mxu0 %v4429
        %5798 = vmatpush1.bf16.msra.mxu0 %v4428
        %5799 = vmatprep.subr.bf16.mxu0 %v4699
        %5800 = vmatpush2.bf16.msra.mxu0 %v4698
        %5801 = vmatprep.subr.bf16.mxu0 %v4681
        %5802 = vmatpush2.bf16.msra.mxu0 %v4680
        %5803 = vmatprep.subr.bf16.mxu0 %v4663
        %5804 = vmatpush2.bf16.msra.mxu0 %v4662
        %5805 = vmatprep.subr.bf16.mxu0 %v4645
        %5806 = vmatpush2.bf16.msra.mxu0 %v4644
        %5807 = vmatprep.subr.bf16.mxu0 %v4627
        %5808 = vmatpush2.bf16.msra.mxu0 %v4626
        %5809 = vmatprep.subr.bf16.mxu0 %v4609
        %5810 = vmatpush2.bf16.msra.mxu0 %v4608
        %5811 = vmatprep.subr.bf16.mxu0 %v4591
        %5812 = vmatpush2.bf16.msra.mxu0 %v4590
        %5813 = vmatprep.subr.bf16.mxu0 %v4573
        %5814 = vmatpush2.bf16.msra.mxu0 %v4572
        %5815 = vmatprep.mubr.bf16.mxu0 %v297
        %5816 = vmatmul.mubr.bf16.gmra.mxu0 %v296
        %v5817 = vpop.f32.mrf.mxu0
        %v5818 = vadd.f32 %v5777, %v5817
        %v5819 = vpop.f32.mrf.mxu0
        %v5820 = vadd.f32 %v5779, %v5819
        %v5821 = vpop.f32.mrf.mxu0
        %v5822 = vpop.f32.mrf.mxu0
        %5823 = vdwg.mxu0
        %5824 = vmatprep.subr.bf16.mxu0 %v3981
        %5825 = vmatpush1.bf16.msra.mxu0 %v3980
        %5826 = vmatprep.subr.bf16.mxu0 %v3963
        %5827 = vmatpush1.bf16.msra.mxu0 %v3962
        %5828 = vmatprep.subr.bf16.mxu0 %v3945
        %5829 = vmatpush1.bf16.msra.mxu0 %v3944
        %5830 = vmatprep.subr.bf16.mxu0 %v3927
        %5831 = vmatpush1.bf16.msra.mxu0 %v3926
        %5832 = vmatprep.subr.bf16.mxu0 %v3909
        %5833 = vmatpush1.bf16.msra.mxu0 %v3908
        %5834 = vmatprep.subr.bf16.mxu0 %v3891
        %5835 = vmatpush1.bf16.msra.mxu0 %v3890
        %5836 = vmatprep.subr.bf16.mxu0 %v3873
        %5837 = vmatpush1.bf16.msra.mxu0 %v3872
        %5838 = vmatprep.subr.bf16.mxu0 %v3855
        %5839 = vmatpush1.bf16.msra.mxu0 %v3854
        %5840 = vmatprep.subr.bf16.mxu0 %v4125
        %5841 = vmatpush2.bf16.msra.mxu0 %v4124
        %5842 = vmatprep.subr.bf16.mxu0 %v4107
        %5843 = vmatpush2.bf16.msra.mxu0 %v4106
        %5844 = vmatprep.subr.bf16.mxu0 %v4089
        %5845 = vmatpush2.bf16.msra.mxu0 %v4088
        %5846 = vmatprep.subr.bf16.mxu0 %v4071
        %5847 = vmatpush2.bf16.msra.mxu0 %v4070
        %5848 = vmatprep.subr.bf16.mxu0 %v4053
        %5849 = vmatpush2.bf16.msra.mxu0 %v4052
        %5850 = vmatprep.subr.bf16.mxu0 %v4035
        %5851 = vmatpush2.bf16.msra.mxu0 %v4034
        %5852 = vmatprep.subr.bf16.mxu0 %v4017
        %5853 = vmatpush2.bf16.msra.mxu0 %v4016
        %5854 = vmatprep.subr.bf16.mxu0 %v3999
        %5855 = vmatpush2.bf16.msra.mxu0 %v3998
        %5856 = vmatprep.mubr.bf16.mxu0 %v293
        %5857 = vmatmul.mubr.bf16.gmra.mxu0 %v292
        %v5858 = vpop.f32.mrf.mxu0
        %v5859 = vadd.f32 %v1187, %v5858
        %v5860 = vpop.f32.mrf.mxu0
        %v5861 = vadd.f32 %v1191, %v5860
        %v5862 = vpop.f32.mrf.mxu0
        %v5863 = vpop.f32.mrf.mxu0
        %5864 = vdwg.mxu0
        %5865 = vmatprep.subr.bf16.mxu0 %v4269
        %5866 = vmatpush1.bf16.msra.mxu0 %v4268
        %5867 = vmatprep.subr.bf16.mxu0 %v4251
        %5868 = vmatpush1.bf16.msra.mxu0 %v4250
        %5869 = vmatprep.subr.bf16.mxu0 %v4233
        %5870 = vmatpush1.bf16.msra.mxu0 %v4232
        %5871 = vmatprep.subr.bf16.mxu0 %v4215
        %5872 = vmatpush1.bf16.msra.mxu0 %v4214
        %5873 = vmatprep.subr.bf16.mxu0 %v4197
        %5874 = vmatpush1.bf16.msra.mxu0 %v4196
        %5875 = vmatprep.subr.bf16.mxu0 %v4179
        %5876 = vmatpush1.bf16.msra.mxu0 %v4178
        %5877 = vmatprep.subr.bf16.mxu0 %v4161
        %5878 = vmatpush1.bf16.msra.mxu0 %v4160
        %5879 = vmatprep.subr.bf16.mxu0 %v4143
        %5880 = vmatpush1.bf16.msra.mxu0 %v4142
        %5881 = vmatprep.subr.bf16.mxu0 %v4413
        %5882 = vmatpush2.bf16.msra.mxu0 %v4412
        %5883 = vmatprep.subr.bf16.mxu0 %v4395
        %5884 = vmatpush2.bf16.msra.mxu0 %v4394
        %5885 = vmatprep.subr.bf16.mxu0 %v4377
        %5886 = vmatpush2.bf16.msra.mxu0 %v4376
        %5887 = vmatprep.subr.bf16.mxu0 %v4359
        %5888 = vmatpush2.bf16.msra.mxu0 %v4358
        %5889 = vmatprep.subr.bf16.mxu0 %v4341
        %5890 = vmatpush2.bf16.msra.mxu0 %v4340
        %5891 = vmatprep.subr.bf16.mxu0 %v4323
        %5892 = vmatpush2.bf16.msra.mxu0 %v4322
        %5893 = vmatprep.subr.bf16.mxu0 %v4305
        %5894 = vmatpush2.bf16.msra.mxu0 %v4304
        %5895 = vmatprep.subr.bf16.mxu0 %v4287
        %5896 = vmatpush2.bf16.msra.mxu0 %v4286
        %5897 = vmatprep.mubr.bf16.mxu0 %v295
        %5898 = vmatmul.mubr.bf16.gmra.mxu0 %v294
        %v5899 = vpop.f32.mrf.mxu0
        %v5900 = vadd.f32 %v5859, %v5899
        %v5901 = vpop.f32.mrf.mxu0
        %v5902 = vadd.f32 %v5861, %v5901
        %v5903 = vpop.f32.mrf.mxu0
        %v5904 = vpop.f32.mrf.mxu0
        %5905 = vdwg.mxu0
        %5906 = vmatprep.subr.bf16.mxu0 %v4557
        %5907 = vmatpush1.bf16.msra.mxu0 %v4556
        %5908 = vmatprep.subr.bf16.mxu0 %v4539
        %5909 = vmatpush1.bf16.msra.mxu0 %v4538
        %5910 = vmatprep.subr.bf16.mxu0 %v4521
        %5911 = vmatpush1.bf16.msra.mxu0 %v4520
        %5912 = vmatprep.subr.bf16.mxu0 %v4503
        %5913 = vmatpush1.bf16.msra.mxu0 %v4502
        %5914 = vmatprep.subr.bf16.mxu0 %v4485
        %5915 = vmatpush1.bf16.msra.mxu0 %v4484
        %5916 = vmatprep.subr.bf16.mxu0 %v4467
        %5917 = vmatpush1.bf16.msra.mxu0 %v4466
        %5918 = vmatprep.subr.bf16.mxu0 %v4449
        %5919 = vmatpush1.bf16.msra.mxu0 %v4448
        %5920 = vmatprep.subr.bf16.mxu0 %v4431
        %5921 = vmatpush1.bf16.msra.mxu0 %v4430
        %5922 = vmatprep.subr.bf16.mxu0 %v4701
        %5923 = vmatpush2.bf16.msra.mxu0 %v4700
        %5924 = vmatprep.subr.bf16.mxu0 %v4683
        %5925 = vmatpush2.bf16.msra.mxu0 %v4682
        %5926 = vmatprep.subr.bf16.mxu0 %v4665
        %5927 = vmatpush2.bf16.msra.mxu0 %v4664
        %5928 = vmatprep.subr.bf16.mxu0 %v4647
        %5929 = vmatpush2.bf16.msra.mxu0 %v4646
        %5930 = vmatprep.subr.bf16.mxu0 %v4629
        %5931 = vmatpush2.bf16.msra.mxu0 %v4628
        %5932 = vmatprep.subr.bf16.mxu0 %v4611
        %5933 = vmatpush2.bf16.msra.mxu0 %v4610
        %5934 = vmatprep.subr.bf16.mxu0 %v4593
        %5935 = vmatpush2.bf16.msra.mxu0 %v4592
        %5936 = vmatprep.subr.bf16.mxu0 %v4575
        %5937 = vmatpush2.bf16.msra.mxu0 %v4574
        %5938 = vmatprep.mubr.bf16.mxu0 %v297
        %5939 = vmatmul.mubr.bf16.gmra.mxu0 %v296
        %v5940 = vpop.f32.mrf.mxu0
        %v5941 = vadd.f32 %v5900, %v5940
        %v5942 = vpop.f32.mrf.mxu0
        %v5943 = vadd.f32 %v5902, %v5942
        %v5944 = vpop.f32.mrf.mxu0
        %v5945 = vpop.f32.mrf.mxu0
        %5946 = vdwg.mxu0
        %5947 = vmatprep.subr.bf16.mxu0 %v3983
        %5948 = vmatpush1.bf16.msra.mxu0 %v3982
        %5949 = vmatprep.subr.bf16.mxu0 %v3965
        %5950 = vmatpush1.bf16.msra.mxu0 %v3964
        %5951 = vmatprep.subr.bf16.mxu0 %v3947
        %5952 = vmatpush1.bf16.msra.mxu0 %v3946
        %5953 = vmatprep.subr.bf16.mxu0 %v3929
        %5954 = vmatpush1.bf16.msra.mxu0 %v3928
        %5955 = vmatprep.subr.bf16.mxu0 %v3911
        %5956 = vmatpush1.bf16.msra.mxu0 %v3910
        %5957 = vmatprep.subr.bf16.mxu0 %v3893
        %5958 = vmatpush1.bf16.msra.mxu0 %v3892
        %5959 = vmatprep.subr.bf16.mxu0 %v3875
        %5960 = vmatpush1.bf16.msra.mxu0 %v3874
        %5961 = vmatprep.subr.bf16.mxu0 %v3857
        %5962 = vmatpush1.bf16.msra.mxu0 %v3856
        %5963 = vmatprep.subr.bf16.mxu0 %v4127
        %5964 = vmatpush2.bf16.msra.mxu0 %v4126
        %5965 = vmatprep.subr.bf16.mxu0 %v4109
        %5966 = vmatpush2.bf16.msra.mxu0 %v4108
        %5967 = vmatprep.subr.bf16.mxu0 %v4091
        %5968 = vmatpush2.bf16.msra.mxu0 %v4090
        %5969 = vmatprep.subr.bf16.mxu0 %v4073
        %5970 = vmatpush2.bf16.msra.mxu0 %v4072
        %5971 = vmatprep.subr.bf16.mxu0 %v4055
        %5972 = vmatpush2.bf16.msra.mxu0 %v4054
        %5973 = vmatprep.subr.bf16.mxu0 %v4037
        %5974 = vmatpush2.bf16.msra.mxu0 %v4036
        %5975 = vmatprep.subr.bf16.mxu0 %v4019
        %5976 = vmatpush2.bf16.msra.mxu0 %v4018
        %5977 = vmatprep.subr.bf16.mxu0 %v4001
        %5978 = vmatpush2.bf16.msra.mxu0 %v4000
        %5979 = vmatprep.mubr.bf16.mxu0 %v293
        %5980 = vmatmul.mubr.bf16.gmra.mxu0 %v292
        %v5981 = vpop.f32.mrf.mxu0
        %v5982 = vadd.f32 %v1195, %v5981
        %v5983 = vpop.f32.mrf.mxu0
        %v5984 = vadd.f32 %v1199, %v5983
        %v5985 = vpop.f32.mrf.mxu0
        %v5986 = vpop.f32.mrf.mxu0
        %5987 = vdwg.mxu0
        %5988 = vmatprep.subr.bf16.mxu0 %v4271
        %5989 = vmatpush1.bf16.msra.mxu0 %v4270
        %5990 = vmatprep.subr.bf16.mxu0 %v4253
        %5991 = vmatpush1.bf16.msra.mxu0 %v4252
        %5992 = vmatprep.subr.bf16.mxu0 %v4235
        %5993 = vmatpush1.bf16.msra.mxu0 %v4234
        %5994 = vmatprep.subr.bf16.mxu0 %v4217
        %5995 = vmatpush1.bf16.msra.mxu0 %v4216
        %5996 = vmatprep.subr.bf16.mxu0 %v4199
        %5997 = vmatpush1.bf16.msra.mxu0 %v4198
        %5998 = vmatprep.subr.bf16.mxu0 %v4181
        %5999 = vmatpush1.bf16.msra.mxu0 %v4180
        %6000 = vmatprep.subr.bf16.mxu0 %v4163
        %6001 = vmatpush1.bf16.msra.mxu0 %v4162
        %6002 = vmatprep.subr.bf16.mxu0 %v4145
        %6003 = vmatpush1.bf16.msra.mxu0 %v4144
        %6004 = vmatprep.subr.bf16.mxu0 %v4415
        %6005 = vmatpush2.bf16.msra.mxu0 %v4414
        %6006 = vmatprep.subr.bf16.mxu0 %v4397
        %6007 = vmatpush2.bf16.msra.mxu0 %v4396
        %6008 = vmatprep.subr.bf16.mxu0 %v4379
        %6009 = vmatpush2.bf16.msra.mxu0 %v4378
        %6010 = vmatprep.subr.bf16.mxu0 %v4361
        %6011 = vmatpush2.bf16.msra.mxu0 %v4360
        %6012 = vmatprep.subr.bf16.mxu0 %v4343
        %6013 = vmatpush2.bf16.msra.mxu0 %v4342
        %6014 = vmatprep.subr.bf16.mxu0 %v4325
        %6015 = vmatpush2.bf16.msra.mxu0 %v4324
        %6016 = vmatprep.subr.bf16.mxu0 %v4307
        %6017 = vmatpush2.bf16.msra.mxu0 %v4306
        %6018 = vmatprep.subr.bf16.mxu0 %v4289
        %6019 = vmatpush2.bf16.msra.mxu0 %v4288
        %6020 = vmatprep.mubr.bf16.mxu0 %v295
        %6021 = vmatmul.mubr.bf16.gmra.mxu0 %v294
        %v6022 = vpop.f32.mrf.mxu0
        %v6023 = vadd.f32 %v5982, %v6022
        %v6024 = vpop.f32.mrf.mxu0
        %v6025 = vadd.f32 %v5984, %v6024
        %v6026 = vpop.f32.mrf.mxu0
        %v6027 = vpop.f32.mrf.mxu0
        %6028 = vdwg.mxu0
        %6029 = vmatprep.subr.bf16.mxu0 %v4559
        %6030 = vmatpush1.bf16.msra.mxu0 %v4558
        %6031 = vmatprep.subr.bf16.mxu0 %v4541
        %6032 = vmatpush1.bf16.msra.mxu0 %v4540
        %6033 = vmatprep.subr.bf16.mxu0 %v4523
        %6034 = vmatpush1.bf16.msra.mxu0 %v4522
        %6035 = vmatprep.subr.bf16.mxu0 %v4505
        %6036 = vmatpush1.bf16.msra.mxu0 %v4504
        %6037 = vmatprep.subr.bf16.mxu0 %v4487
        %6038 = vmatpush1.bf16.msra.mxu0 %v4486
        %6039 = vmatprep.subr.bf16.mxu0 %v4469
        %6040 = vmatpush1.bf16.msra.mxu0 %v4468
        %6041 = vmatprep.subr.bf16.mxu0 %v4451
        %6042 = vmatpush1.bf16.msra.mxu0 %v4450
        %6043 = vmatprep.subr.bf16.mxu0 %v4433
        %6044 = vmatpush1.bf16.msra.mxu0 %v4432
        %6045 = vmatprep.subr.bf16.mxu0 %v4703
        %6046 = vmatpush2.bf16.msra.mxu0 %v4702
        %6047 = vmatprep.subr.bf16.mxu0 %v4685
        %6048 = vmatpush2.bf16.msra.mxu0 %v4684
        %6049 = vmatprep.subr.bf16.mxu0 %v4667
        %6050 = vmatpush2.bf16.msra.mxu0 %v4666
        %6051 = vmatprep.subr.bf16.mxu0 %v4649
        %6052 = vmatpush2.bf16.msra.mxu0 %v4648
        %6053 = vmatprep.subr.bf16.mxu0 %v4631
        %6054 = vmatpush2.bf16.msra.mxu0 %v4630
        %6055 = vmatprep.subr.bf16.mxu0 %v4613
        %6056 = vmatpush2.bf16.msra.mxu0 %v4612
        %6057 = vmatprep.subr.bf16.mxu0 %v4595
        %6058 = vmatpush2.bf16.msra.mxu0 %v4594
        %6059 = vmatprep.subr.bf16.mxu0 %v4577
        %6060 = vmatpush2.bf16.msra.mxu0 %v4576
        %6061 = vmatprep.mubr.bf16.mxu0 %v297
        %6062 = vmatmul.mubr.bf16.gmra.mxu0 %v296
        %v6063 = vpop.f32.mrf.mxu0
        %v6064 = vadd.f32 %v6023, %v6063
        %v6065 = vpop.f32.mrf.mxu0
        %v6066 = vadd.f32 %v6025, %v6065
        %v6067 = vpop.f32.mrf.mxu0
        %v6068 = vpop.f32.mrf.mxu0
        %6069 = vdwg.mxu0
        %6070 = vmatprep.subr.bf16.mxu0 %v3985
        %6071 = vmatpush1.bf16.msra.mxu0 %v3984
        %6072 = vmatprep.subr.bf16.mxu0 %v3967
        %6073 = vmatpush1.bf16.msra.mxu0 %v3966
        %6074 = vmatprep.subr.bf16.mxu0 %v3949
        %6075 = vmatpush1.bf16.msra.mxu0 %v3948
        %6076 = vmatprep.subr.bf16.mxu0 %v3931
        %6077 = vmatpush1.bf16.msra.mxu0 %v3930
        %6078 = vmatprep.subr.bf16.mxu0 %v3913
        %6079 = vmatpush1.bf16.msra.mxu0 %v3912
        %6080 = vmatprep.subr.bf16.mxu0 %v3895
        %6081 = vmatpush1.bf16.msra.mxu0 %v3894
        %6082 = vmatprep.subr.bf16.mxu0 %v3877
        %6083 = vmatpush1.bf16.msra.mxu0 %v3876
        %6084 = vmatprep.subr.bf16.mxu0 %v3859
        %6085 = vmatpush1.bf16.msra.mxu0 %v3858
        %6086 = vmatprep.subr.bf16.mxu0 %v4129
        %6087 = vmatpush2.bf16.msra.mxu0 %v4128
        %6088 = vmatprep.subr.bf16.mxu0 %v4111
        %6089 = vmatpush2.bf16.msra.mxu0 %v4110
        %6090 = vmatprep.subr.bf16.mxu0 %v4093
        %6091 = vmatpush2.bf16.msra.mxu0 %v4092
        %6092 = vmatprep.subr.bf16.mxu0 %v4075
        %6093 = vmatpush2.bf16.msra.mxu0 %v4074
        %6094 = vmatprep.subr.bf16.mxu0 %v4057
        %6095 = vmatpush2.bf16.msra.mxu0 %v4056
        %6096 = vmatprep.subr.bf16.mxu0 %v4039
        %6097 = vmatpush2.bf16.msra.mxu0 %v4038
        %6098 = vmatprep.subr.bf16.mxu0 %v4021
        %6099 = vmatpush2.bf16.msra.mxu0 %v4020
        %6100 = vmatprep.subr.bf16.mxu0 %v4003
        %6101 = vmatpush2.bf16.msra.mxu0 %v4002
        %6102 = vmatprep.mubr.bf16.mxu0 %v293
        %6103 = vmatmul.mubr.bf16.gmra.mxu0 %v292
        %v6104 = vpop.f32.mrf.mxu0
        %v6105 = vadd.f32 %v1203, %v6104
        %v6106 = vpop.f32.mrf.mxu0
        %v6107 = vadd.f32 %v1207, %v6106
        %v6108 = vpop.f32.mrf.mxu0
        %v6109 = vpop.f32.mrf.mxu0
        %6110 = vdwg.mxu0
        %6111 = vmatprep.subr.bf16.mxu0 %v4273
        %6112 = vmatpush1.bf16.msra.mxu0 %v4272
        %6113 = vmatprep.subr.bf16.mxu0 %v4255
        %6114 = vmatpush1.bf16.msra.mxu0 %v4254
        %6115 = vmatprep.subr.bf16.mxu0 %v4237
        %6116 = vmatpush1.bf16.msra.mxu0 %v4236
        %6117 = vmatprep.subr.bf16.mxu0 %v4219
        %6118 = vmatpush1.bf16.msra.mxu0 %v4218
        %6119 = vmatprep.subr.bf16.mxu0 %v4201
        %6120 = vmatpush1.bf16.msra.mxu0 %v4200
        %6121 = vmatprep.subr.bf16.mxu0 %v4183
        %6122 = vmatpush1.bf16.msra.mxu0 %v4182
        %6123 = vmatprep.subr.bf16.mxu0 %v4165
        %6124 = vmatpush1.bf16.msra.mxu0 %v4164
        %6125 = vmatprep.subr.bf16.mxu0 %v4147
        %6126 = vmatpush1.bf16.msra.mxu0 %v4146
        %6127 = vmatprep.subr.bf16.mxu0 %v4417
        %6128 = vmatpush2.bf16.msra.mxu0 %v4416
        %6129 = vmatprep.subr.bf16.mxu0 %v4399
        %6130 = vmatpush2.bf16.msra.mxu0 %v4398
        %6131 = vmatprep.subr.bf16.mxu0 %v4381
        %6132 = vmatpush2.bf16.msra.mxu0 %v4380
        %6133 = vmatprep.subr.bf16.mxu0 %v4363
        %6134 = vmatpush2.bf16.msra.mxu0 %v4362
        %6135 = vmatprep.subr.bf16.mxu0 %v4345
        %6136 = vmatpush2.bf16.msra.mxu0 %v4344
        %6137 = vmatprep.subr.bf16.mxu0 %v4327
        %6138 = vmatpush2.bf16.msra.mxu0 %v4326
        %6139 = vmatprep.subr.bf16.mxu0 %v4309
        %6140 = vmatpush2.bf16.msra.mxu0 %v4308
        %6141 = vmatprep.subr.bf16.mxu0 %v4291
        %6142 = vmatpush2.bf16.msra.mxu0 %v4290
        %6143 = vmatprep.mubr.bf16.mxu0 %v295
        %6144 = vmatmul.mubr.bf16.gmra.mxu0 %v294
        %v6145 = vpop.f32.mrf.mxu0
        %v6146 = vadd.f32 %v6105, %v6145
        %v6147 = vpop.f32.mrf.mxu0
        %v6148 = vadd.f32 %v6107, %v6147
        %v6149 = vpop.f32.mrf.mxu0
        %v6150 = vpop.f32.mrf.mxu0
        %6151 = vdwg.mxu0
        %6152 = vmatprep.subr.bf16.mxu0 %v4561
        %6153 = vmatpush1.bf16.msra.mxu0 %v4560
        %6154 = vmatprep.subr.bf16.mxu0 %v4543
        %6155 = vmatpush1.bf16.msra.mxu0 %v4542
        %6156 = vmatprep.subr.bf16.mxu0 %v4525
        %6157 = vmatpush1.bf16.msra.mxu0 %v4524
        %6158 = vmatprep.subr.bf16.mxu0 %v4507
        %6159 = vmatpush1.bf16.msra.mxu0 %v4506
        %6160 = vmatprep.subr.bf16.mxu0 %v4489
        %6161 = vmatpush1.bf16.msra.mxu0 %v4488
        %6162 = vmatprep.subr.bf16.mxu0 %v4471
        %6163 = vmatpush1.bf16.msra.mxu0 %v4470
        %6164 = vmatprep.subr.bf16.mxu0 %v4453
        %6165 = vmatpush1.bf16.msra.mxu0 %v4452
        %6166 = vmatprep.subr.bf16.mxu0 %v4435
        %6167 = vmatpush1.bf16.msra.mxu0 %v4434
        %6168 = vmatprep.subr.bf16.mxu0 %v4705
        %6169 = vmatpush2.bf16.msra.mxu0 %v4704
        %6170 = vmatprep.subr.bf16.mxu0 %v4687
        %6171 = vmatpush2.bf16.msra.mxu0 %v4686
        %6172 = vmatprep.subr.bf16.mxu0 %v4669
        %6173 = vmatpush2.bf16.msra.mxu0 %v4668
        %6174 = vmatprep.subr.bf16.mxu0 %v4651
        %6175 = vmatpush2.bf16.msra.mxu0 %v4650
        %6176 = vmatprep.subr.bf16.mxu0 %v4633
        %6177 = vmatpush2.bf16.msra.mxu0 %v4632
        %6178 = vmatprep.subr.bf16.mxu0 %v4615
        %6179 = vmatpush2.bf16.msra.mxu0 %v4614
        %6180 = vmatprep.subr.bf16.mxu0 %v4597
        %6181 = vmatpush2.bf16.msra.mxu0 %v4596
        %6182 = vmatprep.subr.bf16.mxu0 %v4579
        %6183 = vmatpush2.bf16.msra.mxu0 %v4578
        %6184 = vmatprep.mubr.bf16.mxu0 %v297
        %6185 = vmatmul.mubr.bf16.gmra.mxu0 %v296
        %v6186 = vpop.f32.mrf.mxu0
        %v6187 = vadd.f32 %v6146, %v6186
        %v6188 = vpop.f32.mrf.mxu0
        %v6189 = vadd.f32 %v6148, %v6188
        %v6190 = vpop.f32.mrf.mxu0
        %v6191 = vpop.f32.mrf.mxu0
        %6192 = vdwg.mxu0
        %6193 = vmatprep.subr.bf16.mxu0 %v3987
        %6194 = vmatpush1.bf16.msra.mxu0 %v3986
        %6195 = vmatprep.subr.bf16.mxu0 %v3969
        %6196 = vmatpush1.bf16.msra.mxu0 %v3968
        %6197 = vmatprep.subr.bf16.mxu0 %v3951
        %6198 = vmatpush1.bf16.msra.mxu0 %v3950
        %6199 = vmatprep.subr.bf16.mxu0 %v3933
        %6200 = vmatpush1.bf16.msra.mxu0 %v3932
        %6201 = vmatprep.subr.bf16.mxu0 %v3915
        %6202 = vmatpush1.bf16.msra.mxu0 %v3914
        %6203 = vmatprep.subr.bf16.mxu0 %v3897
        %6204 = vmatpush1.bf16.msra.mxu0 %v3896
        %6205 = vmatprep.subr.bf16.mxu0 %v3879
        %6206 = vmatpush1.bf16.msra.mxu0 %v3878
        %6207 = vmatprep.subr.bf16.mxu0 %v3861
        %6208 = vmatpush1.bf16.msra.mxu0 %v3860
        %6209 = vmatprep.subr.bf16.mxu0 %v4131
        %6210 = vmatpush2.bf16.msra.mxu0 %v4130
        %6211 = vmatprep.subr.bf16.mxu0 %v4113
        %6212 = vmatpush2.bf16.msra.mxu0 %v4112
        %6213 = vmatprep.subr.bf16.mxu0 %v4095
        %6214 = vmatpush2.bf16.msra.mxu0 %v4094
        %6215 = vmatprep.subr.bf16.mxu0 %v4077
        %6216 = vmatpush2.bf16.msra.mxu0 %v4076
        %6217 = vmatprep.subr.bf16.mxu0 %v4059
        %6218 = vmatpush2.bf16.msra.mxu0 %v4058
        %6219 = vmatprep.subr.bf16.mxu0 %v4041
        %6220 = vmatpush2.bf16.msra.mxu0 %v4040
        %6221 = vmatprep.subr.bf16.mxu0 %v4023
        %6222 = vmatpush2.bf16.msra.mxu0 %v4022
        %6223 = vmatprep.subr.bf16.mxu0 %v4005
        %6224 = vmatpush2.bf16.msra.mxu0 %v4004
        %6225 = vmatprep.mubr.bf16.mxu0 %v293
        %6226 = vmatmul.mubr.bf16.gmra.mxu0 %v292
        %v6227 = vpop.f32.mrf.mxu0
        %v6228 = vadd.f32 %v1211, %v6227
        %v6229 = vpop.f32.mrf.mxu0
        %v6230 = vadd.f32 %v1215, %v6229
        %v6231 = vpop.f32.mrf.mxu0
        %v6232 = vpop.f32.mrf.mxu0
        %6233 = vdwg.mxu0
        %6234 = vmatprep.subr.bf16.mxu0 %v4275
        %6235 = vmatpush1.bf16.msra.mxu0 %v4274
        %6236 = vmatprep.subr.bf16.mxu0 %v4257
        %6237 = vmatpush1.bf16.msra.mxu0 %v4256
        %6238 = vmatprep.subr.bf16.mxu0 %v4239
        %6239 = vmatpush1.bf16.msra.mxu0 %v4238
        %6240 = vmatprep.subr.bf16.mxu0 %v4221
        %6241 = vmatpush1.bf16.msra.mxu0 %v4220
        %6242 = vmatprep.subr.bf16.mxu0 %v4203
        %6243 = vmatpush1.bf16.msra.mxu0 %v4202
        %6244 = vmatprep.subr.bf16.mxu0 %v4185
        %6245 = vmatpush1.bf16.msra.mxu0 %v4184
        %6246 = vmatprep.subr.bf16.mxu0 %v4167
        %6247 = vmatpush1.bf16.msra.mxu0 %v4166
        %6248 = vmatprep.subr.bf16.mxu0 %v4149
        %6249 = vmatpush1.bf16.msra.mxu0 %v4148
        %6250 = vmatprep.subr.bf16.mxu0 %v4419
        %6251 = vmatpush2.bf16.msra.mxu0 %v4418
        %6252 = vmatprep.subr.bf16.mxu0 %v4401
        %6253 = vmatpush2.bf16.msra.mxu0 %v4400
        %6254 = vmatprep.subr.bf16.mxu0 %v4383
        %6255 = vmatpush2.bf16.msra.mxu0 %v4382
        %6256 = vmatprep.subr.bf16.mxu0 %v4365
        %6257 = vmatpush2.bf16.msra.mxu0 %v4364
        %6258 = vmatprep.subr.bf16.mxu0 %v4347
        %6259 = vmatpush2.bf16.msra.mxu0 %v4346
        %6260 = vmatprep.subr.bf16.mxu0 %v4329
        %6261 = vmatpush2.bf16.msra.mxu0 %v4328
        %6262 = vmatprep.subr.bf16.mxu0 %v4311
        %6263 = vmatpush2.bf16.msra.mxu0 %v4310
        %6264 = vmatprep.subr.bf16.mxu0 %v4293
        %6265 = vmatpush2.bf16.msra.mxu0 %v4292
        %6266 = vmatprep.mubr.bf16.mxu0 %v295
        %6267 = vmatmul.mubr.bf16.gmra.mxu0 %v294
        %v6268 = vpop.f32.mrf.mxu0
        %v6269 = vadd.f32 %v6228, %v6268
        %v6270 = vpop.f32.mrf.mxu0
        %v6271 = vadd.f32 %v6230, %v6270
        %v6272 = vpop.f32.mrf.mxu0
        %v6273 = vpop.f32.mrf.mxu0
        %6274 = vdwg.mxu0
        %6275 = vmatprep.subr.bf16.mxu0 %v4563
        %6276 = vmatpush1.bf16.msra.mxu0 %v4562
        %6277 = vmatprep.subr.bf16.mxu0 %v4545
        %6278 = vmatpush1.bf16.msra.mxu0 %v4544
        %6279 = vmatprep.subr.bf16.mxu0 %v4527
        %6280 = vmatpush1.bf16.msra.mxu0 %v4526
        %6281 = vmatprep.subr.bf16.mxu0 %v4509
        %6282 = vmatpush1.bf16.msra.mxu0 %v4508
        %6283 = vmatprep.subr.bf16.mxu0 %v4491
        %6284 = vmatpush1.bf16.msra.mxu0 %v4490
        %6285 = vmatprep.subr.bf16.mxu0 %v4473
        %6286 = vmatpush1.bf16.msra.mxu0 %v4472
        %6287 = vmatprep.subr.bf16.mxu0 %v4455
        %6288 = vmatpush1.bf16.msra.mxu0 %v4454
        %6289 = vmatprep.subr.bf16.mxu0 %v4437
        %6290 = vmatpush1.bf16.msra.mxu0 %v4436
        %6291 = vmatprep.subr.bf16.mxu0 %v4707
        %6292 = vmatpush2.bf16.msra.mxu0 %v4706
        %6293 = vmatprep.subr.bf16.mxu0 %v4689
        %6294 = vmatpush2.bf16.msra.mxu0 %v4688
        %6295 = vmatprep.subr.bf16.mxu0 %v4671
        %6296 = vmatpush2.bf16.msra.mxu0 %v4670
        %6297 = vmatprep.subr.bf16.mxu0 %v4653
        %6298 = vmatpush2.bf16.msra.mxu0 %v4652
        %6299 = vmatprep.subr.bf16.mxu0 %v4635
        %6300 = vmatpush2.bf16.msra.mxu0 %v4634
        %6301 = vmatprep.subr.bf16.mxu0 %v4617
        %6302 = vmatpush2.bf16.msra.mxu0 %v4616
        %6303 = vmatprep.subr.bf16.mxu0 %v4599
        %6304 = vmatpush2.bf16.msra.mxu0 %v4598
        %6305 = vmatprep.subr.bf16.mxu0 %v4581
        %6306 = vmatpush2.bf16.msra.mxu0 %v4580
        %6307 = vmatprep.mubr.bf16.mxu0 %v297
        %6308 = vmatmul.mubr.bf16.gmra.mxu0 %v296
        %v6309 = vpop.f32.mrf.mxu0
        %v6310 = vadd.f32 %v6269, %v6309
        %v6311 = vpop.f32.mrf.mxu0
        %v6312 = vadd.f32 %v6271, %v6311
        %v6313 = vpop.f32.mrf.mxu0
        %v6314 = vpop.f32.mrf.mxu0
        %6315 = vdwg.mxu0
        %6316 = vmatprep.subr.bf16.mxu0 %v3989
        %6317 = vmatpush1.bf16.msra.mxu0 %v3988
        %6318 = vmatprep.subr.bf16.mxu0 %v3971
        %6319 = vmatpush1.bf16.msra.mxu0 %v3970
        %6320 = vmatprep.subr.bf16.mxu0 %v3953
        %6321 = vmatpush1.bf16.msra.mxu0 %v3952
        %6322 = vmatprep.subr.bf16.mxu0 %v3935
        %6323 = vmatpush1.bf16.msra.mxu0 %v3934
        %6324 = vmatprep.subr.bf16.mxu0 %v3917
        %6325 = vmatpush1.bf16.msra.mxu0 %v3916
        %6326 = vmatprep.subr.bf16.mxu0 %v3899
        %6327 = vmatpush1.bf16.msra.mxu0 %v3898
        %6328 = vmatprep.subr.bf16.mxu0 %v3881
        %6329 = vmatpush1.bf16.msra.mxu0 %v3880
        %6330 = vmatprep.subr.bf16.mxu0 %v3863
        %6331 = vmatpush1.bf16.msra.mxu0 %v3862
        %6332 = vmatprep.subr.bf16.mxu0 %v4133
        %6333 = vmatpush2.bf16.msra.mxu0 %v4132
        %6334 = vmatprep.subr.bf16.mxu0 %v4115
        %6335 = vmatpush2.bf16.msra.mxu0 %v4114
        %6336 = vmatprep.subr.bf16.mxu0 %v4097
        %6337 = vmatpush2.bf16.msra.mxu0 %v4096
        %6338 = vmatprep.subr.bf16.mxu0 %v4079
        %6339 = vmatpush2.bf16.msra.mxu0 %v4078
        %6340 = vmatprep.subr.bf16.mxu0 %v4061
        %6341 = vmatpush2.bf16.msra.mxu0 %v4060
        %6342 = vmatprep.subr.bf16.mxu0 %v4043
        %6343 = vmatpush2.bf16.msra.mxu0 %v4042
        %6344 = vmatprep.subr.bf16.mxu0 %v4025
        %6345 = vmatpush2.bf16.msra.mxu0 %v4024
        %6346 = vmatprep.subr.bf16.mxu0 %v4007
        %6347 = vmatpush2.bf16.msra.mxu0 %v4006
        %6348 = vmatprep.mubr.bf16.mxu0 %v293
        %6349 = vmatmul.mubr.bf16.gmra.mxu0 %v292
        %v6350 = vpop.f32.mrf.mxu0
        %v6351 = vadd.f32 %v1219, %v6350
        %v6352 = vpop.f32.mrf.mxu0
        %v6353 = vadd.f32 %v1223, %v6352
        %v6354 = vpop.f32.mrf.mxu0
        %v6355 = vpop.f32.mrf.mxu0
        %6356 = vdwg.mxu0
        %6357 = vmatprep.subr.bf16.mxu0 %v4277
        %6358 = vmatpush1.bf16.msra.mxu0 %v4276
        %6359 = vmatprep.subr.bf16.mxu0 %v4259
        %6360 = vmatpush1.bf16.msra.mxu0 %v4258
        %6361 = vmatprep.subr.bf16.mxu0 %v4241
        %6362 = vmatpush1.bf16.msra.mxu0 %v4240
        %6363 = vmatprep.subr.bf16.mxu0 %v4223
        %6364 = vmatpush1.bf16.msra.mxu0 %v4222
        %6365 = vmatprep.subr.bf16.mxu0 %v4205
        %6366 = vmatpush1.bf16.msra.mxu0 %v4204
        %6367 = vmatprep.subr.bf16.mxu0 %v4187
        %6368 = vmatpush1.bf16.msra.mxu0 %v4186
        %6369 = vmatprep.subr.bf16.mxu0 %v4169
        %6370 = vmatpush1.bf16.msra.mxu0 %v4168
        %6371 = vmatprep.subr.bf16.mxu0 %v4151
        %6372 = vmatpush1.bf16.msra.mxu0 %v4150
        %6373 = vmatprep.subr.bf16.mxu0 %v4421
        %6374 = vmatpush2.bf16.msra.mxu0 %v4420
        %6375 = vmatprep.subr.bf16.mxu0 %v4403
        %6376 = vmatpush2.bf16.msra.mxu0 %v4402
        %6377 = vmatprep.subr.bf16.mxu0 %v4385
        %6378 = vmatpush2.bf16.msra.mxu0 %v4384
        %6379 = vmatprep.subr.bf16.mxu0 %v4367
        %6380 = vmatpush2.bf16.msra.mxu0 %v4366
        %6381 = vmatprep.subr.bf16.mxu0 %v4349
        %6382 = vmatpush2.bf16.msra.mxu0 %v4348
        %6383 = vmatprep.subr.bf16.mxu0 %v4331
        %6384 = vmatpush2.bf16.msra.mxu0 %v4330
        %6385 = vmatprep.subr.bf16.mxu0 %v4313
        %6386 = vmatpush2.bf16.msra.mxu0 %v4312
        %6387 = vmatprep.subr.bf16.mxu0 %v4295
        %6388 = vmatpush2.bf16.msra.mxu0 %v4294
        %6389 = vmatprep.mubr.bf16.mxu0 %v295
        %6390 = vmatmul.mubr.bf16.gmra.mxu0 %v294
        %v6391 = vpop.f32.mrf.mxu0
        %v6392 = vadd.f32 %v6351, %v6391
        %v6393 = vpop.f32.mrf.mxu0
        %v6394 = vadd.f32 %v6353, %v6393
        %v6395 = vpop.f32.mrf.mxu0
        %v6396 = vpop.f32.mrf.mxu0
        %6397 = vdwg.mxu0
        %6398 = vmatprep.subr.bf16.mxu0 %v4565
        %6399 = vmatpush1.bf16.msra.mxu0 %v4564
        %6400 = vmatprep.subr.bf16.mxu0 %v4547
        %6401 = vmatpush1.bf16.msra.mxu0 %v4546
        %6402 = vmatprep.subr.bf16.mxu0 %v4529
        %6403 = vmatpush1.bf16.msra.mxu0 %v4528
        %6404 = vmatprep.subr.bf16.mxu0 %v4511
        %6405 = vmatpush1.bf16.msra.mxu0 %v4510
        %6406 = vmatprep.subr.bf16.mxu0 %v4493
        %6407 = vmatpush1.bf16.msra.mxu0 %v4492
        %6408 = vmatprep.subr.bf16.mxu0 %v4475
        %6409 = vmatpush1.bf16.msra.mxu0 %v4474
        %6410 = vmatprep.subr.bf16.mxu0 %v4457
        %6411 = vmatpush1.bf16.msra.mxu0 %v4456
        %6412 = vmatprep.subr.bf16.mxu0 %v4439
        %6413 = vmatpush1.bf16.msra.mxu0 %v4438
        %6414 = vmatprep.subr.bf16.mxu0 %v4709
        %6415 = vmatpush2.bf16.msra.mxu0 %v4708
        %6416 = vmatprep.subr.bf16.mxu0 %v4691
        %6417 = vmatpush2.bf16.msra.mxu0 %v4690
        %6418 = vmatprep.subr.bf16.mxu0 %v4673
        %6419 = vmatpush2.bf16.msra.mxu0 %v4672
        %6420 = vmatprep.subr.bf16.mxu0 %v4655
        %6421 = vmatpush2.bf16.msra.mxu0 %v4654
        %6422 = vmatprep.subr.bf16.mxu0 %v4637
        %6423 = vmatpush2.bf16.msra.mxu0 %v4636
        %6424 = vmatprep.subr.bf16.mxu0 %v4619
        %6425 = vmatpush2.bf16.msra.mxu0 %v4618
        %6426 = vmatprep.subr.bf16.mxu0 %v4601
        %6427 = vmatpush2.bf16.msra.mxu0 %v4600
        %6428 = vmatprep.subr.bf16.mxu0 %v4583
        %6429 = vmatpush2.bf16.msra.mxu0 %v4582
        %6430 = vmatprep.mubr.bf16.mxu0 %v297
        %6431 = vmatmul.mubr.bf16.gmra.mxu0 %v296
        %v6432 = vpop.f32.mrf.mxu0
        %v6433 = vadd.f32 %v6392, %v6432
        %v6434 = vpop.f32.mrf.mxu0
        %v6435 = vadd.f32 %v6394, %v6434
        %v6436 = vpop.f32.mrf.mxu0
        %v6437 = vpop.f32.mrf.mxu0
        %6438 = vdwg.mxu0
        %6439 = vmatprep.subr.bf16.mxu0 %v3991
        %6440 = vmatpush1.bf16.msra.mxu0 %v3990
        %6441 = vmatprep.subr.bf16.mxu0 %v3973
        %6442 = vmatpush1.bf16.msra.mxu0 %v3972
        %6443 = vmatprep.subr.bf16.mxu0 %v3955
        %6444 = vmatpush1.bf16.msra.mxu0 %v3954
        %6445 = vmatprep.subr.bf16.mxu0 %v3937
        %6446 = vmatpush1.bf16.msra.mxu0 %v3936
        %6447 = vmatprep.subr.bf16.mxu0 %v3919
        %6448 = vmatpush1.bf16.msra.mxu0 %v3918
        %6449 = vmatprep.subr.bf16.mxu0 %v3901
        %6450 = vmatpush1.bf16.msra.mxu0 %v3900
        %6451 = vmatprep.subr.bf16.mxu0 %v3883
        %6452 = vmatpush1.bf16.msra.mxu0 %v3882
        %6453 = vmatprep.subr.bf16.mxu0 %v3865
        %6454 = vmatpush1.bf16.msra.mxu0 %v3864
        %6455 = vmatprep.subr.bf16.mxu0 %v4135
        %6456 = vmatpush2.bf16.msra.mxu0 %v4134
        %6457 = vmatprep.subr.bf16.mxu0 %v4117
        %6458 = vmatpush2.bf16.msra.mxu0 %v4116
        %6459 = vmatprep.subr.bf16.mxu0 %v4099
        %6460 = vmatpush2.bf16.msra.mxu0 %v4098
        %6461 = vmatprep.subr.bf16.mxu0 %v4081
        %6462 = vmatpush2.bf16.msra.mxu0 %v4080
        %6463 = vmatprep.subr.bf16.mxu0 %v4063
        %6464 = vmatpush2.bf16.msra.mxu0 %v4062
        %6465 = vmatprep.subr.bf16.mxu0 %v4045
        %6466 = vmatpush2.bf16.msra.mxu0 %v4044
        %6467 = vmatprep.subr.bf16.mxu0 %v4027
        %6468 = vmatpush2.bf16.msra.mxu0 %v4026
        %6469 = vmatprep.subr.bf16.mxu0 %v4009
        %6470 = vmatpush2.bf16.msra.mxu0 %v4008
        %6471 = vmatprep.mubr.bf16.mxu0 %v293
        %6472 = vmatmul.mubr.bf16.gmra.mxu0 %v292
        %v6473 = vpop.f32.mrf.mxu0
        %v6474 = vadd.f32 %v1227, %v6473
        %v6475 = vpop.f32.mrf.mxu0
        %v6476 = vadd.f32 %v1231, %v6475
        %v6477 = vpop.f32.mrf.mxu0
        %v6478 = vpop.f32.mrf.mxu0
        %6479 = vdwg.mxu0
        %6480 = vmatprep.subr.bf16.mxu0 %v4279
        %6481 = vmatpush1.bf16.msra.mxu0 %v4278
        %6482 = vmatprep.subr.bf16.mxu0 %v4261
        %6483 = vmatpush1.bf16.msra.mxu0 %v4260
        %6484 = vmatprep.subr.bf16.mxu0 %v4243
        %6485 = vmatpush1.bf16.msra.mxu0 %v4242
        %6486 = vmatprep.subr.bf16.mxu0 %v4225
        %6487 = vmatpush1.bf16.msra.mxu0 %v4224
        %6488 = vmatprep.subr.bf16.mxu0 %v4207
        %6489 = vmatpush1.bf16.msra.mxu0 %v4206
        %6490 = vmatprep.subr.bf16.mxu0 %v4189
        %6491 = vmatpush1.bf16.msra.mxu0 %v4188
        %6492 = vmatprep.subr.bf16.mxu0 %v4171
        %6493 = vmatpush1.bf16.msra.mxu0 %v4170
        %6494 = vmatprep.subr.bf16.mxu0 %v4153
        %6495 = vmatpush1.bf16.msra.mxu0 %v4152
        %6496 = vmatprep.subr.bf16.mxu0 %v4423
        %6497 = vmatpush2.bf16.msra.mxu0 %v4422
        %6498 = vmatprep.subr.bf16.mxu0 %v4405
        %6499 = vmatpush2.bf16.msra.mxu0 %v4404
        %6500 = vmatprep.subr.bf16.mxu0 %v4387
        %6501 = vmatpush2.bf16.msra.mxu0 %v4386
        %6502 = vmatprep.subr.bf16.mxu0 %v4369
        %6503 = vmatpush2.bf16.msra.mxu0 %v4368
        %6504 = vmatprep.subr.bf16.mxu0 %v4351
        %6505 = vmatpush2.bf16.msra.mxu0 %v4350
        %6506 = vmatprep.subr.bf16.mxu0 %v4333
        %6507 = vmatpush2.bf16.msra.mxu0 %v4332
        %6508 = vmatprep.subr.bf16.mxu0 %v4315
        %6509 = vmatpush2.bf16.msra.mxu0 %v4314
        %6510 = vmatprep.subr.bf16.mxu0 %v4297
        %6511 = vmatpush2.bf16.msra.mxu0 %v4296
        %6512 = vmatprep.mubr.bf16.mxu0 %v295
        %6513 = vmatmul.mubr.bf16.gmra.mxu0 %v294
        %v6514 = vpop.f32.mrf.mxu0
        %v6515 = vadd.f32 %v6474, %v6514
        %v6516 = vpop.f32.mrf.mxu0
        %v6517 = vadd.f32 %v6476, %v6516
        %v6518 = vpop.f32.mrf.mxu0
        %v6519 = vpop.f32.mrf.mxu0
        %6520 = vdwg.mxu0
        %6521 = vmatprep.subr.bf16.mxu0 %v4567
        %6522 = vmatpush1.bf16.msra.mxu0 %v4566
        %6523 = vmatprep.subr.bf16.mxu0 %v4549
        %6524 = vmatpush1.bf16.msra.mxu0 %v4548
        %6525 = vmatprep.subr.bf16.mxu0 %v4531
        %6526 = vmatpush1.bf16.msra.mxu0 %v4530
        %6527 = vmatprep.subr.bf16.mxu0 %v4513
        %6528 = vmatpush1.bf16.msra.mxu0 %v4512
        %6529 = vmatprep.subr.bf16.mxu0 %v4495
        %6530 = vmatpush1.bf16.msra.mxu0 %v4494
        %6531 = vmatprep.subr.bf16.mxu0 %v4477
        %6532 = vmatpush1.bf16.msra.mxu0 %v4476
        %6533 = vmatprep.subr.bf16.mxu0 %v4459
        %6534 = vmatpush1.bf16.msra.mxu0 %v4458
        %6535 = vmatprep.subr.bf16.mxu0 %v4441
        %6536 = vmatpush1.bf16.msra.mxu0 %v4440
        %6537 = vmatprep.subr.bf16.mxu0 %v4711
        %6538 = vmatpush2.bf16.msra.mxu0 %v4710
        %6539 = vmatprep.subr.bf16.mxu0 %v4693
        %6540 = vmatpush2.bf16.msra.mxu0 %v4692
        %6541 = vmatprep.subr.bf16.mxu0 %v4675
        %6542 = vmatpush2.bf16.msra.mxu0 %v4674
        %6543 = vmatprep.subr.bf16.mxu0 %v4657
        %6544 = vmatpush2.bf16.msra.mxu0 %v4656
        %6545 = vmatprep.subr.bf16.mxu0 %v4639
        %6546 = vmatpush2.bf16.msra.mxu0 %v4638
        %6547 = vmatprep.subr.bf16.mxu0 %v4621
        %6548 = vmatpush2.bf16.msra.mxu0 %v4620
        %6549 = vmatprep.subr.bf16.mxu0 %v4603
        %6550 = vmatpush2.bf16.msra.mxu0 %v4602
        %6551 = vmatprep.subr.bf16.mxu0 %v4585
        %6552 = vmatpush2.bf16.msra.mxu0 %v4584
        %6553 = vmatprep.mubr.bf16.mxu0 %v297
        %6554 = vmatmul.mubr.bf16.gmra.mxu0 %v296
        %v6555 = vpop.f32.mrf.mxu0
        %v6556 = vadd.f32 %v6515, %v6555
        %v6557 = vpop.f32.mrf.mxu0
        %v6558 = vadd.f32 %v6517, %v6557
        %v6559 = vpop.f32.mrf.mxu0
        %v6560 = vpop.f32.mrf.mxu0
        %6561 = vdwg.mxu0
        %6562 = vmatprep.subr.bf16.mxu0 %v3993
        %6563 = vmatpush1.bf16.msra.mxu0 %v3992
        %6564 = vmatprep.subr.bf16.mxu0 %v3975
        %6565 = vmatpush1.bf16.msra.mxu0 %v3974
        %6566 = vmatprep.subr.bf16.mxu0 %v3957
        %6567 = vmatpush1.bf16.msra.mxu0 %v3956
        %6568 = vmatprep.subr.bf16.mxu0 %v3939
        %6569 = vmatpush1.bf16.msra.mxu0 %v3938
        %6570 = vmatprep.subr.bf16.mxu0 %v3921
        %6571 = vmatpush1.bf16.msra.mxu0 %v3920
        %6572 = vmatprep.subr.bf16.mxu0 %v3903
        %6573 = vmatpush1.bf16.msra.mxu0 %v3902
        %6574 = vmatprep.subr.bf16.mxu0 %v3885
        %6575 = vmatpush1.bf16.msra.mxu0 %v3884
        %6576 = vmatprep.subr.bf16.mxu0 %v3867
        %6577 = vmatpush1.bf16.msra.mxu0 %v3866
        %6578 = vmatprep.subr.bf16.mxu0 %v4137
        %6579 = vmatpush2.bf16.msra.mxu0 %v4136
        %6580 = vmatprep.subr.bf16.mxu0 %v4119
        %6581 = vmatpush2.bf16.msra.mxu0 %v4118
        %6582 = vmatprep.subr.bf16.mxu0 %v4101
        %6583 = vmatpush2.bf16.msra.mxu0 %v4100
        %6584 = vmatprep.subr.bf16.mxu0 %v4083
        %6585 = vmatpush2.bf16.msra.mxu0 %v4082
        %6586 = vmatprep.subr.bf16.mxu0 %v4065
        %6587 = vmatpush2.bf16.msra.mxu0 %v4064
        %6588 = vmatprep.subr.bf16.mxu0 %v4047
        %6589 = vmatpush2.bf16.msra.mxu0 %v4046
        %6590 = vmatprep.subr.bf16.mxu0 %v4029
        %6591 = vmatpush2.bf16.msra.mxu0 %v4028
        %6592 = vmatprep.subr.bf16.mxu0 %v4011
        %6593 = vmatpush2.bf16.msra.mxu0 %v4010
        %6594 = vmatprep.mubr.bf16.mxu0 %v293
        %6595 = vmatmul.mubr.bf16.gmra.mxu0 %v292
        %v6596 = vpop.f32.mrf.mxu0
        %v6597 = vadd.f32 %v1235, %v6596
        %v6598 = vpop.f32.mrf.mxu0
        %v6599 = vadd.f32 %v1239, %v6598
        %v6600 = vpop.f32.mrf.mxu0
        %v6601 = vpop.f32.mrf.mxu0
        %6602 = vdwg.mxu0
        %6603 = vmatprep.subr.bf16.mxu0 %v4281
        %6604 = vmatpush1.bf16.msra.mxu0 %v4280
        %6605 = vmatprep.subr.bf16.mxu0 %v4263
        %6606 = vmatpush1.bf16.msra.mxu0 %v4262
        %6607 = vmatprep.subr.bf16.mxu0 %v4245
        %6608 = vmatpush1.bf16.msra.mxu0 %v4244
        %6609 = vmatprep.subr.bf16.mxu0 %v4227
        %6610 = vmatpush1.bf16.msra.mxu0 %v4226
        %6611 = vmatprep.subr.bf16.mxu0 %v4209
        %6612 = vmatpush1.bf16.msra.mxu0 %v4208
        %6613 = vmatprep.subr.bf16.mxu0 %v4191
        %6614 = vmatpush1.bf16.msra.mxu0 %v4190
        %6615 = vmatprep.subr.bf16.mxu0 %v4173
        %6616 = vmatpush1.bf16.msra.mxu0 %v4172
        %6617 = vmatprep.subr.bf16.mxu0 %v4155
        %6618 = vmatpush1.bf16.msra.mxu0 %v4154
        %6619 = vmatprep.subr.bf16.mxu0 %v4425
        %6620 = vmatpush2.bf16.msra.mxu0 %v4424
        %6621 = vmatprep.subr.bf16.mxu0 %v4407
        %6622 = vmatpush2.bf16.msra.mxu0 %v4406
        %6623 = vmatprep.subr.bf16.mxu0 %v4389
        %6624 = vmatpush2.bf16.msra.mxu0 %v4388
        %6625 = vmatprep.subr.bf16.mxu0 %v4371
        %6626 = vmatpush2.bf16.msra.mxu0 %v4370
        %6627 = vmatprep.subr.bf16.mxu0 %v4353
        %6628 = vmatpush2.bf16.msra.mxu0 %v4352
        %6629 = vmatprep.subr.bf16.mxu0 %v4335
        %6630 = vmatpush2.bf16.msra.mxu0 %v4334
        %6631 = vmatprep.subr.bf16.mxu0 %v4317
        %6632 = vmatpush2.bf16.msra.mxu0 %v4316
        %6633 = vmatprep.subr.bf16.mxu0 %v4299
        %6634 = vmatpush2.bf16.msra.mxu0 %v4298
        %6635 = vmatprep.mubr.bf16.mxu0 %v295
        %6636 = vmatmul.mubr.bf16.gmra.mxu0 %v294
        %v6637 = vpop.f32.mrf.mxu0
        %v6638 = vadd.f32 %v6597, %v6637
        %v6639 = vpop.f32.mrf.mxu0
        %v6640 = vadd.f32 %v6599, %v6639
        %v6641 = vpop.f32.mrf.mxu0
        %v6642 = vpop.f32.mrf.mxu0
        %6643 = vdwg.mxu0
        %6644 = vmatprep.subr.bf16.mxu0 %v4569
        %6645 = vmatpush1.bf16.msra.mxu0 %v4568
        %6646 = vmatprep.subr.bf16.mxu0 %v4551
        %6647 = vmatpush1.bf16.msra.mxu0 %v4550
        %6648 = vmatprep.subr.bf16.mxu0 %v4533
        %6649 = vmatpush1.bf16.msra.mxu0 %v4532
        %6650 = vmatprep.subr.bf16.mxu0 %v4515
        %6651 = vmatpush1.bf16.msra.mxu0 %v4514
        %6652 = vmatprep.subr.bf16.mxu0 %v4497
        %6653 = vmatpush1.bf16.msra.mxu0 %v4496
        %6654 = vmatprep.subr.bf16.mxu0 %v4479
        %6655 = vmatpush1.bf16.msra.mxu0 %v4478
        %6656 = vmatprep.subr.bf16.mxu0 %v4461
        %6657 = vmatpush1.bf16.msra.mxu0 %v4460
        %6658 = vmatprep.subr.bf16.mxu0 %v4443
        %6659 = vmatpush1.bf16.msra.mxu0 %v4442
        %6660 = vmatprep.subr.bf16.mxu0 %v4713
        %6661 = vmatpush2.bf16.msra.mxu0 %v4712
        %6662 = vmatprep.subr.bf16.mxu0 %v4695
        %6663 = vmatpush2.bf16.msra.mxu0 %v4694
        %6664 = vmatprep.subr.bf16.mxu0 %v4677
        %6665 = vmatpush2.bf16.msra.mxu0 %v4676
        %6666 = vmatprep.subr.bf16.mxu0 %v4659
        %6667 = vmatpush2.bf16.msra.mxu0 %v4658
        %6668 = vmatprep.subr.bf16.mxu0 %v4641
        %6669 = vmatpush2.bf16.msra.mxu0 %v4640
        %6670 = vmatprep.subr.bf16.mxu0 %v4623
        %6671 = vmatpush2.bf16.msra.mxu0 %v4622
        %6672 = vmatprep.subr.bf16.mxu0 %v4605
        %6673 = vmatpush2.bf16.msra.mxu0 %v4604
        %6674 = vmatprep.subr.bf16.mxu0 %v4587
        %6675 = vmatpush2.bf16.msra.mxu0 %v4586
        %6676 = vmatprep.mubr.bf16.mxu0 %v297
        %6677 = vmatmul.mubr.bf16.gmra.mxu0 %v296
        %v6678 = vpop.f32.mrf.mxu0
        %v6679 = vadd.f32 %v6638, %v6678
        %v6680 = vpop.f32.mrf.mxu0
        %v6681 = vadd.f32 %v6640, %v6680
        %v6682 = vpop.f32.mrf.mxu0
        %v6683 = vpop.f32.mrf.mxu0
        %6684 = vdwg.mxu0
        %v6685 = vpack.c.bf16 %v5695, %v5695
        %v6686 = vpack.c.bf16 %v5697, %v5697
        %v6687 = vpack.c.bf16 %v5818, %v5818
        %v6688 = vpack.c.bf16 %v5820, %v5820
        %v6689 = vpack.c.bf16 %v5941, %v5941
        %v6690 = vpack.c.bf16 %v5943, %v5943
        %v6697 = vunpack.c.l.b16 %v6685
        %v6698 = vunpack.c.l.b16 %v6686
        %v6699 = vunpack.c.l.b16 %v6687
        %v6700 = vunpack.c.l.b16 %v6688
        %v6701 = vunpack.c.l.b16 %v6689
        %v6702 = vunpack.c.l.b16 %v6690
        %v6703 = vpack.c.b16 %v6698, %v6697
        %v6704 = vpack.c.b16 %v6700, %v6699
        %v6705 = vpack.c.b16 %v6702, %v6701
        %6709 = vst [vmem:[%s271] sm:$0xff] %v6703
        %6710 = vst [vmem:[%s271 + $0x8] sm:$0xff] %v6704
        %6711 = vst [vmem:[%s271 + $0x10] sm:$0xff] %v6705
        %v6712 = vpack.c.bf16 %v6064, %v6064
        %v6713 = vpack.c.bf16 %v6066, %v6066
        %v6714 = vpack.c.bf16 %v6187, %v6187
        %v6715 = vpack.c.bf16 %v6189, %v6189
        %v6716 = vpack.c.bf16 %v6310, %v6310
        %v6717 = vpack.c.bf16 %v6312, %v6312
        %v6724 = vunpack.c.l.b16 %v6712
        %v6725 = vunpack.c.l.b16 %v6713
        %v6726 = vunpack.c.l.b16 %v6714
        %v6727 = vunpack.c.l.b16 %v6715
        %v6728 = vunpack.c.l.b16 %v6716
        %v6729 = vunpack.c.l.b16 %v6717
        %v6730 = vpack.c.b16 %v6725, %v6724
        %v6731 = vpack.c.b16 %v6727, %v6726
        %v6732 = vpack.c.b16 %v6729, %v6728
        %6736 = vst [vmem:[%s278] sm:$0xff] %v6730
        %6737 = vst [vmem:[%s278 + $0x8] sm:$0xff] %v6731
        %6738 = vst [vmem:[%s278 + $0x10] sm:$0xff] %v6732
        %v6739 = vpack.c.bf16 %v6433, %v6433
        %v6740 = vpack.c.bf16 %v6435, %v6435
        %v6741 = vpack.c.bf16 %v6556, %v6556
        %v6742 = vpack.c.bf16 %v6558, %v6558
        %v6743 = vpack.c.bf16 %v6679, %v6679
        %v6744 = vpack.c.bf16 %v6681, %v6681
        %v6751 = vunpack.c.l.b16 %v6739
        %v6752 = vunpack.c.l.b16 %v6740
        %v6753 = vunpack.c.l.b16 %v6741
        %v6754 = vunpack.c.l.b16 %v6742
        %v6755 = vunpack.c.l.b16 %v6743
        %v6756 = vunpack.c.l.b16 %v6744
        %v6757 = vpack.c.b16 %v6752, %v6751
        %v6758 = vpack.c.b16 %v6754, %v6753
        %v6759 = vpack.c.b16 %v6756, %v6755
        %6763 = vst [vmem:[%s285] sm:$0xff] %v6757
        %6764 = vst [vmem:[%s285 + $0x8] sm:$0xff] %v6758
        %6765 = vst [vmem:[%s285 + $0x10] sm:$0xff] %v6759
        %s6766 = sand.u32 %s103, 1
        %s6767 = scalar_lea.sflag [#allocation4], %s6766
        %s6768 = sand.u32 %s103, 1
        %s6769 = smul.addr %s6768, 24
        %s6770 = scalar_lea.vmem [#allocation8], %s6769
        %s6771 = sand.u32 %s27, 1
        %s6772 = scalar_lea.sflag [#allocation10], %s6771
        %s6773 = sand.u32 %s129, 1
        %s6774 = smul.addr %s6773, 24
        %s6775 = scalar_lea.vmem [#allocation9], %s6774
        %s6776 = sand.u32 %s27, 1
        %s6777 = scalar_lea.sflag [#allocation10], %s6776
        %s6778 = sand.u32 %s155, 1
        %s6779 = smul.addr %s6778, 24
        %s6780 = scalar_lea.vmem [#allocation11], %s6779
        // Predicated region
        $region45: #{tpu_custom_call.1} parent=31 // pred_check
          %p6781 = pneg %p113
        $region46: #{tpu_custom_call.1} parent=31 // pred_check_branch
          %6783 = sbr.rel (%p6781) target = $region48
        $region47: #{tpu_custom_call.1} parent=31 // pred_region
          %s6785 = ssub.s32 384, 384
          %6786 = vsyncadd %s6767, %s6785
          %s6787 = smul.addr %s27, 6
          %s6788 = smul.addr %s6787, 64
          %s6789 = scalar_lea.hbm %s3, %s6788
          %s6791 = sshll.u32 %s6770, 4
          %s6792 = int_to_ptr.vmem [resolvable:$true] %s6791
          %6794 = dma.vmem_to_hbm [thread:$0]  %s6792, 384, %s6789, %s6767
        $region48: #{tpu_custom_call.1} parent=31 // pred_fallthru
          _
        // Predicated region
        $region49: #{tpu_custom_call.1} parent=31 // pred_check
          %p6795 = pneg %p139
        $region50: #{tpu_custom_call.1} parent=31 // pred_check_branch
          %6797 = sbr.rel (%p6795) target = $region52
        $region51: #{tpu_custom_call.1} parent=31 // pred_region
          %s6799 = ssub.s32 384, 384
          %6800 = vsyncadd %s6772, %s6799
          %s6801 = smul.addr %s27, 6
          %s6802 = smul.addr %s6801, 64
          %s6803 = scalar_lea.hbm %s4, %s6802
          %s6805 = sshll.u32 %s6775, 4
          %s6806 = int_to_ptr.vmem [resolvable:$true] %s6805
          %6808 = dma.vmem_to_hbm [thread:$0]  %s6806, 384, %s6803, %s6772
        $region52: #{tpu_custom_call.1} parent=31 // pred_fallthru
          _
        // Predicated region
        $region53: #{tpu_custom_call.1} parent=31 // pred_check
          %p6809 = pneg %p165
        $region54: #{tpu_custom_call.1} parent=31 // pred_check_branch
          %6811 = sbr.rel (%p6809) target = $region56
        $region55: #{tpu_custom_call.1} parent=31 // pred_region
          %s6813 = ssub.s32 384, 384
          %6814 = vsyncadd %s6777, %s6813
          %s6815 = smul.addr %s27, 6
          %s6816 = smul.addr %s6815, 64
          %s6817 = scalar_lea.hbm %s5, %s6816
          %s6819 = sshll.u32 %s6780, 4
          %s6820 = int_to_ptr.vmem [resolvable:$true] %s6819
          %6822 = dma.vmem_to_hbm [thread:$0]  %s6820, 384, %s6817, %s6777
        $region56: #{tpu_custom_call.1} parent=31 // pred_fallthru
          _
      $region32: #{tpu_custom_call.1} parent=5 // pred_fallthru
        _
      %p6823 = scmp.le.s32.totalorder 2, %s22
      // Predicated region
      $region57: #{tpu_custom_call.1} parent=5 // pred_check
        %p6824 = pneg %p6823
      $region58: #{tpu_custom_call.1} parent=5 // pred_check_branch
        %6826 = sbr.rel (%p6824) target = $region60
      $region59: #{tpu_custom_call.1} parent=5 // pred_region
        %s6827 = ssub.s32 %s22, 2
        // Predicated region
        $region61: #{tpu_custom_call.1} parent=59 // pred_check
          %p6828 = pneg %p119
        $region62: #{tpu_custom_call.1} parent=59 // pred_check_branch
          %6830 = sbr.rel (%p6828) target = $region64
        $region63: #{tpu_custom_call.1} parent=59 // pred_region
          %s6831 = sand.u32 %s104, 1
          %s6832 = scalar_lea.sflag [#allocation4], %s6831
          %s6833 = sand.u32 %s104, 1
          %s6834 = smul.addr %s6833, 24
          %s6835 = scalar_lea.vmem [#allocation8], %s6834
          %6836 = dma.done %s6832, 384
        $region64: #{tpu_custom_call.1} parent=59 // pred_fallthru
          _
        // Predicated region
        $region65: #{tpu_custom_call.1} parent=59 // pred_check
          %p6837 = pneg %p145
        $region66: #{tpu_custom_call.1} parent=59 // pred_check_branch
          %6839 = sbr.rel (%p6837) target = $region68
        $region67: #{tpu_custom_call.1} parent=59 // pred_region
          %s6840 = sand.u32 %s28, 1
          %s6841 = scalar_lea.sflag [#allocation10], %s6840
          %s6842 = sand.u32 %s130, 1
          %s6843 = smul.addr %s6842, 24
          %s6844 = scalar_lea.vmem [#allocation9], %s6843
          %6845 = dma.done %s6841, 384
        $region68: #{tpu_custom_call.1} parent=59 // pred_fallthru
          _
        // Predicated region
        $region69: #{tpu_custom_call.1} parent=59 // pred_check
          %p6846 = pneg %p171
        $region70: #{tpu_custom_call.1} parent=59 // pred_check_branch
          %6848 = sbr.rel (%p6846) target = $region72
        $region71: #{tpu_custom_call.1} parent=59 // pred_region
          %s6849 = sand.u32 %s28, 1
          %s6850 = scalar_lea.sflag [#allocation10], %s6849
          %s6851 = sand.u32 %s156, 1
          %s6852 = smul.addr %s6851, 24
          %s6853 = scalar_lea.vmem [#allocation11], %s6852
          %6854 = dma.done %s6850, 384
        $region72: #{tpu_custom_call.1} parent=59 // pred_fallthru
          _
      $region60: #{tpu_custom_call.1} parent=5 // pred_fallthru
        _
    $region6: #{tpu_custom_call.1} parent=1 // loop_footer
      %s26 = sadd.s32 1, %s22
    $region7: #{tpu_custom_call.1} parent=1 // loop_footer_branch
      %21 = sbr.rel target = $region3
    $region8: #{tpu_custom_call.1} parent=1 // loop_exit
      _
    %6855 = vsyncpa [#allocation3], 1
    %s6856 = scalar_lea.sflag [#allocation3], 1
    %6857 = vsyncpa %s6856, 1
    %6858 = vsyncpa [#allocation6], 1
    %6859 = vsyncpa [#allocation4], 1
    %s6860 = scalar_lea.sflag [#allocation4], 1
    %6861 = vsyncpa %s6860, 1
    %6862 = vsyncpa [#allocation10], 1
    %s6863 = scalar_lea.sflag [#allocation10], 1
    %6864 = vsyncpa %s6863, 1

</llo_original>
